<compile_context>
chip_gen: v7x
topology: tpu7x:2x2x1
jax: 0.10.0
libtpu: 0.0.40
codegen_flags: <defaults>
</compile_context>

<pallas_src>
import jax
import jax.numpy as jnp
from jax.experimental import pallas as pl
from jax.experimental.pallas import tpu as pltpu


# ---------------------------------------------------------------------------
# Kernel
# ---------------------------------------------------------------------------
def _attention_kernel(enc_ref, dec_ref, w_enc_ref, w_dec_ref, bias_ref, w_full_ref,
                      awe_ref, alpha_ref):
    """One grid step == TB batch rows.

    enc_ref:    (TB, P, E)  matmul dtype (bf16 stream)
    dec_ref:    (TB, D)     f32 (tiny; cast to the matmul dtype in-kernel)
    w_enc_ref:  (E, A)      matmul dtype, resident
    w_dec_ref:  (D, A)      matmul dtype, resident
    bias_ref:   (1, A)      f32, b_enc + b_dec folded together
    w_full_ref: (1, A)      f32 full_att weight as a row vector (b_full dropped:
                            constant logit offset cancels in the softmax)
    awe_ref:    (TB, E)     f32 out
    alpha_ref:  (TB, P)     f32 out (lane-dense)
    """
    TB, P, E = enc_ref.shape

    enc = enc_ref[...]                                   # (TB, P, E)
    # Merge batch/pixel dims: encoder projection becomes one tall MXU matmul
    # (M = TB*P).  Layout-preserving re-view as long as E is lane-aligned (x128).
    enc2d = enc.reshape(TB * P, E)
    att1 = jnp.dot(enc2d, w_enc_ref[...],
                   preferred_element_type=jnp.float32).reshape(TB, P, -1)     # f32

    # Fused decoder projection (tiny; hides under the big matmul) + folded biases.
    dec = dec_ref[...].astype(w_dec_ref.dtype)
    att2 = jnp.dot(dec, w_dec_ref[...],
                   preferred_element_type=jnp.float32) + bias_ref[...]        # (TB, A)

    h = jnp.maximum(att1 + att2[:, None, :], 0.0)                             # (TB, P, A)

    # full_att as a VPU multiply + lane reduction (avoids an N=1 MXU matmul).
    logits = jnp.sum(h * w_full_ref[...], axis=-1)                            # (TB, P)

    # Softmax over the pixel (lane) axis.  EXACT normalization so alpha rows sum
    # to 1 (the previous approx reciprocal failed the sum-to-one check).
    m = jnp.max(logits, axis=-1, keepdims=True)
    e = jnp.exp(logits - m)
    alpha = e / jnp.sum(e, axis=-1, keepdims=True)                            # (TB, P)

    # Attention-weighted encoding on the VPU: elementwise multiply + reduce over P.
    awe = jnp.sum(enc.astype(jnp.float32) * alpha[:, :, None], axis=1)        # (TB, E)

    awe_ref[...] = awe.astype(awe_ref.dtype)
    alpha_ref[...] = alpha.astype(alpha_ref.dtype)    # lane-dense store


# ---------------------------------------------------------------------------
# Tiling helpers
# ---------------------------------------------------------------------------
def _vmem_footprint_bytes(tb, P, E, D, A, stream_bytes=2, weight_bytes=2,
                          weight_buffers=1):
    """Conservative per-kernel VMEM estimate for a batch tile of tb rows."""
    stream = 2 * tb * P * E * stream_bytes + 2 * tb * D * 4       # double-buffered inputs
    weights = weight_buffers * ((E + D) * A * weight_bytes + 2 * A * 4)
    temps = 2 * tb * P * A * 4 + tb * P * E * 4                   # att1/h + f32 enc copy
    outs = 2 * (tb * E + tb * P) * 4                              # double-buffered outputs
    return stream + weights + temps + outs


def _pick_batch_tile(B, P, E, D, A, *, vmem_budget=48 << 20):
    """Largest sublane-aligned batch tile whose full VMEM footprint fits the budget.

    Default budget is v7x-safe (64 MiB physical per TensorCore); on v5e / v6e
    (128 MiB VMEM) pass ~100 MiB to get 2-4x larger tiles.  Tiles are multiples
    of 8 (or the full batch) so the 2-D output blocks stay sublane-aligned, and
    tiles giving >= 2 grid steps are preferred so v7x's second TensorCore gets
    work under dimension_semantics=("parallel",).
    """
    cands = sorted({t for t in range(8, B + 1, 8) if B % t == 0} | {B})
    fitting = [t for t in cands if _vmem_footprint_bytes(t, P, E, D, A) <= vmem_budget]
    if not fitting:
        fitting = [cands[0]]          # smallest legal tile; vmem_limit_bytes bumped below
    multi = [t for t in fitting if B // t >= 2]
    return max(multi) if multi else max(fitting)


def _resident_spec(shape):
    """BlockSpec for weights whose block index never changes.

    Requests single buffering (pl.Buffered(1)) when supported: default double
    buffering would waste a full extra copy of w_enc / w_dec in VMEM.
    """
    index_map = lambda b: (0,) * len(shape)
    try:
        return pl.BlockSpec(shape, index_map, pipeline_mode=pl.Buffered(1))
    except Exception:  # older jax without pipeline_mode / pl.Buffered
        return pl.BlockSpec(shape, index_map)


# ---------------------------------------------------------------------------
# Wrapper
# ---------------------------------------------------------------------------
def attention_forward(encoder_out, decoder_hidden, params, *,
                      batch_tile=None, matmul_dtype=jnp.bfloat16,
                      vmem_budget_bytes=48 << 20):
    """encoder_out: (B, P, E), decoder_hidden: (B, D); Linear weights pre-transposed
    as (in, out).  Returns (attention_weighted_encoding (B, E) f32, alpha (B, P) f32)."""
    B, P, E = encoder_out.shape
    D = decoder_hidden.shape[1]
    A = params["w_enc"].shape[1]

    # bf16 stream + bf16 MXU operands; accumulation and post-matmul math stay f32.
    enc = encoder_out.astype(matmul_dtype)
    dec = decoder_hidden.astype(jnp.float32)
    w_enc = params["w_enc"].astype(matmul_dtype)                   # (E, A)
    w_dec = params["w_dec"].astype(matmul_dtype)                   # (D, A)
    bias = (params["b_enc"] + params["b_dec"]).reshape(1, A).astype(jnp.float32)
    w_full = params["w_full"].reshape(1, A).astype(jnp.float32)    # (A, 1) -> row vector
    # b_full intentionally NOT passed: a constant logit offset cancels in the softmax.

    TB = batch_tile if batch_tile is not None else _pick_batch_tile(
        B, P, E, D, A, vmem_budget=vmem_budget_bytes)
    assert B % TB == 0, f"batch tile {TB} must divide batch {B}"
    assert TB % 8 == 0 or TB == B, "batch tile must be sublane-aligned or the full batch"

    footprint = _vmem_footprint_bytes(TB, P, E, D, A)
    vmem_limit = int(min(100 << 20, max(32 << 20, footprint * 3 // 2)))

    grid_spec = pltpu.PrefetchScalarGridSpec(
        num_scalar_prefetch=0,
        grid=(B // TB,),
        in_specs=[
            pl.BlockSpec((TB, P, E), lambda b: (b, 0, 0)),   # encoder tile (bf16 stream)
            pl.BlockSpec((TB, D), lambda b: (b, 0)),         # decoder hidden tile
            _resident_spec((E, A)),                          # w_enc (resident)
            _resident_spec((D, A)),                          # w_dec (resident)
            _resident_spec((1, A)),                          # b_enc + b_dec
            _resident_spec((1, A)),                          # w_full row vector
        ],
        out_specs=[
            pl.BlockSpec((TB, E), lambda b: (b, 0)),         # attention-weighted enc
            pl.BlockSpec((TB, P), lambda b: (b, 0)),         # alpha, lane-dense
        ],
    )

    awe, alpha = pl.pallas_call(
        _attention_kernel,
        out_shape=(
            jax.ShapeDtypeStruct((B, E), jnp.float32),
            jax.ShapeDtypeStruct((B, P), jnp.float32),
        ),
        grid_spec=grid_spec,
        compiler_params=pltpu.CompilerParams(
            dimension_semantics=("parallel",),   # batch tiles shard across TCs
            vmem_limit_bytes=vmem_limit,
        ),
    )(enc, dec, w_enc, w_dec, bias, w_full)

    return awe, alpha


# ---------------------------------------------------------------------------
# Pure-JAX reference (mirrors the PyTorch forward, including b_full)
# ---------------------------------------------------------------------------
def reference_forward(encoder_out, decoder_hidden, params):
    att1 = encoder_out @ params["w_enc"] + params["b_enc"]            # (B, P, A)
    att2 = decoder_hidden @ params["w_dec"] + params["b_dec"]         # (B, A)
    att = (jnp.maximum(att1 + att2[:, None, :], 0.0) @ params["w_full"]
           + params["b_full"])[..., 0]                                # (B, P)
    alpha = jax.nn.softmax(att, axis=1)
    awe = jnp.sum(encoder_out * alpha[..., None], axis=1)             # (B, E)
    return awe, alpha


if __name__ == "__main__":
    # Small but lane-friendly shapes consistent with the module's forward
    # (pixels / feature dims aligned to 128 lanes, batch aligned to 8 sublanes).
    B, P, E, D, A = 8, 128, 128, 128, 128

    key = jax.random.PRNGKey(0)
    k = jax.random.split(key, 8)
    encoder_out = jax.random.normal(k[0], (B, P, E), dtype=jnp.float32)
    decoder_hidden = jax.random.normal(k[1], (B, D), dtype=jnp.float32)

    # Deterministic parameter init (Linear weights stored transposed: (in, out)).
    params = {
        "w_enc": jax.random.normal(k[2], (E, A), dtype=jnp.float32) * 0.1,
        "b_enc": jax.random.normal(k[3], (A,), dtype=jnp.float32) * 0.1,
        "w_dec": jax.random.normal(k[4], (D, A), dtype=jnp.float32) * 0.1,
        "b_dec": jax.random.normal(k[5], (A,), dtype=jnp.float32) * 0.1,
        "w_full": jax.random.normal(k[6], (A, 1), dtype=jnp.float32) * 0.1,
        "b_full": jax.random.normal(k[7], (1,), dtype=jnp.float32) * 0.1,
    }

    awe, alpha = attention_forward(encoder_out, decoder_hidden, params)
    jax.block_until_ready((awe, alpha))

    awe_ref, alpha_ref = reference_forward(encoder_out, decoder_hidden, params)
    assert awe.shape == (B, E) and alpha.shape == (B, P)
    # Tolerances account for bf16 MXU operands / bf16 encoder stream (f32 accumulation).
    assert jnp.allclose(awe, awe_ref, atol=2e-2, rtol=2e-2)
    assert jnp.allclose(alpha, alpha_ref, atol=2e-2, rtol=2e-2)
    # Exact softmax normalization in-kernel -> rows sum to 1 to f32 rounding.
    assert jnp.allclose(jnp.sum(alpha, axis=1), 1.0, atol=1e-3)

    print("KERNEL_OK")
</pallas_src>

<mosaic_0001>
module attributes {stable_mosaic.version = 11 : i64} {
  func.func @_attention_kernel(%arg0: i32, %arg1: memref<8x128x128xbf16, #tpu.memory_space<vmem>>, %arg2: memref<8x128xf32, #tpu.memory_space<vmem>>, %arg3: memref<128x128xbf16, #tpu.memory_space<vmem>>, %arg4: memref<128x128xbf16, #tpu.memory_space<vmem>>, %arg5: memref<1x128xf32, #tpu.memory_space<vmem>>, %arg6: memref<1x128xf32, #tpu.memory_space<vmem>>, %arg7: memref<8x128xf32, #tpu.memory_space<vmem>>, %arg8: memref<8x128xf32, #tpu.memory_space<vmem>>) attributes {dimension_semantics = [#tpu.dimension_semantics<parallel>], iteration_bounds = array<i64: 1>, scalar_prefetch = 0 : i64, scratch_operands = 0 : i64, tpu.core_type = #tpu.core_type<tc>, window_params = [{transform_indices = @transform_0, window_bounds = array<i64: 8, 128, 128>}, {transform_indices = @transform_1, window_bounds = array<i64: 8, 128>}, {pipeline_mode = #tpu.pipeline_mode<synchronous>, transform_indices = @transform_2, window_bounds = array<i64: 128, 128>}, {pipeline_mode = #tpu.pipeline_mode<synchronous>, transform_indices = @transform_3, window_bounds = array<i64: 128, 128>}, {pipeline_mode = #tpu.pipeline_mode<synchronous>, transform_indices = @transform_4, window_bounds = array<i64: 1, 128>}, {pipeline_mode = #tpu.pipeline_mode<synchronous>, transform_indices = @transform_5, window_bounds = array<i64: 1, 128>}, {transform_indices = @transform_6, window_bounds = array<i64: 8, 128>}, {transform_indices = @transform_7, window_bounds = array<i64: 8, 128>}]} {
    %c0 = arith.constant 0 : index
    %c0_0 = arith.constant 0 : index
    %c0_1 = arith.constant 0 : index
    %0 = vector.load %arg1[%c0, %c0_0, %c0_1] : memref<8x128x128xbf16, #tpu.memory_space<vmem>>, vector<8x128x128xbf16>
    %1 = vector.shape_cast %0 : vector<8x128x128xbf16> to vector<1024x128xbf16>
    %c0_2 = arith.constant 0 : index
    %c0_3 = arith.constant 0 : index
    %2 = vector.load %arg3[%c0_2, %c0_3] : memref<128x128xbf16, #tpu.memory_space<vmem>>, vector<128x128xbf16>
    %cst = arith.constant dense<0.000000e+00> : vector<1024x128xf32>
    %3 = tpu.matmul %1, %2, %cst {dimension_numbers = #tpu.dot_dimension_numbers<[1], [0], [0], [1], [0, 0, 1, 1], [], []>} : vector<1024x128xbf16>, vector<128x128xbf16>, vector<1024x128xf32> -> vector<1024x128xf32>
    %4 = vector.shape_cast %3 : vector<1024x128xf32> to vector<8x128x128xf32>
    %c0_4 = arith.constant 0 : index
    %c0_5 = arith.constant 0 : index
    %5 = vector.load %arg2[%c0_4, %c0_5] : memref<8x128xf32, #tpu.memory_space<vmem>>, vector<8x128xf32>
    %6 = arith.truncf %5 : vector<8x128xf32> to vector<8x128xbf16>
    %c0_6 = arith.constant 0 : index
    %c0_7 = arith.constant 0 : index
    %7 = vector.load %arg4[%c0_6, %c0_7] : memref<128x128xbf16, #tpu.memory_space<vmem>>, vector<128x128xbf16>
    %cst_8 = arith.constant dense<0.000000e+00> : vector<8x128xf32>
    %8 = tpu.matmul %6, %7, %cst_8 {dimension_numbers = #tpu.dot_dimension_numbers<[1], [0], [0], [1], [0, 0, 1, 1], [], []>} : vector<8x128xbf16>, vector<128x128xbf16>, vector<8x128xf32> -> vector<8x128xf32>
    %c0_9 = arith.constant 0 : index
    %c0_10 = arith.constant 0 : index
    %9 = vector.load %arg5[%c0_9, %c0_10] : memref<1x128xf32, #tpu.memory_space<vmem>>, vector<1x128xf32>
    %10 = vector.broadcast %9 : vector<1x128xf32> to vector<8x128xf32>
    %11 = arith.addf %8, %10 : vector<8x128xf32>
    %12 = vector.shape_cast %11 : vector<8x128xf32> to vector<8x1x128xf32>
    %13 = vector.broadcast %12 : vector<8x1x128xf32> to vector<8x128x128xf32>
    %14 = arith.addf %4, %13 : vector<8x128x128xf32>
    %cst_11 = arith.constant 0.000000e+00 : f32
    %15 = vector.broadcast %cst_11 : f32 to vector<8x128x128xf32>
    %16 = arith.maximumf %14, %15 : vector<8x128x128xf32>
    %c0_12 = arith.constant 0 : index
    %c0_13 = arith.constant 0 : index
    %17 = vector.load %arg6[%c0_12, %c0_13] : memref<1x128xf32, #tpu.memory_space<vmem>>, vector<1x128xf32>
    %18 = vector.shape_cast %17 : vector<1x128xf32> to vector<1x1x128xf32>
    %19 = vector.broadcast %18 : vector<1x1x128xf32> to vector<8x128x128xf32>
    %20 = arith.mulf %16, %19 : vector<8x128x128xf32>
    %cst_14 = arith.constant dense<0.000000e+00> : vector<8x128xf32>
    %21 = vector.multi_reduction <add>, %20, %cst_14 [2] : vector<8x128x128xf32> to vector<8x128xf32>
    %cst_15 = arith.constant dense<0xFF800000> : vector<8xf32>
    %22 = vector.multi_reduction <maximumf>, %21, %cst_15 [1] : vector<8x128xf32> to vector<8xf32>
    %23 = vector.shape_cast %22 : vector<8xf32> to vector<8x1xf32>
    %24 = vector.broadcast %23 : vector<8x1xf32> to vector<8x128xf32>
    %25 = arith.subf %21, %24 : vector<8x128xf32>
    %26 = math.exp %25 : vector<8x128xf32>
    %cst_16 = arith.constant dense<0.000000e+00> : vector<8xf32>
    %27 = vector.multi_reduction <add>, %26, %cst_16 [1] : vector<8x128xf32> to vector<8xf32>
    %28 = vector.shape_cast %27 : vector<8xf32> to vector<8x1xf32>
    %29 = vector.broadcast %28 : vector<8x1xf32> to vector<8x128xf32>
    %30 = arith.divf %26, %29 : vector<8x128xf32>
    %31 = arith.extf %0 : vector<8x128x128xbf16> to vector<8x128x128xf32>
    %32 = vector.shape_cast %30 : vector<8x128xf32> to vector<8x128x1xf32>
    %33 = vector.broadcast %32 : vector<8x128x1xf32> to vector<8x128x128xf32>
    %34 = arith.mulf %31, %33 : vector<8x128x128xf32>
    %cst_17 = arith.constant dense<0.000000e+00> : vector<8x128xf32>
    %35 = vector.multi_reduction <add>, %34, %cst_17 [1] : vector<8x128x128xf32> to vector<8x128xf32>
    %c0_18 = arith.constant 0 : index
    %c0_19 = arith.constant 0 : index
    %36 = vector.load %arg7[%c0_18, %c0_19] : memref<8x128xf32, #tpu.memory_space<vmem>>, vector<8x128xf32>
    tpu.vector_store %arg7[%c0_18, %c0_19], %35 {strides = array<i32>} : memref<8x128xf32, #tpu.memory_space<vmem>>, vector<8x128xf32>,
    %c0_20 = arith.constant 0 : index
    %c0_21 = arith.constant 0 : index
    %37 = vector.load %arg8[%c0_20, %c0_21] : memref<8x128xf32, #tpu.memory_space<vmem>>, vector<8x128xf32>
    tpu.vector_store %arg8[%c0_20, %c0_21], %30 {strides = array<i32>} : memref<8x128xf32, #tpu.memory_space<vmem>>, vector<8x128xf32>,
    return
  }
  func.func @transform_0(%arg0: i32) -> (i32, i32, i32) {
    %c0_i32 = arith.constant 0 : i32
    %c0_i32_0 = arith.constant 0 : i32
    %c0_i32_1 = arith.constant 0 : i32
    return %arg0, %c0_i32, %c0_i32_0 : i32, i32, i32
  }
  func.func @transform_1(%arg0: i32) -> (i32, i32) {
    %c0_i32 = arith.constant 0 : i32
    %c0_i32_0 = arith.constant 0 : i32
    return %arg0, %c0_i32 : i32, i32
  }
  func.func @transform_2(%arg0: i32) -> (i32, i32) {
    %c0_i32 = arith.constant 0 : i32
    %c0_i32_0 = arith.constant 0 : i32
    %c0_i32_1 = arith.constant 0 : i32
    return %c0_i32, %c0_i32_0 : i32, i32
  }
  func.func @transform_3(%arg0: i32) -> (i32, i32) {
    %c0_i32 = arith.constant 0 : i32
    %c0_i32_0 = arith.constant 0 : i32
    %c0_i32_1 = arith.constant 0 : i32
    return %c0_i32, %c0_i32_0 : i32, i32
  }
  func.func @transform_4(%arg0: i32) -> (i32, i32) {
    %c0_i32 = arith.constant 0 : i32
    %c0_i32_0 = arith.constant 0 : i32
    %c0_i32_1 = arith.constant 0 : i32
    return %c0_i32, %c0_i32_0 : i32, i32
  }
  func.func @transform_5(%arg0: i32) -> (i32, i32) {
    %c0_i32 = arith.constant 0 : i32
    %c0_i32_0 = arith.constant 0 : i32
    %c0_i32_1 = arith.constant 0 : i32
    return %c0_i32, %c0_i32_0 : i32, i32
  }
  func.func @transform_6(%arg0: i32) -> (i32, i32) {
    %c0_i32 = arith.constant 0 : i32
    %c0_i32_0 = arith.constant 0 : i32
    return %arg0, %c0_i32 : i32, i32
  }
  func.func @transform_7(%arg0: i32) -> (i32, i32) {
    %c0_i32 = arith.constant 0 : i32
    %c0_i32_0 = arith.constant 0 : i32
    return %arg0, %c0_i32 : i32, i32
  }
}

</mosaic_0001>

<llo_original>
// kernel: tpu_custom_call.1
$region0: #{tpu_custom_call.1}
  #allocation0 [shape = 'u32[]', space=smem, size = 0x4, offset = 0x4, fixed_abs, tag = 'smem constant byte address 0x4 - core index']
  #allocation1 [shape = 'u32[144,128]{1,0:T(1,128)}', space=vmem, size = 0x12000, scoped, tag = 'internal scratch']
  %s0 = inlined_call_operand.hbm [shape: bf16[8,128,128], index: 0, kind: input, shape index: {}]
  %s1 = inlined_call_operand.hbm [shape: f32[8,128], index: 1, kind: input, shape index: {}]
  %s2 = inlined_call_operand.hbm [shape: bf16[128,128], index: 2, kind: input, shape index: {}]
  %s3 = inlined_call_operand.hbm [shape: bf16[128,128], index: 3, kind: input, shape index: {}]
  %s4 = inlined_call_operand.vmem [shape: f32[1,128], index: 4, kind: input, shape index: {}]
  %s5 = inlined_call_operand.vmem [shape: f32[1,128], index: 5, kind: input, shape index: {}]
  %s6 = inlined_call_operand.hbm [shape: f32[8,128], index: 6, kind: output, shape index: {0}]
  %s7 = inlined_call_operand.hbm [shape: f32[8,128], index: 7, kind: output, shape index: {1}]
  %8 = xla_tuple %s6, %s7
  %s9 = sld [smem:[#allocation0]]
  $region58: #{tpu_custom_call.1} parent=0
    _
  %s11 = ssub.s32 1, %s9
  %s12 = scalar_select 0, %s11, %s9
  $region1: #{tpu_custom_call.1} parent=0
    #allocation2 [shape = 'u8[262144]{0}', space=vmem, size = 0x40000, scoped, tag = 'input window, operand 0, single buffered']
    #allocation3 [shape = 's32[1]{0}', space=sflag, size = 0x4, scoped, tag = 'scoped memory for tpu_custom_call.1']
    #allocation4 [shape = 's32[1]{0}', space=sflag, size = 0x4, scoped, tag = 'scoped memory for tpu_custom_call.1']
    #allocation5 [shape = 'u8[4096]{0}', space=vmem, size = 0x1000, scoped, tag = 'input window, operand 1, single buffered']
    #allocation6 [shape = 's32[1]{0}', space=sflag, size = 0x4, scoped, tag = 'scoped memory for tpu_custom_call.1']
    #allocation7 [shape = 'u8[32768]{0}', space=vmem, size = 0x8000, scoped, tag = 'input window, operand 2, single buffered']
    #allocation8 [shape = 'u8[32768]{0}', space=vmem, size = 0x8000, scoped, tag = 'input window, operand 3, single buffered']
    #allocation9 [shape = 's32[1]{0}', space=sflag, size = 0x4, scoped, tag = 'scoped memory for tpu_custom_call.1']
    #allocation10 [shape = 'u8[4096]{0}', space=vmem, size = 0x1000, scoped, tag = 'output window, operand 0, single buffered']
    #allocation11 [shape = 'u8[4096]{0}', space=vmem, size = 0x1000, scoped, tag = 'output window, operand 1, single buffered']
    #allocation12 [shape = 's32[1]{0}', space=sflag, size = 0x4, scoped, tag = 'scoped memory for tpu_custom_call.1']
    %13 = vsyncpa [#allocation3], 0
    %14 = vsyncpa [#allocation6], 0
    %15 = vsyncpa [#allocation9], 0
    %16 = vsyncpa [#allocation4], 0
    %17 = vsyncpa [#allocation12], 0
    // Predicated region
    $region2: #{tpu_custom_call.1} parent=1 // pred_check
      _
    $region3: #{tpu_custom_call.1} parent=1 // pred_check_branch
      %19 = sbr.rel (0) target = $region5
    $region4: #{tpu_custom_call.1} parent=1 // pred_region
      %s21 = ssub.s32 8192, 8192
      %22 = vsyncadd [#allocation3], %s21
      %s23 = sshll.u32 [#allocation2], 4
      %s24 = int_to_ptr.vmem [resolvable:$true] %s23
      %29 = dma.hbm_to_vmem [thread:$0]  %s0, 8192, %s24, [#allocation3], 64, 64, 4
    $region5: #{tpu_custom_call.1} parent=1 // pred_fallthru
      _
    // Predicated region
    $region6: #{tpu_custom_call.1} parent=1 // pred_check
      _
    $region7: #{tpu_custom_call.1} parent=1 // pred_check_branch
      %31 = sbr.rel (0) target = $region9
    $region8: #{tpu_custom_call.1} parent=1 // pred_region
      %s33 = ssub.s32 128, 128
      %34 = vsyncadd [#allocation6], %s33
      %s36 = sshll.u32 [#allocation5], 4
      %s37 = int_to_ptr.vmem [resolvable:$true] %s36
      %39 = dma.hbm_to_vmem [thread:$0]  %s1, 128, %s37, [#allocation6]
    $region9: #{tpu_custom_call.1} parent=1 // pred_fallthru
      _
    // Predicated region
    $region10: #{tpu_custom_call.1} parent=1 // pred_check
      _
    $region11: #{tpu_custom_call.1} parent=1 // pred_check_branch
      %41 = sbr.rel (0) target = $region13
    $region12: #{tpu_custom_call.1} parent=1 // pred_region
      %s43 = ssub.s32 1024, 1024
      %44 = vsyncadd [#allocation6], %s43
      %s45 = sshll.u32 [#allocation7], 4
      %s46 = int_to_ptr.vmem [resolvable:$true] %s45
      %51 = dma.hbm_to_vmem [thread:$0]  %s2, 1024, %s46, [#allocation6], 64, 64, 4
    $region13: #{tpu_custom_call.1} parent=1 // pred_fallthru
      _
    // Predicated region
    $region14: #{tpu_custom_call.1} parent=1 // pred_check
      _
    $region15: #{tpu_custom_call.1} parent=1 // pred_check_branch
      %53 = sbr.rel (0) target = $region17
    $region16: #{tpu_custom_call.1} parent=1 // pred_region
      %s55 = ssub.s32 1024, 1024
      %56 = vsyncadd [#allocation9], %s55
      %s57 = sshll.u32 [#allocation8], 4
      %s58 = int_to_ptr.vmem [resolvable:$true] %s57
      %63 = dma.hbm_to_vmem [thread:$0]  %s3, 1024, %s58, [#allocation9], 64, 64, 4
    $region17: #{tpu_custom_call.1} parent=1 // pred_fallthru
      _
    // Predicated region
    $region18: #{tpu_custom_call.1} parent=1 // pred_check
      _
    $region19: #{tpu_custom_call.1} parent=1 // pred_check_branch
      %65 = sbr.rel (0) target = $region21
    $region20: #{tpu_custom_call.1} parent=1 // pred_region
      _
    $region21: #{tpu_custom_call.1} parent=1 // pred_fallthru
      _
    // Predicated region
    $region22: #{tpu_custom_call.1} parent=1 // pred_check
      _
    $region23: #{tpu_custom_call.1} parent=1 // pred_check_branch
      %67 = sbr.rel (0) target = $region25
    $region24: #{tpu_custom_call.1} parent=1 // pred_region
      _
    $region25: #{tpu_custom_call.1} parent=1 // pred_fallthru
      _
    // Predicated region
    $region26: #{tpu_custom_call.1} parent=1 // pred_check
      _
    $region27: #{tpu_custom_call.1} parent=1 // pred_check_branch
      %69 = sbr.rel (0) target = $region29
    $region28: #{tpu_custom_call.1} parent=1 // pred_region
      %70 = dma.done [#allocation3], 8192
    $region29: #{tpu_custom_call.1} parent=1 // pred_fallthru
      _
    // Predicated region
    $region30: #{tpu_custom_call.1} parent=1 // pred_check
      _
    $region31: #{tpu_custom_call.1} parent=1 // pred_check_branch
      %72 = sbr.rel (0) target = $region33
    $region32: #{tpu_custom_call.1} parent=1 // pred_region
      %73 = dma.done [#allocation6], 128
    $region33: #{tpu_custom_call.1} parent=1 // pred_fallthru
      _
    // Predicated region
    $region34: #{tpu_custom_call.1} parent=1 // pred_check
      _
    $region35: #{tpu_custom_call.1} parent=1 // pred_check_branch
      %75 = sbr.rel (0) target = $region37
    $region36: #{tpu_custom_call.1} parent=1 // pred_region
      %76 = dma.done [#allocation6], 1024
    $region37: #{tpu_custom_call.1} parent=1 // pred_fallthru
      _
    // Predicated region
    $region38: #{tpu_custom_call.1} parent=1 // pred_check
      _
    $region39: #{tpu_custom_call.1} parent=1 // pred_check_branch
      %78 = sbr.rel (0) target = $region41
    $region40: #{tpu_custom_call.1} parent=1 // pred_region
      %79 = dma.done [#allocation9], 1024
    $region41: #{tpu_custom_call.1} parent=1 // pred_fallthru
      _
    %v81 = vld [vmem:[#allocation2] sm:$0xf]
    %v82 = vld [vmem:[#allocation2 + $0x4] sm:$0xf]
    %v83 = vld [vmem:[#allocation2 + $0x8] sm:$0xf]
    %v84 = vld [vmem:[#allocation2 + $0xc] sm:$0xf]
    %v85 = vld [vmem:[#allocation2 + $0x10] sm:$0xf]
    %v86 = vld [vmem:[#allocation2 + $0x14] sm:$0xf]
    %v87 = vld [vmem:[#allocation2 + $0x18] sm:$0xf]
    %v88 = vld [vmem:[#allocation2 + $0x1c] sm:$0xf]
    %v89 = vld [vmem:[#allocation2 + $0x20] sm:$0xf]
    %v90 = vld [vmem:[#allocation2 + $0x24] sm:$0xf]
    %v91 = vld [vmem:[#allocation2 + $0x28] sm:$0xf]
    %v92 = vld [vmem:[#allocation2 + $0x2c] sm:$0xf]
    %v93 = vld [vmem:[#allocation2 + $0x30] sm:$0xf]
    %v94 = vld [vmem:[#allocation2 + $0x34] sm:$0xf]
    %v95 = vld [vmem:[#allocation2 + $0x38] sm:$0xf]
    %v96 = vld [vmem:[#allocation2 + $0x3c] sm:$0xf]
    %v97 = vld [vmem:[#allocation2 + $0x40] sm:$0xf]
    %v98 = vld [vmem:[#allocation2 + $0x44] sm:$0xf]
    %v99 = vld [vmem:[#allocation2 + $0x48] sm:$0xf]
    %v100 = vld [vmem:[#allocation2 + $0x4c] sm:$0xf]
    %v101 = vld [vmem:[#allocation2 + $0x50] sm:$0xf]
    %v102 = vld [vmem:[#allocation2 + $0x54] sm:$0xf]
    %v103 = vld [vmem:[#allocation2 + $0x58] sm:$0xf]
    %v104 = vld [vmem:[#allocation2 + $0x5c] sm:$0xf]
    %v105 = vld [vmem:[#allocation2 + $0x60] sm:$0xf]
    %v106 = vld [vmem:[#allocation2 + $0x64] sm:$0xf]
    %v107 = vld [vmem:[#allocation2 + $0x68] sm:$0xf]
    %v108 = vld [vmem:[#allocation2 + $0x6c] sm:$0xf]
    %v109 = vld [vmem:[#allocation2 + $0x70] sm:$0xf]
    %v110 = vld [vmem:[#allocation2 + $0x74] sm:$0xf]
    %v111 = vld [vmem:[#allocation2 + $0x78] sm:$0xf]
    %v112 = vld [vmem:[#allocation2 + $0x7c] sm:$0xf]
    %v113 = vld [vmem:[#allocation2 + $0x80] sm:$0xf]
    %v114 = vld [vmem:[#allocation2 + $0x84] sm:$0xf]
    %v115 = vld [vmem:[#allocation2 + $0x88] sm:$0xf]
    %v116 = vld [vmem:[#allocation2 + $0x8c] sm:$0xf]
    %v117 = vld [vmem:[#allocation2 + $0x90] sm:$0xf]
    %v118 = vld [vmem:[#allocation2 + $0x94] sm:$0xf]
    %v119 = vld [vmem:[#allocation2 + $0x98] sm:$0xf]
    %v120 = vld [vmem:[#allocation2 + $0x9c] sm:$0xf]
    %v121 = vld [vmem:[#allocation2 + $0xa0] sm:$0xf]
    %v122 = vld [vmem:[#allocation2 + $0xa4] sm:$0xf]
    %v123 = vld [vmem:[#allocation2 + $0xa8] sm:$0xf]
    %v124 = vld [vmem:[#allocation2 + $0xac] sm:$0xf]
    %v125 = vld [vmem:[#allocation2 + $0xb0] sm:$0xf]
    %v126 = vld [vmem:[#allocation2 + $0xb4] sm:$0xf]
    %v127 = vld [vmem:[#allocation2 + $0xb8] sm:$0xf]
    %v128 = vld [vmem:[#allocation2 + $0xbc] sm:$0xf]
    %v129 = vld [vmem:[#allocation2 + $0xc0] sm:$0xf]
    %v130 = vld [vmem:[#allocation2 + $0xc4] sm:$0xf]
    %v131 = vld [vmem:[#allocation2 + $0xc8] sm:$0xf]
    %v132 = vld [vmem:[#allocation2 + $0xcc] sm:$0xf]
    %v133 = vld [vmem:[#allocation2 + $0xd0] sm:$0xf]
    %v134 = vld [vmem:[#allocation2 + $0xd4] sm:$0xf]
    %v135 = vld [vmem:[#allocation2 + $0xd8] sm:$0xf]
    %v136 = vld [vmem:[#allocation2 + $0xdc] sm:$0xf]
    %v137 = vld [vmem:[#allocation2 + $0xe0] sm:$0xf]
    %v138 = vld [vmem:[#allocation2 + $0xe4] sm:$0xf]
    %v139 = vld [vmem:[#allocation2 + $0xe8] sm:$0xf]
    %v140 = vld [vmem:[#allocation2 + $0xec] sm:$0xf]
    %v141 = vld [vmem:[#allocation2 + $0xf0] sm:$0xf]
    %v142 = vld [vmem:[#allocation2 + $0xf4] sm:$0xf]
    %v143 = vld [vmem:[#allocation2 + $0xf8] sm:$0xf]
    %v144 = vld [vmem:[#allocation2 + $0xfc] sm:$0xf]
    %v145 = vld [vmem:[#allocation2 + $0x100] sm:$0xf]
    %v146 = vld [vmem:[#allocation2 + $0x104] sm:$0xf]
    %v147 = vld [vmem:[#allocation2 + $0x108] sm:$0xf]
    %v148 = vld [vmem:[#allocation2 + $0x10c] sm:$0xf]
    %v149 = vld [vmem:[#allocation2 + $0x110] sm:$0xf]
    %v150 = vld [vmem:[#allocation2 + $0x114] sm:$0xf]
    %v151 = vld [vmem:[#allocation2 + $0x118] sm:$0xf]
    %v152 = vld [vmem:[#allocation2 + $0x11c] sm:$0xf]
    %v153 = vld [vmem:[#allocation2 + $0x120] sm:$0xf]
    %v154 = vld [vmem:[#allocation2 + $0x124] sm:$0xf]
    %v155 = vld [vmem:[#allocation2 + $0x128] sm:$0xf]
    %v156 = vld [vmem:[#allocation2 + $0x12c] sm:$0xf]
    %v157 = vld [vmem:[#allocation2 + $0x130] sm:$0xf]
    %v158 = vld [vmem:[#allocation2 + $0x134] sm:$0xf]
    %v159 = vld [vmem:[#allocation2 + $0x138] sm:$0xf]
    %v160 = vld [vmem:[#allocation2 + $0x13c] sm:$0xf]
    %v161 = vld [vmem:[#allocation2 + $0x140] sm:$0xf]
    %v162 = vld [vmem:[#allocation2 + $0x144] sm:$0xf]
    %v163 = vld [vmem:[#allocation2 + $0x148] sm:$0xf]
    %v164 = vld [vmem:[#allocation2 + $0x14c] sm:$0xf]
    %v165 = vld [vmem:[#allocation2 + $0x150] sm:$0xf]
    %v166 = vld [vmem:[#allocation2 + $0x154] sm:$0xf]
    %v167 = vld [vmem:[#allocation2 + $0x158] sm:$0xf]
    %v168 = vld [vmem:[#allocation2 + $0x15c] sm:$0xf]
    %v169 = vld [vmem:[#allocation2 + $0x160] sm:$0xf]
    %v170 = vld [vmem:[#allocation2 + $0x164] sm:$0xf]
    %v171 = vld [vmem:[#allocation2 + $0x168] sm:$0xf]
    %v172 = vld [vmem:[#allocation2 + $0x16c] sm:$0xf]
    %v173 = vld [vmem:[#allocation2 + $0x170] sm:$0xf]
    %v174 = vld [vmem:[#allocation2 + $0x174] sm:$0xf]
    %v175 = vld [vmem:[#allocation2 + $0x178] sm:$0xf]
    %v176 = vld [vmem:[#allocation2 + $0x17c] sm:$0xf]
    %v177 = vld [vmem:[#allocation2 + $0x180] sm:$0xf]
    %v178 = vld [vmem:[#allocation2 + $0x184] sm:$0xf]
    %v179 = vld [vmem:[#allocation2 + $0x188] sm:$0xf]
    %v180 = vld [vmem:[#allocation2 + $0x18c] sm:$0xf]
    %v181 = vld [vmem:[#allocation2 + $0x190] sm:$0xf]
    %v182 = vld [vmem:[#allocation2 + $0x194] sm:$0xf]
    %v183 = vld [vmem:[#allocation2 + $0x198] sm:$0xf]
    %v184 = vld [vmem:[#allocation2 + $0x19c] sm:$0xf]
    %v185 = vld [vmem:[#allocation2 + $0x1a0] sm:$0xf]
    %v186 = vld [vmem:[#allocation2 + $0x1a4] sm:$0xf]
    %v187 = vld [vmem:[#allocation2 + $0x1a8] sm:$0xf]
    %v188 = vld [vmem:[#allocation2 + $0x1ac] sm:$0xf]
    %v189 = vld [vmem:[#allocation2 + $0x1b0] sm:$0xf]
    %v190 = vld [vmem:[#allocation2 + $0x1b4] sm:$0xf]
    %v191 = vld [vmem:[#allocation2 + $0x1b8] sm:$0xf]
    %v192 = vld [vmem:[#allocation2 + $0x1bc] sm:$0xf]
    %v193 = vld [vmem:[#allocation2 + $0x1c0] sm:$0xf]
    %v194 = vld [vmem:[#allocation2 + $0x1c4] sm:$0xf]
    %v195 = vld [vmem:[#allocation2 + $0x1c8] sm:$0xf]
    %v196 = vld [vmem:[#allocation2 + $0x1cc] sm:$0xf]
    %v197 = vld [vmem:[#allocation2 + $0x1d0] sm:$0xf]
    %v198 = vld [vmem:[#allocation2 + $0x1d4] sm:$0xf]
    %v199 = vld [vmem:[#allocation2 + $0x1d8] sm:$0xf]
    %v200 = vld [vmem:[#allocation2 + $0x1dc] sm:$0xf]
    %v201 = vld [vmem:[#allocation2 + $0x1e0] sm:$0xf]
    %v202 = vld [vmem:[#allocation2 + $0x1e4] sm:$0xf]
    %v203 = vld [vmem:[#allocation2 + $0x1e8] sm:$0xf]
    %v204 = vld [vmem:[#allocation2 + $0x1ec] sm:$0xf]
    %v205 = vld [vmem:[#allocation2 + $0x1f0] sm:$0xf]
    %v206 = vld [vmem:[#allocation2 + $0x1f4] sm:$0xf]
    %v207 = vld [vmem:[#allocation2 + $0x1f8] sm:$0xf]
    %v208 = vld [vmem:[#allocation2 + $0x1fc] sm:$0xf]
    %v209 = vld [vmem:[#allocation7] sm:$0xf]
    %v210 = vld [vmem:[#allocation7 + $0x4] sm:$0xf]
    %v211 = vld [vmem:[#allocation7 + $0x8] sm:$0xf]
    %v212 = vld [vmem:[#allocation7 + $0xc] sm:$0xf]
    %v213 = vld [vmem:[#allocation7 + $0x10] sm:$0xf]
    %v214 = vld [vmem:[#allocation7 + $0x14] sm:$0xf]
    %v215 = vld [vmem:[#allocation7 + $0x18] sm:$0xf]
    %v216 = vld [vmem:[#allocation7 + $0x1c] sm:$0xf]
    %v217 = vld [vmem:[#allocation7 + $0x20] sm:$0xf]
    %v218 = vld [vmem:[#allocation7 + $0x24] sm:$0xf]
    %v219 = vld [vmem:[#allocation7 + $0x28] sm:$0xf]
    %v220 = vld [vmem:[#allocation7 + $0x2c] sm:$0xf]
    %v221 = vld [vmem:[#allocation7 + $0x30] sm:$0xf]
    %v222 = vld [vmem:[#allocation7 + $0x34] sm:$0xf]
    %v223 = vld [vmem:[#allocation7 + $0x38] sm:$0xf]
    %v224 = vld [vmem:[#allocation7 + $0x3c] sm:$0xf]
    %v353 = vunpack.c.l.b16 %v81
    %v354 = vunpack.c.l.b16 %v82
    %v355 = vunpack.c.l.b16 %v83
    %v356 = vunpack.c.l.b16 %v84
    %v357 = vunpack.c.l.b16 %v85
    %v358 = vunpack.c.l.b16 %v86
    %v359 = vunpack.c.l.b16 %v87
    %v360 = vunpack.c.l.b16 %v88
    %v361 = vunpack.c.l.b16 %v89
    %v362 = vunpack.c.l.b16 %v90
    %v363 = vunpack.c.l.b16 %v91
    %v364 = vunpack.c.l.b16 %v92
    %v365 = vunpack.c.l.b16 %v93
    %v366 = vunpack.c.l.b16 %v94
    %v367 = vunpack.c.l.b16 %v95
    %v368 = vunpack.c.l.b16 %v96
    %v369 = vunpack.c.l.b16 %v97
    %v370 = vunpack.c.l.b16 %v98
    %v371 = vunpack.c.l.b16 %v99
    %v372 = vunpack.c.l.b16 %v100
    %v373 = vunpack.c.l.b16 %v101
    %v374 = vunpack.c.l.b16 %v102
    %v375 = vunpack.c.l.b16 %v103
    %v376 = vunpack.c.l.b16 %v104
    %v377 = vunpack.c.l.b16 %v105
    %v378 = vunpack.c.l.b16 %v106
    %v379 = vunpack.c.l.b16 %v107
    %v380 = vunpack.c.l.b16 %v108
    %v381 = vunpack.c.l.b16 %v109
    %v382 = vunpack.c.l.b16 %v110
    %v383 = vunpack.c.l.b16 %v111
    %v384 = vunpack.c.l.b16 %v112
    %v385 = vunpack.c.l.b16 %v113
    %v386 = vunpack.c.l.b16 %v114
    %v387 = vunpack.c.l.b16 %v115
    %v388 = vunpack.c.l.b16 %v116
    %v389 = vunpack.c.l.b16 %v117
    %v390 = vunpack.c.l.b16 %v118
    %v391 = vunpack.c.l.b16 %v119
    %v392 = vunpack.c.l.b16 %v120
    %v393 = vunpack.c.l.b16 %v121
    %v394 = vunpack.c.l.b16 %v122
    %v395 = vunpack.c.l.b16 %v123
    %v396 = vunpack.c.l.b16 %v124
    %v397 = vunpack.c.l.b16 %v125
    %v398 = vunpack.c.l.b16 %v126
    %v399 = vunpack.c.l.b16 %v127
    %v400 = vunpack.c.l.b16 %v128
    %v401 = vunpack.c.l.b16 %v129
    %v402 = vunpack.c.l.b16 %v130
    %v403 = vunpack.c.l.b16 %v131
    %v404 = vunpack.c.l.b16 %v132
    %v405 = vunpack.c.l.b16 %v133
    %v406 = vunpack.c.l.b16 %v134
    %v407 = vunpack.c.l.b16 %v135
    %v408 = vunpack.c.l.b16 %v136
    %v409 = vunpack.c.l.b16 %v137
    %v410 = vunpack.c.l.b16 %v138
    %v411 = vunpack.c.l.b16 %v139
    %v412 = vunpack.c.l.b16 %v140
    %v413 = vunpack.c.l.b16 %v141
    %v414 = vunpack.c.l.b16 %v142
    %v415 = vunpack.c.l.b16 %v143
    %v416 = vunpack.c.l.b16 %v144
    %v417 = vunpack.c.l.b16 %v145
    %v418 = vunpack.c.l.b16 %v146
    %v419 = vunpack.c.l.b16 %v147
    %v420 = vunpack.c.l.b16 %v148
    %v421 = vunpack.c.l.b16 %v149
    %v422 = vunpack.c.l.b16 %v150
    %v423 = vunpack.c.l.b16 %v151
    %v424 = vunpack.c.l.b16 %v152
    %v425 = vunpack.c.l.b16 %v153
    %v426 = vunpack.c.l.b16 %v154
    %v427 = vunpack.c.l.b16 %v155
    %v428 = vunpack.c.l.b16 %v156
    %v429 = vunpack.c.l.b16 %v157
    %v430 = vunpack.c.l.b16 %v158
    %v431 = vunpack.c.l.b16 %v159
    %v432 = vunpack.c.l.b16 %v160
    %v433 = vunpack.c.l.b16 %v161
    %v434 = vunpack.c.l.b16 %v162
    %v435 = vunpack.c.l.b16 %v163
    %v436 = vunpack.c.l.b16 %v164
    %v437 = vunpack.c.l.b16 %v165
    %v438 = vunpack.c.l.b16 %v166
    %v439 = vunpack.c.l.b16 %v167
    %v440 = vunpack.c.l.b16 %v168
    %v441 = vunpack.c.l.b16 %v169
    %v442 = vunpack.c.l.b16 %v170
    %v443 = vunpack.c.l.b16 %v171
    %v444 = vunpack.c.l.b16 %v172
    %v445 = vunpack.c.l.b16 %v173
    %v446 = vunpack.c.l.b16 %v174
    %v447 = vunpack.c.l.b16 %v175
    %v448 = vunpack.c.l.b16 %v176
    %v449 = vunpack.c.l.b16 %v177
    %v450 = vunpack.c.l.b16 %v178
    %v451 = vunpack.c.l.b16 %v179
    %v452 = vunpack.c.l.b16 %v180
    %v453 = vunpack.c.l.b16 %v181
    %v454 = vunpack.c.l.b16 %v182
    %v455 = vunpack.c.l.b16 %v183
    %v456 = vunpack.c.l.b16 %v184
    %v457 = vunpack.c.l.b16 %v185
    %v458 = vunpack.c.l.b16 %v186
    %v459 = vunpack.c.l.b16 %v187
    %v460 = vunpack.c.l.b16 %v188
    %v461 = vunpack.c.l.b16 %v189
    %v462 = vunpack.c.l.b16 %v190
    %v463 = vunpack.c.l.b16 %v191
    %v464 = vunpack.c.l.b16 %v192
    %v465 = vunpack.c.l.b16 %v193
    %v466 = vunpack.c.l.b16 %v194
    %v467 = vunpack.c.l.b16 %v195
    %v468 = vunpack.c.l.b16 %v196
    %v469 = vunpack.c.l.b16 %v197
    %v470 = vunpack.c.l.b16 %v198
    %v471 = vunpack.c.l.b16 %v199
    %v472 = vunpack.c.l.b16 %v200
    %v473 = vunpack.c.l.b16 %v201
    %v474 = vunpack.c.l.b16 %v202
    %v475 = vunpack.c.l.b16 %v203
    %v476 = vunpack.c.l.b16 %v204
    %v477 = vunpack.c.l.b16 %v205
    %v478 = vunpack.c.l.b16 %v206
    %v479 = vunpack.c.l.b16 %v207
    %v480 = vunpack.c.l.b16 %v208
    %v481 = vpack.c.b16 %v354, %v353
    %v482 = vpack.c.b16 %v356, %v355
    %v483 = vpack.c.b16 %v358, %v357
    %v484 = vpack.c.b16 %v360, %v359
    %v485 = vpack.c.b16 %v362, %v361
    %v486 = vpack.c.b16 %v364, %v363
    %v487 = vpack.c.b16 %v366, %v365
    %v488 = vpack.c.b16 %v368, %v367
    %v489 = vpack.c.b16 %v370, %v369
    %v490 = vpack.c.b16 %v372, %v371
    %v491 = vpack.c.b16 %v374, %v373
    %v492 = vpack.c.b16 %v376, %v375
    %v493 = vpack.c.b16 %v378, %v377
    %v494 = vpack.c.b16 %v380, %v379
    %v495 = vpack.c.b16 %v382, %v381
    %v496 = vpack.c.b16 %v384, %v383
    %v497 = vpack.c.b16 %v386, %v385
    %v498 = vpack.c.b16 %v388, %v387
    %v499 = vpack.c.b16 %v390, %v389
    %v500 = vpack.c.b16 %v392, %v391
    %v501 = vpack.c.b16 %v394, %v393
    %v502 = vpack.c.b16 %v396, %v395
    %v503 = vpack.c.b16 %v398, %v397
    %v504 = vpack.c.b16 %v400, %v399
    %v505 = vpack.c.b16 %v402, %v401
    %v506 = vpack.c.b16 %v404, %v403
    %v507 = vpack.c.b16 %v406, %v405
    %v508 = vpack.c.b16 %v408, %v407
    %v509 = vpack.c.b16 %v410, %v409
    %v510 = vpack.c.b16 %v412, %v411
    %v511 = vpack.c.b16 %v414, %v413
    %v512 = vpack.c.b16 %v416, %v415
    %v513 = vpack.c.b16 %v418, %v417
    %v514 = vpack.c.b16 %v420, %v419
    %v515 = vpack.c.b16 %v422, %v421
    %v516 = vpack.c.b16 %v424, %v423
    %v517 = vpack.c.b16 %v426, %v425
    %v518 = vpack.c.b16 %v428, %v427
    %v519 = vpack.c.b16 %v430, %v429
    %v520 = vpack.c.b16 %v432, %v431
    %v521 = vpack.c.b16 %v434, %v433
    %v522 = vpack.c.b16 %v436, %v435
    %v523 = vpack.c.b16 %v438, %v437
    %v524 = vpack.c.b16 %v440, %v439
    %v525 = vpack.c.b16 %v442, %v441
    %v526 = vpack.c.b16 %v444, %v443
    %v527 = vpack.c.b16 %v446, %v445
    %v528 = vpack.c.b16 %v448, %v447
    %v529 = vpack.c.b16 %v450, %v449
    %v530 = vpack.c.b16 %v452, %v451
    %v531 = vpack.c.b16 %v454, %v453
    %v532 = vpack.c.b16 %v456, %v455
    %v533 = vpack.c.b16 %v458, %v457
    %v534 = vpack.c.b16 %v460, %v459
    %v535 = vpack.c.b16 %v462, %v461
    %v536 = vpack.c.b16 %v464, %v463
    %v537 = vpack.c.b16 %v466, %v465
    %v538 = vpack.c.b16 %v468, %v467
    %v539 = vpack.c.b16 %v470, %v469
    %v540 = vpack.c.b16 %v472, %v471
    %v541 = vpack.c.b16 %v474, %v473
    %v542 = vpack.c.b16 %v476, %v475
    %v543 = vpack.c.b16 %v478, %v477
    %v544 = vpack.c.b16 %v480, %v479
    %v625 = vunpack.c.l.b16 %v209
    %v626 = vunpack.c.l.b16 %v210
    %v627 = vunpack.c.l.b16 %v211
    %v628 = vunpack.c.l.b16 %v212
    %v629 = vunpack.c.l.b16 %v213
    %v630 = vunpack.c.l.b16 %v214
    %v631 = vunpack.c.l.b16 %v215
    %v632 = vunpack.c.l.b16 %v216
    %v633 = vunpack.c.l.b16 %v217
    %v634 = vunpack.c.l.b16 %v218
    %v635 = vunpack.c.l.b16 %v219
    %v636 = vunpack.c.l.b16 %v220
    %v637 = vunpack.c.l.b16 %v221
    %v638 = vunpack.c.l.b16 %v222
    %v639 = vunpack.c.l.b16 %v223
    %v640 = vunpack.c.l.b16 %v224
    %v641 = vpack.c.b16 %v626, %v625
    %v642 = vpack.c.b16 %v628, %v627
    %v643 = vpack.c.b16 %v630, %v629
    %v644 = vpack.c.b16 %v632, %v631
    %v645 = vpack.c.b16 %v634, %v633
    %v646 = vpack.c.b16 %v636, %v635
    %v647 = vpack.c.b16 %v638, %v637
    %v648 = vpack.c.b16 %v640, %v639
    %657 = vmatprep.subr.bf16.mxu0 0
    %658 = vmatpush1.bf16.msra.mxu0 %v641
    %659 = vmatprep.subr.bf16.mxu0 0
    %660 = vmatpush1.bf16.msra.mxu0 %v642
    %661 = vmatprep.subr.bf16.mxu0 0
    %662 = vmatpush1.bf16.msra.mxu0 %v643
    %663 = vmatprep.subr.bf16.mxu0 0
    %664 = vmatpush1.bf16.msra.mxu0 %v644
    %665 = vmatprep.subr.bf16.mxu0 0
    %666 = vmatpush1.bf16.msra.mxu0 %v645
    %667 = vmatprep.subr.bf16.mxu0 0
    %668 = vmatpush1.bf16.msra.mxu0 %v646
    %669 = vmatprep.subr.bf16.mxu0 0
    %670 = vmatpush1.bf16.msra.mxu0 %v647
    %671 = vmatprep.subr.bf16.mxu0 0
    %672 = vmatpush1.bf16.msra.mxu0 %v648
    %673 = vmatprep.subr.bf16.mxu0 0
    %674 = vmatpush1.bf16.msra.mxu0 0
    %675 = vmatprep.subr.bf16.mxu0 0
    %676 = vmatpush1.bf16.msra.mxu0 0
    %677 = vmatprep.subr.bf16.mxu0 0
    %678 = vmatpush1.bf16.msra.mxu0 0
    %679 = vmatprep.subr.bf16.mxu0 0
    %680 = vmatpush1.bf16.msra.mxu0 0
    %681 = vmatprep.subr.bf16.mxu0 0
    %682 = vmatpush1.bf16.msra.mxu0 0
    %683 = vmatprep.subr.bf16.mxu0 0
    %684 = vmatpush1.bf16.msra.mxu0 0
    %685 = vmatprep.subr.bf16.mxu0 0
    %686 = vmatpush1.bf16.msra.mxu0 0
    %687 = vmatprep.subr.bf16.mxu0 0
    %688 = vmatpush1.bf16.msra.mxu0 0
    %689 = vmatprep.mubr.bf16.mxu0 0
    %690 = vmatmul.mubr.bf16.gmra.mrb[0].mxu0 %v481
    %v691 = vpop.f32.mrb[0].mxu0
    %v692 = vadd.f32 0.0, %v691
    %v693 = vpop.f32.mrb[0].mxu0
    %v694 = vpop.f32.mrb[0].mxu0
    %v695 = vadd.f32 0.0, %v694
    %v696 = vpop.f32.mrb[0].mxu0
    %697 = vmatprep.mubr.bf16.mxu0 0
    %698 = vmatmul.mubr.bf16.gmra.mrb[0].mxu0 %v482
    %v699 = vpop.f32.mrb[0].mxu0
    %v700 = vadd.f32 0.0, %v699
    %v701 = vpop.f32.mrb[0].mxu0
    %v702 = vpop.f32.mrb[0].mxu0
    %v703 = vadd.f32 0.0, %v702
    %v704 = vpop.f32.mrb[0].mxu0
    %705 = vmatprep.mubr.bf16.mxu0 0
    %706 = vmatmul.mubr.bf16.gmra.mrb[0].mxu0 %v483
    %v707 = vpop.f32.mrb[0].mxu0
    %v708 = vadd.f32 0.0, %v707
    %v709 = vpop.f32.mrb[0].mxu0
    %v710 = vpop.f32.mrb[0].mxu0
    %v711 = vadd.f32 0.0, %v710
    %v712 = vpop.f32.mrb[0].mxu0
    %713 = vmatprep.mubr.bf16.mxu0 0
    %714 = vmatmul.mubr.bf16.gmra.mrb[0].mxu0 %v484
    %v715 = vpop.f32.mrb[0].mxu0
    %v716 = vadd.f32 0.0, %v715
    %v717 = vpop.f32.mrb[0].mxu0
    %v718 = vpop.f32.mrb[0].mxu0
    %v719 = vadd.f32 0.0, %v718
    %v720 = vpop.f32.mrb[0].mxu0
    %721 = vmatprep.mubr.bf16.mxu0 0
    %722 = vmatmul.mubr.bf16.gmra.mrb[0].mxu0 %v485
    %v723 = vpop.f32.mrb[0].mxu0
    %v724 = vadd.f32 0.0, %v723
    %v725 = vpop.f32.mrb[0].mxu0
    %v726 = vpop.f32.mrb[0].mxu0
    %v727 = vadd.f32 0.0, %v726
    %v728 = vpop.f32.mrb[0].mxu0
    %729 = vmatprep.mubr.bf16.mxu0 0
    %730 = vmatmul.mubr.bf16.gmra.mrb[0].mxu0 %v486
    %v731 = vpop.f32.mrb[0].mxu0
    %v732 = vadd.f32 0.0, %v731
    %v733 = vpop.f32.mrb[0].mxu0
    %v734 = vpop.f32.mrb[0].mxu0
    %v735 = vadd.f32 0.0, %v734
    %v736 = vpop.f32.mrb[0].mxu0
    %737 = vmatprep.mubr.bf16.mxu0 0
    %738 = vmatmul.mubr.bf16.gmra.mrb[0].mxu0 %v487
    %v739 = vpop.f32.mrb[0].mxu0
    %v740 = vadd.f32 0.0, %v739
    %v741 = vpop.f32.mrb[0].mxu0
    %v742 = vpop.f32.mrb[0].mxu0
    %v743 = vadd.f32 0.0, %v742
    %v744 = vpop.f32.mrb[0].mxu0
    %745 = vmatprep.mubr.bf16.mxu0 0
    %746 = vmatmul.mubr.bf16.gmra.mrb[0].mxu0 %v488
    %v747 = vpop.f32.mrb[0].mxu0
    %v748 = vadd.f32 0.0, %v747
    %v749 = vpop.f32.mrb[0].mxu0
    %v750 = vpop.f32.mrb[0].mxu0
    %v751 = vadd.f32 0.0, %v750
    %v752 = vpop.f32.mrb[0].mxu0
    %753 = vmatprep.mubr.bf16.mxu0 0
    %754 = vmatmul.mubr.bf16.gmra.mrb[0].mxu0 %v489
    %v755 = vpop.f32.mrb[0].mxu0
    %v756 = vadd.f32 0.0, %v755
    %v757 = vpop.f32.mrb[0].mxu0
    %v758 = vpop.f32.mrb[0].mxu0
    %v759 = vadd.f32 0.0, %v758
    %v760 = vpop.f32.mrb[0].mxu0
    %761 = vmatprep.mubr.bf16.mxu0 0
    %762 = vmatmul.mubr.bf16.gmra.mrb[0].mxu0 %v490
    %v763 = vpop.f32.mrb[0].mxu0
    %v764 = vadd.f32 0.0, %v763
    %v765 = vpop.f32.mrb[0].mxu0
    %v766 = vpop.f32.mrb[0].mxu0
    %v767 = vadd.f32 0.0, %v766
    %v768 = vpop.f32.mrb[0].mxu0
    %769 = vmatprep.mubr.bf16.mxu0 0
    %770 = vmatmul.mubr.bf16.gmra.mrb[0].mxu0 %v491
    %v771 = vpop.f32.mrb[0].mxu0
    %v772 = vadd.f32 0.0, %v771
    %v773 = vpop.f32.mrb[0].mxu0
    %v774 = vpop.f32.mrb[0].mxu0
    %v775 = vadd.f32 0.0, %v774
    %v776 = vpop.f32.mrb[0].mxu0
    %777 = vmatprep.mubr.bf16.mxu0 0
    %778 = vmatmul.mubr.bf16.gmra.mrb[0].mxu0 %v492
    %v779 = vpop.f32.mrb[0].mxu0
    %v780 = vadd.f32 0.0, %v779
    %v781 = vpop.f32.mrb[0].mxu0
    %v782 = vpop.f32.mrb[0].mxu0
    %v783 = vadd.f32 0.0, %v782
    %v784 = vpop.f32.mrb[0].mxu0
    %785 = vmatprep.mubr.bf16.mxu0 0
    %786 = vmatmul.mubr.bf16.gmra.mrb[0].mxu0 %v493
    %v787 = vpop.f32.mrb[0].mxu0
    %v788 = vadd.f32 0.0, %v787
    %v789 = vpop.f32.mrb[0].mxu0
    %v790 = vpop.f32.mrb[0].mxu0
    %v791 = vadd.f32 0.0, %v790
    %v792 = vpop.f32.mrb[0].mxu0
    %793 = vmatprep.mubr.bf16.mxu0 0
    %794 = vmatmul.mubr.bf16.gmra.mrb[0].mxu0 %v494
    %v795 = vpop.f32.mrb[0].mxu0
    %v796 = vadd.f32 0.0, %v795
    %v797 = vpop.f32.mrb[0].mxu0
    %v798 = vpop.f32.mrb[0].mxu0
    %v799 = vadd.f32 0.0, %v798
    %v800 = vpop.f32.mrb[0].mxu0
    %801 = vmatprep.mubr.bf16.mxu0 0
    %802 = vmatmul.mubr.bf16.gmra.mrb[0].mxu0 %v495
    %v803 = vpop.f32.mrb[0].mxu0
    %v804 = vadd.f32 0.0, %v803
    %v805 = vpop.f32.mrb[0].mxu0
    %v806 = vpop.f32.mrb[0].mxu0
    %v807 = vadd.f32 0.0, %v806
    %v808 = vpop.f32.mrb[0].mxu0
    %809 = vmatprep.mubr.bf16.mxu0 0
    %810 = vmatmul.mubr.bf16.gmra.mrb[0].mxu0 %v496
    %v811 = vpop.f32.mrb[0].mxu0
    %v812 = vadd.f32 0.0, %v811
    %v813 = vpop.f32.mrb[0].mxu0
    %v814 = vpop.f32.mrb[0].mxu0
    %v815 = vadd.f32 0.0, %v814
    %v816 = vpop.f32.mrb[0].mxu0
    %817 = vmatprep.mubr.bf16.mxu0 0
    %818 = vmatmul.mubr.bf16.gmra.mrb[0].mxu0 %v497
    %v819 = vpop.f32.mrb[0].mxu0
    %v820 = vadd.f32 0.0, %v819
    %v821 = vpop.f32.mrb[0].mxu0
    %v822 = vpop.f32.mrb[0].mxu0
    %v823 = vadd.f32 0.0, %v822
    %v824 = vpop.f32.mrb[0].mxu0
    %825 = vmatprep.mubr.bf16.mxu0 0
    %826 = vmatmul.mubr.bf16.gmra.mrb[0].mxu0 %v498
    %v827 = vpop.f32.mrb[0].mxu0
    %v828 = vadd.f32 0.0, %v827
    %v829 = vpop.f32.mrb[0].mxu0
    %v830 = vpop.f32.mrb[0].mxu0
    %v831 = vadd.f32 0.0, %v830
    %v832 = vpop.f32.mrb[0].mxu0
    %833 = vmatprep.mubr.bf16.mxu0 0
    %834 = vmatmul.mubr.bf16.gmra.mrb[0].mxu0 %v499
    %v835 = vpop.f32.mrb[0].mxu0
    %v836 = vadd.f32 0.0, %v835
    %v837 = vpop.f32.mrb[0].mxu0
    %v838 = vpop.f32.mrb[0].mxu0
    %v839 = vadd.f32 0.0, %v838
    %v840 = vpop.f32.mrb[0].mxu0
    %841 = vmatprep.mubr.bf16.mxu0 0
    %842 = vmatmul.mubr.bf16.gmra.mrb[0].mxu0 %v500
    %v843 = vpop.f32.mrb[0].mxu0
    %v844 = vadd.f32 0.0, %v843
    %v845 = vpop.f32.mrb[0].mxu0
    %v846 = vpop.f32.mrb[0].mxu0
    %v847 = vadd.f32 0.0, %v846
    %v848 = vpop.f32.mrb[0].mxu0
    %849 = vmatprep.mubr.bf16.mxu0 0
    %850 = vmatmul.mubr.bf16.gmra.mrb[0].mxu0 %v501
    %v851 = vpop.f32.mrb[0].mxu0
    %v852 = vadd.f32 0.0, %v851
    %v853 = vpop.f32.mrb[0].mxu0
    %v854 = vpop.f32.mrb[0].mxu0
    %v855 = vadd.f32 0.0, %v854
    %v856 = vpop.f32.mrb[0].mxu0
    %857 = vmatprep.mubr.bf16.mxu0 0
    %858 = vmatmul.mubr.bf16.gmra.mrb[0].mxu0 %v502
    %v859 = vpop.f32.mrb[0].mxu0
    %v860 = vadd.f32 0.0, %v859
    %v861 = vpop.f32.mrb[0].mxu0
    %v862 = vpop.f32.mrb[0].mxu0
    %v863 = vadd.f32 0.0, %v862
    %v864 = vpop.f32.mrb[0].mxu0
    %865 = vmatprep.mubr.bf16.mxu0 0
    %866 = vmatmul.mubr.bf16.gmra.mrb[0].mxu0 %v503
    %v867 = vpop.f32.mrb[0].mxu0
    %v868 = vadd.f32 0.0, %v867
    %v869 = vpop.f32.mrb[0].mxu0
    %v870 = vpop.f32.mrb[0].mxu0
    %v871 = vadd.f32 0.0, %v870
    %v872 = vpop.f32.mrb[0].mxu0
    %873 = vmatprep.mubr.bf16.mxu0 0
    %874 = vmatmul.mubr.bf16.gmra.mrb[0].mxu0 %v504
    %v875 = vpop.f32.mrb[0].mxu0
    %v876 = vadd.f32 0.0, %v875
    %v877 = vpop.f32.mrb[0].mxu0
    %v878 = vpop.f32.mrb[0].mxu0
    %v879 = vadd.f32 0.0, %v878
    %v880 = vpop.f32.mrb[0].mxu0
    %881 = vmatprep.mubr.bf16.mxu0 0
    %882 = vmatmul.mubr.bf16.gmra.mrb[0].mxu0 %v505
    %v883 = vpop.f32.mrb[0].mxu0
    %v884 = vadd.f32 0.0, %v883
    %v885 = vpop.f32.mrb[0].mxu0
    %v886 = vpop.f32.mrb[0].mxu0
    %v887 = vadd.f32 0.0, %v886
    %v888 = vpop.f32.mrb[0].mxu0
    %889 = vmatprep.mubr.bf16.mxu0 0
    %890 = vmatmul.mubr.bf16.gmra.mrb[0].mxu0 %v506
    %v891 = vpop.f32.mrb[0].mxu0
    %v892 = vadd.f32 0.0, %v891
    %v893 = vpop.f32.mrb[0].mxu0
    %v894 = vpop.f32.mrb[0].mxu0
    %v895 = vadd.f32 0.0, %v894
    %v896 = vpop.f32.mrb[0].mxu0
    %897 = vmatprep.mubr.bf16.mxu0 0
    %898 = vmatmul.mubr.bf16.gmra.mrb[0].mxu0 %v507
    %v899 = vpop.f32.mrb[0].mxu0
    %v900 = vadd.f32 0.0, %v899
    %v901 = vpop.f32.mrb[0].mxu0
    %v902 = vpop.f32.mrb[0].mxu0
    %v903 = vadd.f32 0.0, %v902
    %v904 = vpop.f32.mrb[0].mxu0
    %905 = vmatprep.mubr.bf16.mxu0 0
    %906 = vmatmul.mubr.bf16.gmra.mrb[0].mxu0 %v508
    %v907 = vpop.f32.mrb[0].mxu0
    %v908 = vadd.f32 0.0, %v907
    %v909 = vpop.f32.mrb[0].mxu0
    %v910 = vpop.f32.mrb[0].mxu0
    %v911 = vadd.f32 0.0, %v910
    %v912 = vpop.f32.mrb[0].mxu0
    %913 = vmatprep.mubr.bf16.mxu0 0
    %914 = vmatmul.mubr.bf16.gmra.mrb[0].mxu0 %v509
    %v915 = vpop.f32.mrb[0].mxu0
    %v916 = vadd.f32 0.0, %v915
    %v917 = vpop.f32.mrb[0].mxu0
    %v918 = vpop.f32.mrb[0].mxu0
    %v919 = vadd.f32 0.0, %v918
    %v920 = vpop.f32.mrb[0].mxu0
    %921 = vmatprep.mubr.bf16.mxu0 0
    %922 = vmatmul.mubr.bf16.gmra.mrb[0].mxu0 %v510
    %v923 = vpop.f32.mrb[0].mxu0
    %v924 = vadd.f32 0.0, %v923
    %v925 = vpop.f32.mrb[0].mxu0
    %v926 = vpop.f32.mrb[0].mxu0
    %v927 = vadd.f32 0.0, %v926
    %v928 = vpop.f32.mrb[0].mxu0
    %929 = vmatprep.mubr.bf16.mxu0 0
    %930 = vmatmul.mubr.bf16.gmra.mrb[0].mxu0 %v511
    %v931 = vpop.f32.mrb[0].mxu0
    %v932 = vadd.f32 0.0, %v931
    %v933 = vpop.f32.mrb[0].mxu0
    %v934 = vpop.f32.mrb[0].mxu0
    %v935 = vadd.f32 0.0, %v934
    %v936 = vpop.f32.mrb[0].mxu0
    %937 = vmatprep.mubr.bf16.mxu0 0
    %938 = vmatmul.mubr.bf16.gmra.mrb[0].mxu0 %v512
    %v939 = vpop.f32.mrb[0].mxu0
    %v940 = vadd.f32 0.0, %v939
    %v941 = vpop.f32.mrb[0].mxu0
    %v942 = vpop.f32.mrb[0].mxu0
    %v943 = vadd.f32 0.0, %v942
    %v944 = vpop.f32.mrb[0].mxu0
    %945 = vmatprep.mubr.bf16.mxu0 0
    %946 = vmatmul.mubr.bf16.gmra.mrb[0].mxu0 %v513
    %v947 = vpop.f32.mrb[0].mxu0
    %v948 = vadd.f32 0.0, %v947
    %v949 = vpop.f32.mrb[0].mxu0
    %v950 = vpop.f32.mrb[0].mxu0
    %v951 = vadd.f32 0.0, %v950
    %v952 = vpop.f32.mrb[0].mxu0
    %953 = vmatprep.mubr.bf16.mxu0 0
    %954 = vmatmul.mubr.bf16.gmra.mrb[0].mxu0 %v514
    %v955 = vpop.f32.mrb[0].mxu0
    %v956 = vadd.f32 0.0, %v955
    %v957 = vpop.f32.mrb[0].mxu0
    %v958 = vpop.f32.mrb[0].mxu0
    %v959 = vadd.f32 0.0, %v958
    %v960 = vpop.f32.mrb[0].mxu0
    %961 = vmatprep.mubr.bf16.mxu0 0
    %962 = vmatmul.mubr.bf16.gmra.mrb[0].mxu0 %v515
    %v963 = vpop.f32.mrb[0].mxu0
    %v964 = vadd.f32 0.0, %v963
    %v965 = vpop.f32.mrb[0].mxu0
    %v966 = vpop.f32.mrb[0].mxu0
    %v967 = vadd.f32 0.0, %v966
    %v968 = vpop.f32.mrb[0].mxu0
    %969 = vmatprep.mubr.bf16.mxu0 0
    %970 = vmatmul.mubr.bf16.gmra.mrb[0].mxu0 %v516
    %v971 = vpop.f32.mrb[0].mxu0
    %v972 = vadd.f32 0.0, %v971
    %v973 = vpop.f32.mrb[0].mxu0
    %v974 = vpop.f32.mrb[0].mxu0
    %v975 = vadd.f32 0.0, %v974
    %v976 = vpop.f32.mrb[0].mxu0
    %977 = vmatprep.mubr.bf16.mxu0 0
    %978 = vmatmul.mubr.bf16.gmra.mrb[0].mxu0 %v517
    %v979 = vpop.f32.mrb[0].mxu0
    %v980 = vadd.f32 0.0, %v979
    %v981 = vpop.f32.mrb[0].mxu0
    %v982 = vpop.f32.mrb[0].mxu0
    %v983 = vadd.f32 0.0, %v982
    %v984 = vpop.f32.mrb[0].mxu0
    %985 = vmatprep.mubr.bf16.mxu0 0
    %986 = vmatmul.mubr.bf16.gmra.mrb[0].mxu0 %v518
    %v987 = vpop.f32.mrb[0].mxu0
    %v988 = vadd.f32 0.0, %v987
    %v989 = vpop.f32.mrb[0].mxu0
    %v990 = vpop.f32.mrb[0].mxu0
    %v991 = vadd.f32 0.0, %v990
    %v992 = vpop.f32.mrb[0].mxu0
    %993 = vmatprep.mubr.bf16.mxu0 0
    %994 = vmatmul.mubr.bf16.gmra.mrb[0].mxu0 %v519
    %v995 = vpop.f32.mrb[0].mxu0
    %v996 = vadd.f32 0.0, %v995
    %v997 = vpop.f32.mrb[0].mxu0
    %v998 = vpop.f32.mrb[0].mxu0
    %v999 = vadd.f32 0.0, %v998
    %v1000 = vpop.f32.mrb[0].mxu0
    %1001 = vmatprep.mubr.bf16.mxu0 0
    %1002 = vmatmul.mubr.bf16.gmra.mrb[0].mxu0 %v520
    %v1003 = vpop.f32.mrb[0].mxu0
    %v1004 = vadd.f32 0.0, %v1003
    %v1005 = vpop.f32.mrb[0].mxu0
    %v1006 = vpop.f32.mrb[0].mxu0
    %v1007 = vadd.f32 0.0, %v1006
    %v1008 = vpop.f32.mrb[0].mxu0
    %1009 = vmatprep.mubr.bf16.mxu0 0
    %1010 = vmatmul.mubr.bf16.gmra.mrb[0].mxu0 %v521
    %v1011 = vpop.f32.mrb[0].mxu0
    %v1012 = vadd.f32 0.0, %v1011
    %v1013 = vpop.f32.mrb[0].mxu0
    %v1014 = vpop.f32.mrb[0].mxu0
    %v1015 = vadd.f32 0.0, %v1014
    %v1016 = vpop.f32.mrb[0].mxu0
    %1017 = vmatprep.mubr.bf16.mxu0 0
    %1018 = vmatmul.mubr.bf16.gmra.mrb[0].mxu0 %v522
    %v1019 = vpop.f32.mrb[0].mxu0
    %v1020 = vadd.f32 0.0, %v1019
    %v1021 = vpop.f32.mrb[0].mxu0
    %v1022 = vpop.f32.mrb[0].mxu0
    %v1023 = vadd.f32 0.0, %v1022
    %v1024 = vpop.f32.mrb[0].mxu0
    %1025 = vmatprep.mubr.bf16.mxu0 0
    %1026 = vmatmul.mubr.bf16.gmra.mrb[0].mxu0 %v523
    %v1027 = vpop.f32.mrb[0].mxu0
    %v1028 = vadd.f32 0.0, %v1027
    %v1029 = vpop.f32.mrb[0].mxu0
    %v1030 = vpop.f32.mrb[0].mxu0
    %v1031 = vadd.f32 0.0, %v1030
    %v1032 = vpop.f32.mrb[0].mxu0
    %1033 = vmatprep.mubr.bf16.mxu0 0
    %1034 = vmatmul.mubr.bf16.gmra.mrb[0].mxu0 %v524
    %v1035 = vpop.f32.mrb[0].mxu0
    %v1036 = vadd.f32 0.0, %v1035
    %v1037 = vpop.f32.mrb[0].mxu0
    %v1038 = vpop.f32.mrb[0].mxu0
    %v1039 = vadd.f32 0.0, %v1038
    %v1040 = vpop.f32.mrb[0].mxu0
    %1041 = vmatprep.mubr.bf16.mxu0 0
    %1042 = vmatmul.mubr.bf16.gmra.mrb[0].mxu0 %v525
    %v1043 = vpop.f32.mrb[0].mxu0
    %v1044 = vadd.f32 0.0, %v1043
    %v1045 = vpop.f32.mrb[0].mxu0
    %v1046 = vpop.f32.mrb[0].mxu0
    %v1047 = vadd.f32 0.0, %v1046
    %v1048 = vpop.f32.mrb[0].mxu0
    %1049 = vmatprep.mubr.bf16.mxu0 0
    %1050 = vmatmul.mubr.bf16.gmra.mrb[0].mxu0 %v526
    %v1051 = vpop.f32.mrb[0].mxu0
    %v1052 = vadd.f32 0.0, %v1051
    %v1053 = vpop.f32.mrb[0].mxu0
    %v1054 = vpop.f32.mrb[0].mxu0
    %v1055 = vadd.f32 0.0, %v1054
    %v1056 = vpop.f32.mrb[0].mxu0
    %1057 = vmatprep.mubr.bf16.mxu0 0
    %1058 = vmatmul.mubr.bf16.gmra.mrb[0].mxu0 %v527
    %v1059 = vpop.f32.mrb[0].mxu0
    %v1060 = vadd.f32 0.0, %v1059
    %v1061 = vpop.f32.mrb[0].mxu0
    %v1062 = vpop.f32.mrb[0].mxu0
    %v1063 = vadd.f32 0.0, %v1062
    %v1064 = vpop.f32.mrb[0].mxu0
    %1065 = vmatprep.mubr.bf16.mxu0 0
    %1066 = vmatmul.mubr.bf16.gmra.mrb[0].mxu0 %v528
    %v1067 = vpop.f32.mrb[0].mxu0
    %v1068 = vadd.f32 0.0, %v1067
    %v1069 = vpop.f32.mrb[0].mxu0
    %v1070 = vpop.f32.mrb[0].mxu0
    %v1071 = vadd.f32 0.0, %v1070
    %v1072 = vpop.f32.mrb[0].mxu0
    %1073 = vmatprep.mubr.bf16.mxu0 0
    %1074 = vmatmul.mubr.bf16.gmra.mrb[0].mxu0 %v529
    %v1075 = vpop.f32.mrb[0].mxu0
    %v1076 = vadd.f32 0.0, %v1075
    %v1077 = vpop.f32.mrb[0].mxu0
    %v1078 = vpop.f32.mrb[0].mxu0
    %v1079 = vadd.f32 0.0, %v1078
    %v1080 = vpop.f32.mrb[0].mxu0
    %1081 = vmatprep.mubr.bf16.mxu0 0
    %1082 = vmatmul.mubr.bf16.gmra.mrb[0].mxu0 %v530
    %v1083 = vpop.f32.mrb[0].mxu0
    %v1084 = vadd.f32 0.0, %v1083
    %v1085 = vpop.f32.mrb[0].mxu0
    %v1086 = vpop.f32.mrb[0].mxu0
    %v1087 = vadd.f32 0.0, %v1086
    %v1088 = vpop.f32.mrb[0].mxu0
    %1089 = vmatprep.mubr.bf16.mxu0 0
    %1090 = vmatmul.mubr.bf16.gmra.mrb[0].mxu0 %v531
    %v1091 = vpop.f32.mrb[0].mxu0
    %v1092 = vadd.f32 0.0, %v1091
    %v1093 = vpop.f32.mrb[0].mxu0
    %v1094 = vpop.f32.mrb[0].mxu0
    %v1095 = vadd.f32 0.0, %v1094
    %v1096 = vpop.f32.mrb[0].mxu0
    %1097 = vmatprep.mubr.bf16.mxu0 0
    %1098 = vmatmul.mubr.bf16.gmra.mrb[0].mxu0 %v532
    %v1099 = vpop.f32.mrb[0].mxu0
    %v1100 = vadd.f32 0.0, %v1099
    %v1101 = vpop.f32.mrb[0].mxu0
    %v1102 = vpop.f32.mrb[0].mxu0
    %v1103 = vadd.f32 0.0, %v1102
    %v1104 = vpop.f32.mrb[0].mxu0
    %1105 = vmatprep.mubr.bf16.mxu0 0
    %1106 = vmatmul.mubr.bf16.gmra.mrb[0].mxu0 %v533
    %v1107 = vpop.f32.mrb[0].mxu0
    %v1108 = vadd.f32 0.0, %v1107
    %v1109 = vpop.f32.mrb[0].mxu0
    %v1110 = vpop.f32.mrb[0].mxu0
    %v1111 = vadd.f32 0.0, %v1110
    %v1112 = vpop.f32.mrb[0].mxu0
    %1113 = vmatprep.mubr.bf16.mxu0 0
    %1114 = vmatmul.mubr.bf16.gmra.mrb[0].mxu0 %v534
    %v1115 = vpop.f32.mrb[0].mxu0
    %v1116 = vadd.f32 0.0, %v1115
    %v1117 = vpop.f32.mrb[0].mxu0
    %v1118 = vpop.f32.mrb[0].mxu0
    %v1119 = vadd.f32 0.0, %v1118
    %v1120 = vpop.f32.mrb[0].mxu0
    %1121 = vmatprep.mubr.bf16.mxu0 0
    %1122 = vmatmul.mubr.bf16.gmra.mrb[0].mxu0 %v535
    %v1123 = vpop.f32.mrb[0].mxu0
    %v1124 = vadd.f32 0.0, %v1123
    %v1125 = vpop.f32.mrb[0].mxu0
    %v1126 = vpop.f32.mrb[0].mxu0
    %v1127 = vadd.f32 0.0, %v1126
    %v1128 = vpop.f32.mrb[0].mxu0
    %1129 = vmatprep.mubr.bf16.mxu0 0
    %1130 = vmatmul.mubr.bf16.gmra.mrb[0].mxu0 %v536
    %v1131 = vpop.f32.mrb[0].mxu0
    %v1132 = vadd.f32 0.0, %v1131
    %v1133 = vpop.f32.mrb[0].mxu0
    %v1134 = vpop.f32.mrb[0].mxu0
    %v1135 = vadd.f32 0.0, %v1134
    %v1136 = vpop.f32.mrb[0].mxu0
    %1137 = vmatprep.mubr.bf16.mxu0 0
    %1138 = vmatmul.mubr.bf16.gmra.mrb[0].mxu0 %v537
    %v1139 = vpop.f32.mrb[0].mxu0
    %v1140 = vadd.f32 0.0, %v1139
    %v1141 = vpop.f32.mrb[0].mxu0
    %v1142 = vpop.f32.mrb[0].mxu0
    %v1143 = vadd.f32 0.0, %v1142
    %v1144 = vpop.f32.mrb[0].mxu0
    %1145 = vmatprep.mubr.bf16.mxu0 0
    %1146 = vmatmul.mubr.bf16.gmra.mrb[0].mxu0 %v538
    %v1147 = vpop.f32.mrb[0].mxu0
    %v1148 = vadd.f32 0.0, %v1147
    %v1149 = vpop.f32.mrb[0].mxu0
    %v1150 = vpop.f32.mrb[0].mxu0
    %v1151 = vadd.f32 0.0, %v1150
    %v1152 = vpop.f32.mrb[0].mxu0
    %1153 = vmatprep.mubr.bf16.mxu0 0
    %1154 = vmatmul.mubr.bf16.gmra.mrb[0].mxu0 %v539
    %v1155 = vpop.f32.mrb[0].mxu0
    %v1156 = vadd.f32 0.0, %v1155
    %v1157 = vpop.f32.mrb[0].mxu0
    %v1158 = vpop.f32.mrb[0].mxu0
    %v1159 = vadd.f32 0.0, %v1158
    %v1160 = vpop.f32.mrb[0].mxu0
    %1161 = vmatprep.mubr.bf16.mxu0 0
    %1162 = vmatmul.mubr.bf16.gmra.mrb[0].mxu0 %v540
    %v1163 = vpop.f32.mrb[0].mxu0
    %v1164 = vadd.f32 0.0, %v1163
    %v1165 = vpop.f32.mrb[0].mxu0
    %v1166 = vpop.f32.mrb[0].mxu0
    %v1167 = vadd.f32 0.0, %v1166
    %v1168 = vpop.f32.mrb[0].mxu0
    %1169 = vmatprep.mubr.bf16.mxu0 0
    %1170 = vmatmul.mubr.bf16.gmra.mrb[0].mxu0 %v541
    %v1171 = vpop.f32.mrb[0].mxu0
    %v1172 = vadd.f32 0.0, %v1171
    %v1173 = vpop.f32.mrb[0].mxu0
    %v1174 = vpop.f32.mrb[0].mxu0
    %v1175 = vadd.f32 0.0, %v1174
    %v1176 = vpop.f32.mrb[0].mxu0
    %1177 = vmatprep.mubr.bf16.mxu0 0
    %1178 = vmatmul.mubr.bf16.gmra.mrb[0].mxu0 %v542
    %v1179 = vpop.f32.mrb[0].mxu0
    %v1180 = vadd.f32 0.0, %v1179
    %v1181 = vpop.f32.mrb[0].mxu0
    %v1182 = vpop.f32.mrb[0].mxu0
    %v1183 = vadd.f32 0.0, %v1182
    %v1184 = vpop.f32.mrb[0].mxu0
    %1185 = vmatprep.mubr.bf16.mxu0 0
    %1186 = vmatmul.mubr.bf16.gmra.mrb[0].mxu0 %v543
    %v1187 = vpop.f32.mrb[0].mxu0
    %v1188 = vadd.f32 0.0, %v1187
    %v1189 = vpop.f32.mrb[0].mxu0
    %v1190 = vpop.f32.mrb[0].mxu0
    %v1191 = vadd.f32 0.0, %v1190
    %v1192 = vpop.f32.mrb[0].mxu0
    %1193 = vmatprep.mubr.bf16.mxu0 0
    %1194 = vmatmul.mubr.bf16.gmra.mrb[0].mxu0 %v544
    %v1195 = vpop.f32.mrb[0].mxu0
    %v1196 = vadd.f32 0.0, %v1195
    %v1197 = vpop.f32.mrb[0].mxu0
    %v1198 = vpop.f32.mrb[0].mxu0
    %v1199 = vadd.f32 0.0, %v1198
    %v1200 = vpop.f32.mrb[0].mxu0
    %1201 = vdwg.mxu0
    %v1202 = vld [vmem:[#allocation5] sm:$0xff]
    %v1203 = vpack.c.bf16 %v1202, %v1202
    %v1204 = vld [vmem:[#allocation8] sm:$0xf]
    %v1205 = vld [vmem:[#allocation8 + $0x4] sm:$0xf]
    %v1206 = vld [vmem:[#allocation8 + $0x8] sm:$0xf]
    %v1207 = vld [vmem:[#allocation8 + $0xc] sm:$0xf]
    %v1208 = vld [vmem:[#allocation8 + $0x10] sm:$0xf]
    %v1209 = vld [vmem:[#allocation8 + $0x14] sm:$0xf]
    %v1210 = vld [vmem:[#allocation8 + $0x18] sm:$0xf]
    %v1211 = vld [vmem:[#allocation8 + $0x1c] sm:$0xf]
    %v1212 = vld [vmem:[#allocation8 + $0x20] sm:$0xf]
    %v1213 = vld [vmem:[#allocation8 + $0x24] sm:$0xf]
    %v1214 = vld [vmem:[#allocation8 + $0x28] sm:$0xf]
    %v1215 = vld [vmem:[#allocation8 + $0x2c] sm:$0xf]
    %v1216 = vld [vmem:[#allocation8 + $0x30] sm:$0xf]
    %v1217 = vld [vmem:[#allocation8 + $0x34] sm:$0xf]
    %v1218 = vld [vmem:[#allocation8 + $0x38] sm:$0xf]
    %v1219 = vld [vmem:[#allocation8 + $0x3c] sm:$0xf]
    %v1220 = vld [vmem:[%s4] sm:$0x1]
    %v1222 = vlaneseq
    %v1223 = vshrl.u32 %v1222, 7
    %v1224 = vsub.s32 0, %v1223
    %v1225 = vrot.slane %v1220, %v1224
    %v1243 = vunpack.c.l.b16 %v1204
    %v1244 = vunpack.c.l.b16 %v1205
    %v1245 = vunpack.c.l.b16 %v1206
    %v1246 = vunpack.c.l.b16 %v1207
    %v1247 = vunpack.c.l.b16 %v1208
    %v1248 = vunpack.c.l.b16 %v1209
    %v1249 = vunpack.c.l.b16 %v1210
    %v1250 = vunpack.c.l.b16 %v1211
    %v1251 = vunpack.c.l.b16 %v1212
    %v1252 = vunpack.c.l.b16 %v1213
    %v1253 = vunpack.c.l.b16 %v1214
    %v1254 = vunpack.c.l.b16 %v1215
    %v1255 = vunpack.c.l.b16 %v1216
    %v1256 = vunpack.c.l.b16 %v1217
    %v1257 = vunpack.c.l.b16 %v1218
    %v1258 = vunpack.c.l.b16 %v1219
    %v1259 = vpack.c.b16 %v1244, %v1243
    %v1260 = vpack.c.b16 %v1246, %v1245
    %v1261 = vpack.c.b16 %v1248, %v1247
    %v1262 = vpack.c.b16 %v1250, %v1249
    %v1263 = vpack.c.b16 %v1252, %v1251
    %v1264 = vpack.c.b16 %v1254, %v1253
    %v1265 = vpack.c.b16 %v1256, %v1255
    %v1266 = vpack.c.b16 %v1258, %v1257
    %1275 = vmatprep.subr.bf16.mxu0 0
    %1276 = vmatpush1.bf16.msra.mxu0 %v1259
    %1277 = vmatprep.subr.bf16.mxu0 0
    %1278 = vmatpush1.bf16.msra.mxu0 %v1260
    %1279 = vmatprep.subr.bf16.mxu0 0
    %1280 = vmatpush1.bf16.msra.mxu0 %v1261
    %1281 = vmatprep.subr.bf16.mxu0 0
    %1282 = vmatpush1.bf16.msra.mxu0 %v1262
    %1283 = vmatprep.subr.bf16.mxu0 0
    %1284 = vmatpush1.bf16.msra.mxu0 %v1263
    %1285 = vmatprep.subr.bf16.mxu0 0
    %1286 = vmatpush1.bf16.msra.mxu0 %v1264
    %1287 = vmatprep.subr.bf16.mxu0 0
    %1288 = vmatpush1.bf16.msra.mxu0 %v1265
    %1289 = vmatprep.subr.bf16.mxu0 0
    %1290 = vmatpush1.bf16.msra.mxu0 %v1266
    %1291 = vmatprep.subr.bf16.mxu0 0
    %1292 = vmatpush1.bf16.msra.mxu0 0
    %1293 = vmatprep.subr.bf16.mxu0 0
    %1294 = vmatpush1.bf16.msra.mxu0 0
    %1295 = vmatprep.subr.bf16.mxu0 0
    %1296 = vmatpush1.bf16.msra.mxu0 0
    %1297 = vmatprep.subr.bf16.mxu0 0
    %1298 = vmatpush1.bf16.msra.mxu0 0
    %1299 = vmatprep.subr.bf16.mxu0 0
    %1300 = vmatpush1.bf16.msra.mxu0 0
    %1301 = vmatprep.subr.bf16.mxu0 0
    %1302 = vmatpush1.bf16.msra.mxu0 0
    %1303 = vmatprep.subr.bf16.mxu0 0
    %1304 = vmatpush1.bf16.msra.mxu0 0
    %1305 = vmatprep.subr.bf16.mxu0 0
    %1306 = vmatpush1.bf16.msra.mxu0 0
    %1307 = vmatprep.mubr.bf16.mxu0 0
    %1308 = vmatmul.mubr.bf16.gmra.mrb[0].mxu0 %v1203
    %v1309 = vpop.f32.mrb[0].mxu0
    %v1310 = vadd.f32 %v1225, %v1309
    %v1311 = vpop.f32.mrb[0].mxu0
    %v1312 = vpop.f32.mrb[0].mxu0
    %v1313 = vpop.f32.mrb[0].mxu0
    %1314 = vdwg.mxu0
    %v1316 = vcombine.high %v1310, %v1310
    %v1318 = vunpack.c.l.s4 1966171168
    %v1319 = vunpack.c.0.s8 %v1318
    %v1320 = vlaneseq
    %v1321 = vshrl.u32 %v1320, 7
    %v1322 = vsub.s32 %v1319, %v1321
    %v1323 = vrot.slane %v1310, %v1322
    %v1325 = vunpack.c.l.s4 1966171168
    %v1326 = vunpack.c.0.s8 %v1325
    %v1327 = vlaneseq
    %v1328 = vshrl.u32 %v1327, 7
    %v1329 = vsub.s32 %v1326, %v1328
    %v1330 = vrot.slane %v1316, %v1329
    %v1331 = vcombine.high %v1323, %v1323
    %v1332 = vcombine.high %v1330, %v1330
    %v1334 = vunpack.c.l.s4 1966171168
    %v1335 = vunpack.c.0.s8 %v1334
    %v1336 = vlaneseq
    %v1337 = vshrl.u32 %v1336, 7
    %v1338 = vsub.s32 %v1335, %v1337
    %v1339 = vrot.slane %v1323, %v1338
    %v1341 = vunpack.c.l.s4 1966171168
    %v1342 = vunpack.c.0.s8 %v1341
    %v1343 = vlaneseq
    %v1344 = vshrl.u32 %v1343, 7
    %v1345 = vsub.s32 %v1342, %v1344
    %v1346 = vrot.slane %v1330, %v1345
    %v1348 = vunpack.c.l.s4 1966171168
    %v1349 = vunpack.c.0.s8 %v1348
    %v1350 = vlaneseq
    %v1351 = vshrl.u32 %v1350, 7
    %v1352 = vsub.s32 %v1349, %v1351
    %v1353 = vrot.slane %v1331, %v1352
    %v1355 = vunpack.c.l.s4 1966171168
    %v1356 = vunpack.c.0.s8 %v1355
    %v1357 = vlaneseq
    %v1358 = vshrl.u32 %v1357, 7
    %v1359 = vsub.s32 %v1356, %v1358
    %v1360 = vrot.slane %v1332, %v1359
    %v1361 = vcombine.high %v1339, %v1339
    %v1362 = vcombine.high %v1346, %v1346
    %v1363 = vcombine.high %v1353, %v1353
    %v1364 = vcombine.high %v1360, %v1360
    %v1365 = vlaneseq
    %v1366 = vshrl.u32 %v1365, 7
    %v1367 = vsub.s32 0, %v1366
    %v1368 = vrot.slane %v1339, %v1367
    %v1369 = vlaneseq
    %v1370 = vshrl.u32 %v1369, 7
    %v1371 = vsub.s32 0, %v1370
    %v1372 = vrot.slane %v1353, %v1371
    %v1373 = vlaneseq
    %v1374 = vshrl.u32 %v1373, 7
    %v1375 = vsub.s32 0, %v1374
    %v1376 = vrot.slane %v1361, %v1375
    %v1377 = vlaneseq
    %v1378 = vshrl.u32 %v1377, 7
    %v1379 = vsub.s32 0, %v1378
    %v1380 = vrot.slane %v1363, %v1379
    %v1381 = vlaneseq
    %v1382 = vshrl.u32 %v1381, 7
    %v1383 = vsub.s32 0, %v1382
    %v1384 = vrot.slane %v1346, %v1383
    %v1385 = vlaneseq
    %v1386 = vshrl.u32 %v1385, 7
    %v1387 = vsub.s32 0, %v1386
    %v1388 = vrot.slane %v1360, %v1387
    %v1389 = vlaneseq
    %v1390 = vshrl.u32 %v1389, 7
    %v1391 = vsub.s32 0, %v1390
    %v1392 = vrot.slane %v1362, %v1391
    %v1393 = vlaneseq
    %v1394 = vshrl.u32 %v1393, 7
    %v1395 = vsub.s32 0, %v1394
    %v1396 = vrot.slane %v1364, %v1395
    %v1405 = vadd.f32 %v692, %v1368
    %v1406 = vadd.f32 %v695, %v1368
    %v1407 = vadd.f32 %v700, %v1368
    %v1408 = vadd.f32 %v703, %v1368
    %v1409 = vadd.f32 %v708, %v1368
    %v1410 = vadd.f32 %v711, %v1368
    %v1411 = vadd.f32 %v716, %v1368
    %v1412 = vadd.f32 %v719, %v1368
    %v1413 = vadd.f32 %v724, %v1368
    %v1414 = vadd.f32 %v727, %v1368
    %v1415 = vadd.f32 %v732, %v1368
    %v1416 = vadd.f32 %v735, %v1368
    %v1417 = vadd.f32 %v740, %v1368
    %v1418 = vadd.f32 %v743, %v1368
    %v1419 = vadd.f32 %v748, %v1368
    %v1420 = vadd.f32 %v751, %v1368
    %v1421 = vadd.f32 %v756, %v1372
    %v1422 = vadd.f32 %v759, %v1372
    %v1423 = vadd.f32 %v764, %v1372
    %v1424 = vadd.f32 %v767, %v1372
    %v1425 = vadd.f32 %v772, %v1372
    %v1426 = vadd.f32 %v775, %v1372
    %v1427 = vadd.f32 %v780, %v1372
    %v1428 = vadd.f32 %v783, %v1372
    %v1429 = vadd.f32 %v788, %v1372
    %v1430 = vadd.f32 %v791, %v1372
    %v1431 = vadd.f32 %v796, %v1372
    %v1432 = vadd.f32 %v799, %v1372
    %v1433 = vadd.f32 %v804, %v1372
    %v1434 = vadd.f32 %v807, %v1372
    %v1435 = vadd.f32 %v812, %v1372
    %v1436 = vadd.f32 %v815, %v1372
    %v1437 = vadd.f32 %v820, %v1376
    %v1438 = vadd.f32 %v823, %v1376
    %v1439 = vadd.f32 %v828, %v1376
    %v1440 = vadd.f32 %v831, %v1376
    %v1441 = vadd.f32 %v836, %v1376
    %v1442 = vadd.f32 %v839, %v1376
    %v1443 = vadd.f32 %v844, %v1376
    %v1444 = vadd.f32 %v847, %v1376
    %v1445 = vadd.f32 %v852, %v1376
    %v1446 = vadd.f32 %v855, %v1376
    %v1447 = vadd.f32 %v860, %v1376
    %v1448 = vadd.f32 %v863, %v1376
    %v1449 = vadd.f32 %v868, %v1376
    %v1450 = vadd.f32 %v871, %v1376
    %v1451 = vadd.f32 %v876, %v1376
    %v1452 = vadd.f32 %v879, %v1376
    %v1453 = vadd.f32 %v884, %v1380
    %v1454 = vadd.f32 %v887, %v1380
    %v1455 = vadd.f32 %v892, %v1380
    %v1456 = vadd.f32 %v895, %v1380
    %v1457 = vadd.f32 %v900, %v1380
    %v1458 = vadd.f32 %v903, %v1380
    %v1459 = vadd.f32 %v908, %v1380
    %v1460 = vadd.f32 %v911, %v1380
    %v1461 = vadd.f32 %v916, %v1380
    %v1462 = vadd.f32 %v919, %v1380
    %v1463 = vadd.f32 %v924, %v1380
    %v1464 = vadd.f32 %v927, %v1380
    %v1465 = vadd.f32 %v932, %v1380
    %v1466 = vadd.f32 %v935, %v1380
    %v1467 = vadd.f32 %v940, %v1380
    %v1468 = vadd.f32 %v943, %v1380
    %v1469 = vadd.f32 %v948, %v1384
    %v1470 = vadd.f32 %v951, %v1384
    %v1471 = vadd.f32 %v956, %v1384
    %v1472 = vadd.f32 %v959, %v1384
    %v1473 = vadd.f32 %v964, %v1384
    %v1474 = vadd.f32 %v967, %v1384
    %v1475 = vadd.f32 %v972, %v1384
    %v1476 = vadd.f32 %v975, %v1384
    %v1477 = vadd.f32 %v980, %v1384
    %v1478 = vadd.f32 %v983, %v1384
    %v1479 = vadd.f32 %v988, %v1384
    %v1480 = vadd.f32 %v991, %v1384
    %v1481 = vadd.f32 %v996, %v1384
    %v1482 = vadd.f32 %v999, %v1384
    %v1483 = vadd.f32 %v1004, %v1384
    %v1484 = vadd.f32 %v1007, %v1384
    %v1485 = vadd.f32 %v1012, %v1388
    %v1486 = vadd.f32 %v1015, %v1388
    %v1487 = vadd.f32 %v1020, %v1388
    %v1488 = vadd.f32 %v1023, %v1388
    %v1489 = vadd.f32 %v1028, %v1388
    %v1490 = vadd.f32 %v1031, %v1388
    %v1491 = vadd.f32 %v1036, %v1388
    %v1492 = vadd.f32 %v1039, %v1388
    %v1493 = vadd.f32 %v1044, %v1388
    %v1494 = vadd.f32 %v1047, %v1388
    %v1495 = vadd.f32 %v1052, %v1388
    %v1496 = vadd.f32 %v1055, %v1388
    %v1497 = vadd.f32 %v1060, %v1388
    %v1498 = vadd.f32 %v1063, %v1388
    %v1499 = vadd.f32 %v1068, %v1388
    %v1500 = vadd.f32 %v1071, %v1388
    %v1501 = vadd.f32 %v1076, %v1392
    %v1502 = vadd.f32 %v1079, %v1392
    %v1503 = vadd.f32 %v1084, %v1392
    %v1504 = vadd.f32 %v1087, %v1392
    %v1505 = vadd.f32 %v1092, %v1392
    %v1506 = vadd.f32 %v1095, %v1392
    %v1507 = vadd.f32 %v1100, %v1392
    %v1508 = vadd.f32 %v1103, %v1392
    %v1509 = vadd.f32 %v1108, %v1392
    %v1510 = vadd.f32 %v1111, %v1392
    %v1511 = vadd.f32 %v1116, %v1392
    %v1512 = vadd.f32 %v1119, %v1392
    %v1513 = vadd.f32 %v1124, %v1392
    %v1514 = vadd.f32 %v1127, %v1392
    %v1515 = vadd.f32 %v1132, %v1392
    %v1516 = vadd.f32 %v1135, %v1392
    %v1517 = vadd.f32 %v1140, %v1396
    %v1518 = vadd.f32 %v1143, %v1396
    %v1519 = vadd.f32 %v1148, %v1396
    %v1520 = vadd.f32 %v1151, %v1396
    %v1521 = vadd.f32 %v1156, %v1396
    %v1522 = vadd.f32 %v1159, %v1396
    %v1523 = vadd.f32 %v1164, %v1396
    %v1524 = vadd.f32 %v1167, %v1396
    %v1525 = vadd.f32 %v1172, %v1396
    %v1526 = vadd.f32 %v1175, %v1396
    %v1527 = vadd.f32 %v1180, %v1396
    %v1528 = vadd.f32 %v1183, %v1396
    %v1529 = vadd.f32 %v1188, %v1396
    %v1530 = vadd.f32 %v1191, %v1396
    %v1531 = vadd.f32 %v1196, %v1396
    %v1532 = vadd.f32 %v1199, %v1396
    %v1533 = vmax.f32 %v1405, 0.0
    %v1534 = vmax.f32 %v1406, 0.0
    %v1535 = vmax.f32 %v1407, 0.0
    %v1536 = vmax.f32 %v1408, 0.0
    %v1537 = vmax.f32 %v1409, 0.0
    %v1538 = vmax.f32 %v1410, 0.0
    %v1539 = vmax.f32 %v1411, 0.0
    %v1540 = vmax.f32 %v1412, 0.0
    %v1541 = vmax.f32 %v1413, 0.0
    %v1542 = vmax.f32 %v1414, 0.0
    %v1543 = vmax.f32 %v1415, 0.0
    %v1544 = vmax.f32 %v1416, 0.0
    %v1545 = vmax.f32 %v1417, 0.0
    %v1546 = vmax.f32 %v1418, 0.0
    %v1547 = vmax.f32 %v1419, 0.0
    %v1548 = vmax.f32 %v1420, 0.0
    %v1549 = vmax.f32 %v1421, 0.0
    %v1550 = vmax.f32 %v1422, 0.0
    %v1551 = vmax.f32 %v1423, 0.0
    %v1552 = vmax.f32 %v1424, 0.0
    %v1553 = vmax.f32 %v1425, 0.0
    %v1554 = vmax.f32 %v1426, 0.0
    %v1555 = vmax.f32 %v1427, 0.0
    %v1556 = vmax.f32 %v1428, 0.0
    %v1557 = vmax.f32 %v1429, 0.0
    %v1558 = vmax.f32 %v1430, 0.0
    %v1559 = vmax.f32 %v1431, 0.0
    %v1560 = vmax.f32 %v1432, 0.0
    %v1561 = vmax.f32 %v1433, 0.0
    %v1562 = vmax.f32 %v1434, 0.0
    %v1563 = vmax.f32 %v1435, 0.0
    %v1564 = vmax.f32 %v1436, 0.0
    %v1565 = vmax.f32 %v1437, 0.0
    %v1566 = vmax.f32 %v1438, 0.0
    %v1567 = vmax.f32 %v1439, 0.0
    %v1568 = vmax.f32 %v1440, 0.0
    %v1569 = vmax.f32 %v1441, 0.0
    %v1570 = vmax.f32 %v1442, 0.0
    %v1571 = vmax.f32 %v1443, 0.0
    %v1572 = vmax.f32 %v1444, 0.0
    %v1573 = vmax.f32 %v1445, 0.0
    %v1574 = vmax.f32 %v1446, 0.0
    %v1575 = vmax.f32 %v1447, 0.0
    %v1576 = vmax.f32 %v1448, 0.0
    %v1577 = vmax.f32 %v1449, 0.0
    %v1578 = vmax.f32 %v1450, 0.0
    %v1579 = vmax.f32 %v1451, 0.0
    %v1580 = vmax.f32 %v1452, 0.0
    %v1581 = vmax.f32 %v1453, 0.0
    %v1582 = vmax.f32 %v1454, 0.0
    %v1583 = vmax.f32 %v1455, 0.0
    %v1584 = vmax.f32 %v1456, 0.0
    %v1585 = vmax.f32 %v1457, 0.0
    %v1586 = vmax.f32 %v1458, 0.0
    %v1587 = vmax.f32 %v1459, 0.0
    %v1588 = vmax.f32 %v1460, 0.0
    %v1589 = vmax.f32 %v1461, 0.0
    %v1590 = vmax.f32 %v1462, 0.0
    %v1591 = vmax.f32 %v1463, 0.0
    %v1592 = vmax.f32 %v1464, 0.0
    %v1593 = vmax.f32 %v1465, 0.0
    %v1594 = vmax.f32 %v1466, 0.0
    %v1595 = vmax.f32 %v1467, 0.0
    %v1596 = vmax.f32 %v1468, 0.0
    %v1597 = vmax.f32 %v1469, 0.0
    %v1598 = vmax.f32 %v1470, 0.0
    %v1599 = vmax.f32 %v1471, 0.0
    %v1600 = vmax.f32 %v1472, 0.0
    %v1601 = vmax.f32 %v1473, 0.0
    %v1602 = vmax.f32 %v1474, 0.0
    %v1603 = vmax.f32 %v1475, 0.0
    %v1604 = vmax.f32 %v1476, 0.0
    %v1605 = vmax.f32 %v1477, 0.0
    %v1606 = vmax.f32 %v1478, 0.0
    %v1607 = vmax.f32 %v1479, 0.0
    %v1608 = vmax.f32 %v1480, 0.0
    %v1609 = vmax.f32 %v1481, 0.0
    %v1610 = vmax.f32 %v1482, 0.0
    %v1611 = vmax.f32 %v1483, 0.0
    %v1612 = vmax.f32 %v1484, 0.0
    %v1613 = vmax.f32 %v1485, 0.0
    %v1614 = vmax.f32 %v1486, 0.0
    %v1615 = vmax.f32 %v1487, 0.0
    %v1616 = vmax.f32 %v1488, 0.0
    %v1617 = vmax.f32 %v1489, 0.0
    %v1618 = vmax.f32 %v1490, 0.0
    %v1619 = vmax.f32 %v1491, 0.0
    %v1620 = vmax.f32 %v1492, 0.0
    %v1621 = vmax.f32 %v1493, 0.0
    %v1622 = vmax.f32 %v1494, 0.0
    %v1623 = vmax.f32 %v1495, 0.0
    %v1624 = vmax.f32 %v1496, 0.0
    %v1625 = vmax.f32 %v1497, 0.0
    %v1626 = vmax.f32 %v1498, 0.0
    %v1627 = vmax.f32 %v1499, 0.0
    %v1628 = vmax.f32 %v1500, 0.0
    %v1629 = vmax.f32 %v1501, 0.0
    %v1630 = vmax.f32 %v1502, 0.0
    %v1631 = vmax.f32 %v1503, 0.0
    %v1632 = vmax.f32 %v1504, 0.0
    %v1633 = vmax.f32 %v1505, 0.0
    %v1634 = vmax.f32 %v1506, 0.0
    %v1635 = vmax.f32 %v1507, 0.0
    %v1636 = vmax.f32 %v1508, 0.0
    %v1637 = vmax.f32 %v1509, 0.0
    %v1638 = vmax.f32 %v1510, 0.0
    %v1639 = vmax.f32 %v1511, 0.0
    %v1640 = vmax.f32 %v1512, 0.0
    %v1641 = vmax.f32 %v1513, 0.0
    %v1642 = vmax.f32 %v1514, 0.0
    %v1643 = vmax.f32 %v1515, 0.0
    %v1644 = vmax.f32 %v1516, 0.0
    %v1645 = vmax.f32 %v1517, 0.0
    %v1646 = vmax.f32 %v1518, 0.0
    %v1647 = vmax.f32 %v1519, 0.0
    %v1648 = vmax.f32 %v1520, 0.0
    %v1649 = vmax.f32 %v1521, 0.0
    %v1650 = vmax.f32 %v1522, 0.0
    %v1651 = vmax.f32 %v1523, 0.0
    %v1652 = vmax.f32 %v1524, 0.0
    %v1653 = vmax.f32 %v1525, 0.0
    %v1654 = vmax.f32 %v1526, 0.0
    %v1655 = vmax.f32 %v1527, 0.0
    %v1656 = vmax.f32 %v1528, 0.0
    %v1657 = vmax.f32 %v1529, 0.0
    %v1658 = vmax.f32 %v1530, 0.0
    %v1659 = vmax.f32 %v1531, 0.0
    %v1660 = vmax.f32 %v1532, 0.0
    %v1661 = vld [vmem:[%s5] sm:$0x1]
    %v1663 = vlaneseq
    %v1664 = vshrl.u32 %v1663, 7
    %v1665 = vsub.s32 0, %v1664
    %v1666 = vrot.slane %v1661, %v1665
    %v1668 = vmul.f32 %v1533, %v1666
    %v1669 = vmul.f32 %v1534, %v1666
    %v1670 = vmul.f32 %v1535, %v1666
    %v1671 = vmul.f32 %v1536, %v1666
    %v1672 = vmul.f32 %v1537, %v1666
    %v1673 = vmul.f32 %v1538, %v1666
    %v1674 = vmul.f32 %v1539, %v1666
    %v1675 = vmul.f32 %v1540, %v1666
    %v1676 = vmul.f32 %v1541, %v1666
    %v1677 = vmul.f32 %v1542, %v1666
    %v1678 = vmul.f32 %v1543, %v1666
    %v1679 = vmul.f32 %v1544, %v1666
    %v1680 = vmul.f32 %v1545, %v1666
    %v1681 = vmul.f32 %v1546, %v1666
    %v1682 = vmul.f32 %v1547, %v1666
    %v1683 = vmul.f32 %v1548, %v1666
    %v1684 = vmul.f32 %v1549, %v1666
    %v1685 = vmul.f32 %v1550, %v1666
    %v1686 = vmul.f32 %v1551, %v1666
    %v1687 = vmul.f32 %v1552, %v1666
    %v1688 = vmul.f32 %v1553, %v1666
    %v1689 = vmul.f32 %v1554, %v1666
    %v1690 = vmul.f32 %v1555, %v1666
    %v1691 = vmul.f32 %v1556, %v1666
    %v1692 = vmul.f32 %v1557, %v1666
    %v1693 = vmul.f32 %v1558, %v1666
    %v1694 = vmul.f32 %v1559, %v1666
    %v1695 = vmul.f32 %v1560, %v1666
    %v1696 = vmul.f32 %v1561, %v1666
    %v1697 = vmul.f32 %v1562, %v1666
    %v1698 = vmul.f32 %v1563, %v1666
    %v1699 = vmul.f32 %v1564, %v1666
    %v1700 = vmul.f32 %v1565, %v1666
    %v1701 = vmul.f32 %v1566, %v1666
    %v1702 = vmul.f32 %v1567, %v1666
    %v1703 = vmul.f32 %v1568, %v1666
    %v1704 = vmul.f32 %v1569, %v1666
    %v1705 = vmul.f32 %v1570, %v1666
    %v1706 = vmul.f32 %v1571, %v1666
    %v1707 = vmul.f32 %v1572, %v1666
    %v1708 = vmul.f32 %v1573, %v1666
    %v1709 = vmul.f32 %v1574, %v1666
    %v1710 = vmul.f32 %v1575, %v1666
    %v1711 = vmul.f32 %v1576, %v1666
    %v1712 = vmul.f32 %v1577, %v1666
    %v1713 = vmul.f32 %v1578, %v1666
    %v1714 = vmul.f32 %v1579, %v1666
    %v1715 = vmul.f32 %v1580, %v1666
    %v1716 = vmul.f32 %v1581, %v1666
    %v1717 = vmul.f32 %v1582, %v1666
    %v1718 = vmul.f32 %v1583, %v1666
    %v1719 = vmul.f32 %v1584, %v1666
    %v1720 = vmul.f32 %v1585, %v1666
    %v1721 = vmul.f32 %v1586, %v1666
    %v1722 = vmul.f32 %v1587, %v1666
    %v1723 = vmul.f32 %v1588, %v1666
    %v1724 = vmul.f32 %v1589, %v1666
    %v1725 = vmul.f32 %v1590, %v1666
    %v1726 = vmul.f32 %v1591, %v1666
    %v1727 = vmul.f32 %v1592, %v1666
    %v1728 = vmul.f32 %v1593, %v1666
    %v1729 = vmul.f32 %v1594, %v1666
    %v1730 = vmul.f32 %v1595, %v1666
    %v1731 = vmul.f32 %v1596, %v1666
    %v1732 = vmul.f32 %v1597, %v1666
    %v1733 = vmul.f32 %v1598, %v1666
    %v1734 = vmul.f32 %v1599, %v1666
    %v1735 = vmul.f32 %v1600, %v1666
    %v1736 = vmul.f32 %v1601, %v1666
    %v1737 = vmul.f32 %v1602, %v1666
    %v1738 = vmul.f32 %v1603, %v1666
    %v1739 = vmul.f32 %v1604, %v1666
    %v1740 = vmul.f32 %v1605, %v1666
    %v1741 = vmul.f32 %v1606, %v1666
    %v1742 = vmul.f32 %v1607, %v1666
    %v1743 = vmul.f32 %v1608, %v1666
    %v1744 = vmul.f32 %v1609, %v1666
    %v1745 = vmul.f32 %v1610, %v1666
    %v1746 = vmul.f32 %v1611, %v1666
    %v1747 = vmul.f32 %v1612, %v1666
    %v1748 = vmul.f32 %v1613, %v1666
    %v1749 = vmul.f32 %v1614, %v1666
    %v1750 = vmul.f32 %v1615, %v1666
    %v1751 = vmul.f32 %v1616, %v1666
    %v1752 = vmul.f32 %v1617, %v1666
    %v1753 = vmul.f32 %v1618, %v1666
    %v1754 = vmul.f32 %v1619, %v1666
    %v1755 = vmul.f32 %v1620, %v1666
    %v1756 = vmul.f32 %v1621, %v1666
    %v1757 = vmul.f32 %v1622, %v1666
    %v1758 = vmul.f32 %v1623, %v1666
    %v1759 = vmul.f32 %v1624, %v1666
    %v1760 = vmul.f32 %v1625, %v1666
    %v1761 = vmul.f32 %v1626, %v1666
    %v1762 = vmul.f32 %v1627, %v1666
    %v1763 = vmul.f32 %v1628, %v1666
    %v1764 = vmul.f32 %v1629, %v1666
    %v1765 = vmul.f32 %v1630, %v1666
    %v1766 = vmul.f32 %v1631, %v1666
    %v1767 = vmul.f32 %v1632, %v1666
    %v1768 = vmul.f32 %v1633, %v1666
    %v1769 = vmul.f32 %v1634, %v1666
    %v1770 = vmul.f32 %v1635, %v1666
    %v1771 = vmul.f32 %v1636, %v1666
    %v1772 = vmul.f32 %v1637, %v1666
    %v1773 = vmul.f32 %v1638, %v1666
    %v1774 = vmul.f32 %v1639, %v1666
    %v1775 = vmul.f32 %v1640, %v1666
    %v1776 = vmul.f32 %v1641, %v1666
    %v1777 = vmul.f32 %v1642, %v1666
    %v1778 = vmul.f32 %v1643, %v1666
    %v1779 = vmul.f32 %v1644, %v1666
    %v1780 = vmul.f32 %v1645, %v1666
    %v1781 = vmul.f32 %v1646, %v1666
    %v1782 = vmul.f32 %v1647, %v1666
    %v1783 = vmul.f32 %v1648, %v1666
    %v1784 = vmul.f32 %v1649, %v1666
    %v1785 = vmul.f32 %v1650, %v1666
    %v1786 = vmul.f32 %v1651, %v1666
    %v1787 = vmul.f32 %v1652, %v1666
    %v1788 = vmul.f32 %v1653, %v1666
    %v1789 = vmul.f32 %v1654, %v1666
    %v1790 = vmul.f32 %v1655, %v1666
    %v1791 = vmul.f32 %v1656, %v1666
    %v1792 = vmul.f32 %v1657, %v1666
    %v1793 = vmul.f32 %v1658, %v1666
    %v1794 = vmul.f32 %v1659, %v1666
    %v1795 = vmul.f32 %v1660, %v1666
    %1796 = vadd.xlane.f32.xlu0 %v1668
    %v1797 = vpop.xlane.xlu0 %1796
    %1798 = vadd.xlane.f32.xlu0 %v1669
    %v1799 = vpop.xlane.xlu0 %1798
    %1800 = vadd.xlane.f32.xlu0 %v1670
    %v1801 = vpop.xlane.xlu0 %1800
    %1802 = vadd.xlane.f32.xlu0 %v1671
    %v1803 = vpop.xlane.xlu0 %1802
    %1804 = vadd.xlane.f32.xlu0 %v1672
    %v1805 = vpop.xlane.xlu0 %1804
    %1806 = vadd.xlane.f32.xlu0 %v1673
    %v1807 = vpop.xlane.xlu0 %1806
    %1808 = vadd.xlane.f32.xlu0 %v1674
    %v1809 = vpop.xlane.xlu0 %1808
    %1810 = vadd.xlane.f32.xlu0 %v1675
    %v1811 = vpop.xlane.xlu0 %1810
    %1812 = vadd.xlane.f32.xlu0 %v1676
    %v1813 = vpop.xlane.xlu0 %1812
    %1814 = vadd.xlane.f32.xlu0 %v1677
    %v1815 = vpop.xlane.xlu0 %1814
    %1816 = vadd.xlane.f32.xlu0 %v1678
    %v1817 = vpop.xlane.xlu0 %1816
    %1818 = vadd.xlane.f32.xlu0 %v1679
    %v1819 = vpop.xlane.xlu0 %1818
    %1820 = vadd.xlane.f32.xlu0 %v1680
    %v1821 = vpop.xlane.xlu0 %1820
    %1822 = vadd.xlane.f32.xlu0 %v1681
    %v1823 = vpop.xlane.xlu0 %1822
    %1824 = vadd.xlane.f32.xlu0 %v1682
    %v1825 = vpop.xlane.xlu0 %1824
    %1826 = vadd.xlane.f32.xlu0 %v1683
    %v1827 = vpop.xlane.xlu0 %1826
    %1828 = vadd.xlane.f32.xlu0 %v1684
    %v1829 = vpop.xlane.xlu0 %1828
    %1830 = vadd.xlane.f32.xlu0 %v1685
    %v1831 = vpop.xlane.xlu0 %1830
    %1832 = vadd.xlane.f32.xlu0 %v1686
    %v1833 = vpop.xlane.xlu0 %1832
    %1834 = vadd.xlane.f32.xlu0 %v1687
    %v1835 = vpop.xlane.xlu0 %1834
    %1836 = vadd.xlane.f32.xlu0 %v1688
    %v1837 = vpop.xlane.xlu0 %1836
    %1838 = vadd.xlane.f32.xlu0 %v1689
    %v1839 = vpop.xlane.xlu0 %1838
    %1840 = vadd.xlane.f32.xlu0 %v1690
    %v1841 = vpop.xlane.xlu0 %1840
    %1842 = vadd.xlane.f32.xlu0 %v1691
    %v1843 = vpop.xlane.xlu0 %1842
    %1844 = vadd.xlane.f32.xlu0 %v1692
    %v1845 = vpop.xlane.xlu0 %1844
    %1846 = vadd.xlane.f32.xlu0 %v1693
    %v1847 = vpop.xlane.xlu0 %1846
    %1848 = vadd.xlane.f32.xlu0 %v1694
    %v1849 = vpop.xlane.xlu0 %1848
    %1850 = vadd.xlane.f32.xlu0 %v1695
    %v1851 = vpop.xlane.xlu0 %1850
    %1852 = vadd.xlane.f32.xlu0 %v1696
    %v1853 = vpop.xlane.xlu0 %1852
    %1854 = vadd.xlane.f32.xlu0 %v1697
    %v1855 = vpop.xlane.xlu0 %1854
    %1856 = vadd.xlane.f32.xlu0 %v1698
    %v1857 = vpop.xlane.xlu0 %1856
    %1858 = vadd.xlane.f32.xlu0 %v1699
    %v1859 = vpop.xlane.xlu0 %1858
    %1860 = vadd.xlane.f32.xlu0 %v1700
    %v1861 = vpop.xlane.xlu0 %1860
    %1862 = vadd.xlane.f32.xlu0 %v1701
    %v1863 = vpop.xlane.xlu0 %1862
    %1864 = vadd.xlane.f32.xlu0 %v1702
    %v1865 = vpop.xlane.xlu0 %1864
    %1866 = vadd.xlane.f32.xlu0 %v1703
    %v1867 = vpop.xlane.xlu0 %1866
    %1868 = vadd.xlane.f32.xlu0 %v1704
    %v1869 = vpop.xlane.xlu0 %1868
    %1870 = vadd.xlane.f32.xlu0 %v1705
    %v1871 = vpop.xlane.xlu0 %1870
    %1872 = vadd.xlane.f32.xlu0 %v1706
    %v1873 = vpop.xlane.xlu0 %1872
    %1874 = vadd.xlane.f32.xlu0 %v1707
    %v1875 = vpop.xlane.xlu0 %1874
    %1876 = vadd.xlane.f32.xlu0 %v1708
    %v1877 = vpop.xlane.xlu0 %1876
    %1878 = vadd.xlane.f32.xlu0 %v1709
    %v1879 = vpop.xlane.xlu0 %1878
    %1880 = vadd.xlane.f32.xlu0 %v1710
    %v1881 = vpop.xlane.xlu0 %1880
    %1882 = vadd.xlane.f32.xlu0 %v1711
    %v1883 = vpop.xlane.xlu0 %1882
    %1884 = vadd.xlane.f32.xlu0 %v1712
    %v1885 = vpop.xlane.xlu0 %1884
    %1886 = vadd.xlane.f32.xlu0 %v1713
    %v1887 = vpop.xlane.xlu0 %1886
    %1888 = vadd.xlane.f32.xlu0 %v1714
    %v1889 = vpop.xlane.xlu0 %1888
    %1890 = vadd.xlane.f32.xlu0 %v1715
    %v1891 = vpop.xlane.xlu0 %1890
    %1892 = vadd.xlane.f32.xlu0 %v1716
    %v1893 = vpop.xlane.xlu0 %1892
    %1894 = vadd.xlane.f32.xlu0 %v1717
    %v1895 = vpop.xlane.xlu0 %1894
    %1896 = vadd.xlane.f32.xlu0 %v1718
    %v1897 = vpop.xlane.xlu0 %1896
    %1898 = vadd.xlane.f32.xlu0 %v1719
    %v1899 = vpop.xlane.xlu0 %1898
    %1900 = vadd.xlane.f32.xlu0 %v1720
    %v1901 = vpop.xlane.xlu0 %1900
    %1902 = vadd.xlane.f32.xlu0 %v1721
    %v1903 = vpop.xlane.xlu0 %1902
    %1904 = vadd.xlane.f32.xlu0 %v1722
    %v1905 = vpop.xlane.xlu0 %1904
    %1906 = vadd.xlane.f32.xlu0 %v1723
    %v1907 = vpop.xlane.xlu0 %1906
    %1908 = vadd.xlane.f32.xlu0 %v1724
    %v1909 = vpop.xlane.xlu0 %1908
    %1910 = vadd.xlane.f32.xlu0 %v1725
    %v1911 = vpop.xlane.xlu0 %1910
    %1912 = vadd.xlane.f32.xlu0 %v1726
    %v1913 = vpop.xlane.xlu0 %1912
    %1914 = vadd.xlane.f32.xlu0 %v1727
    %v1915 = vpop.xlane.xlu0 %1914
    %1916 = vadd.xlane.f32.xlu0 %v1728
    %v1917 = vpop.xlane.xlu0 %1916
    %1918 = vadd.xlane.f32.xlu0 %v1729
    %v1919 = vpop.xlane.xlu0 %1918
    %1920 = vadd.xlane.f32.xlu0 %v1730
    %v1921 = vpop.xlane.xlu0 %1920
    %1922 = vadd.xlane.f32.xlu0 %v1731
    %v1923 = vpop.xlane.xlu0 %1922
    %1924 = vadd.xlane.f32.xlu0 %v1732
    %v1925 = vpop.xlane.xlu0 %1924
    %1926 = vadd.xlane.f32.xlu0 %v1733
    %v1927 = vpop.xlane.xlu0 %1926
    %1928 = vadd.xlane.f32.xlu0 %v1734
    %v1929 = vpop.xlane.xlu0 %1928
    %1930 = vadd.xlane.f32.xlu0 %v1735
    %v1931 = vpop.xlane.xlu0 %1930
    %1932 = vadd.xlane.f32.xlu0 %v1736
    %v1933 = vpop.xlane.xlu0 %1932
    %1934 = vadd.xlane.f32.xlu0 %v1737
    %v1935 = vpop.xlane.xlu0 %1934
    %1936 = vadd.xlane.f32.xlu0 %v1738
    %v1937 = vpop.xlane.xlu0 %1936
    %1938 = vadd.xlane.f32.xlu0 %v1739
    %v1939 = vpop.xlane.xlu0 %1938
    %1940 = vadd.xlane.f32.xlu0 %v1740
    %v1941 = vpop.xlane.xlu0 %1940
    %1942 = vadd.xlane.f32.xlu0 %v1741
    %v1943 = vpop.xlane.xlu0 %1942
    %1944 = vadd.xlane.f32.xlu0 %v1742
    %v1945 = vpop.xlane.xlu0 %1944
    %1946 = vadd.xlane.f32.xlu0 %v1743
    %v1947 = vpop.xlane.xlu0 %1946
    %1948 = vadd.xlane.f32.xlu0 %v1744
    %v1949 = vpop.xlane.xlu0 %1948
    %1950 = vadd.xlane.f32.xlu0 %v1745
    %v1951 = vpop.xlane.xlu0 %1950
    %1952 = vadd.xlane.f32.xlu0 %v1746
    %v1953 = vpop.xlane.xlu0 %1952
    %1954 = vadd.xlane.f32.xlu0 %v1747
    %v1955 = vpop.xlane.xlu0 %1954
    %1956 = vadd.xlane.f32.xlu0 %v1748
    %v1957 = vpop.xlane.xlu0 %1956
    %1958 = vadd.xlane.f32.xlu0 %v1749
    %v1959 = vpop.xlane.xlu0 %1958
    %1960 = vadd.xlane.f32.xlu0 %v1750
    %v1961 = vpop.xlane.xlu0 %1960
    %1962 = vadd.xlane.f32.xlu0 %v1751
    %v1963 = vpop.xlane.xlu0 %1962
    %1964 = vadd.xlane.f32.xlu0 %v1752
    %v1965 = vpop.xlane.xlu0 %1964
    %1966 = vadd.xlane.f32.xlu0 %v1753
    %v1967 = vpop.xlane.xlu0 %1966
    %1968 = vadd.xlane.f32.xlu0 %v1754
    %v1969 = vpop.xlane.xlu0 %1968
    %1970 = vadd.xlane.f32.xlu0 %v1755
    %v1971 = vpop.xlane.xlu0 %1970
    %1972 = vadd.xlane.f32.xlu0 %v1756
    %v1973 = vpop.xlane.xlu0 %1972
    %1974 = vadd.xlane.f32.xlu0 %v1757
    %v1975 = vpop.xlane.xlu0 %1974
    %1976 = vadd.xlane.f32.xlu0 %v1758
    %v1977 = vpop.xlane.xlu0 %1976
    %1978 = vadd.xlane.f32.xlu0 %v1759
    %v1979 = vpop.xlane.xlu0 %1978
    %1980 = vadd.xlane.f32.xlu0 %v1760
    %v1981 = vpop.xlane.xlu0 %1980
    %1982 = vadd.xlane.f32.xlu0 %v1761
    %v1983 = vpop.xlane.xlu0 %1982
    %1984 = vadd.xlane.f32.xlu0 %v1762
    %v1985 = vpop.xlane.xlu0 %1984
    %1986 = vadd.xlane.f32.xlu0 %v1763
    %v1987 = vpop.xlane.xlu0 %1986
    %1988 = vadd.xlane.f32.xlu0 %v1764
    %v1989 = vpop.xlane.xlu0 %1988
    %1990 = vadd.xlane.f32.xlu0 %v1765
    %v1991 = vpop.xlane.xlu0 %1990
    %1992 = vadd.xlane.f32.xlu0 %v1766
    %v1993 = vpop.xlane.xlu0 %1992
    %1994 = vadd.xlane.f32.xlu0 %v1767
    %v1995 = vpop.xlane.xlu0 %1994
    %1996 = vadd.xlane.f32.xlu0 %v1768
    %v1997 = vpop.xlane.xlu0 %1996
    %1998 = vadd.xlane.f32.xlu0 %v1769
    %v1999 = vpop.xlane.xlu0 %1998
    %2000 = vadd.xlane.f32.xlu0 %v1770
    %v2001 = vpop.xlane.xlu0 %2000
    %2002 = vadd.xlane.f32.xlu0 %v1771
    %v2003 = vpop.xlane.xlu0 %2002
    %2004 = vadd.xlane.f32.xlu0 %v1772
    %v2005 = vpop.xlane.xlu0 %2004
    %2006 = vadd.xlane.f32.xlu0 %v1773
    %v2007 = vpop.xlane.xlu0 %2006
    %2008 = vadd.xlane.f32.xlu0 %v1774
    %v2009 = vpop.xlane.xlu0 %2008
    %2010 = vadd.xlane.f32.xlu0 %v1775
    %v2011 = vpop.xlane.xlu0 %2010
    %2012 = vadd.xlane.f32.xlu0 %v1776
    %v2013 = vpop.xlane.xlu0 %2012
    %2014 = vadd.xlane.f32.xlu0 %v1777
    %v2015 = vpop.xlane.xlu0 %2014
    %2016 = vadd.xlane.f32.xlu0 %v1778
    %v2017 = vpop.xlane.xlu0 %2016
    %2018 = vadd.xlane.f32.xlu0 %v1779
    %v2019 = vpop.xlane.xlu0 %2018
    %2020 = vadd.xlane.f32.xlu0 %v1780
    %v2021 = vpop.xlane.xlu0 %2020
    %2022 = vadd.xlane.f32.xlu0 %v1781
    %v2023 = vpop.xlane.xlu0 %2022
    %2024 = vadd.xlane.f32.xlu0 %v1782
    %v2025 = vpop.xlane.xlu0 %2024
    %2026 = vadd.xlane.f32.xlu0 %v1783
    %v2027 = vpop.xlane.xlu0 %2026
    %2028 = vadd.xlane.f32.xlu0 %v1784
    %v2029 = vpop.xlane.xlu0 %2028
    %2030 = vadd.xlane.f32.xlu0 %v1785
    %v2031 = vpop.xlane.xlu0 %2030
    %2032 = vadd.xlane.f32.xlu0 %v1786
    %v2033 = vpop.xlane.xlu0 %2032
    %2034 = vadd.xlane.f32.xlu0 %v1787
    %v2035 = vpop.xlane.xlu0 %2034
    %2036 = vadd.xlane.f32.xlu0 %v1788
    %v2037 = vpop.xlane.xlu0 %2036
    %2038 = vadd.xlane.f32.xlu0 %v1789
    %v2039 = vpop.xlane.xlu0 %2038
    %2040 = vadd.xlane.f32.xlu0 %v1790
    %v2041 = vpop.xlane.xlu0 %2040
    %2042 = vadd.xlane.f32.xlu0 %v1791
    %v2043 = vpop.xlane.xlu0 %2042
    %2044 = vadd.xlane.f32.xlu0 %v1792
    %v2045 = vpop.xlane.xlu0 %2044
    %2046 = vadd.xlane.f32.xlu0 %v1793
    %v2047 = vpop.xlane.xlu0 %2046
    %2048 = vadd.xlane.f32.xlu0 %v1794
    %v2049 = vpop.xlane.xlu0 %2048
    %2050 = vadd.xlane.f32.xlu0 %v1795
    %v2051 = vpop.xlane.xlu0 %2050
    %v2180 = vlaneseq
    %v2181 = vand.u32 %v2180, 127
    %v2182 = vlaneseq
    %v2183 = vshrl.u32 %v2182, 7
    %v2184 = vsub.s32 %v2181, %v2183
    %v2185 = vrot.slane %v1797, %v2184
    %v2186 = vadd.s32 %v2181, 4294967288
    %v2187 = vlaneseq
    %v2188 = vshrl.u32 %v2187, 7
    %v2189 = vsub.s32 %v2186, %v2188
    %v2190 = vrot.slane %v1799, %v2189
    %vm2191 = vcmask 130112
    %v2192 = vsel %vm2191, %v2190, %v2185
    %v2193 = vadd.s32 %v2181, 4294967280
    %v2194 = vlaneseq
    %v2195 = vshrl.u32 %v2194, 7
    %v2196 = vsub.s32 %v2193, %v2195
    %v2197 = vrot.slane %v1801, %v2196
    %vm2198 = vcmask 195712
    %v2199 = vsel %vm2198, %v2197, %v2192
    %v2200 = vadd.s32 %v2181, 4294967272
    %v2201 = vlaneseq
    %v2202 = vshrl.u32 %v2201, 7
    %v2203 = vsub.s32 %v2200, %v2202
    %v2204 = vrot.slane %v1803, %v2203
    %vm2205 = vcmask 261312
    %v2206 = vsel %vm2205, %v2204, %v2199
    %v2207 = vadd.s32 %v2181, 4294967264
    %v2208 = vlaneseq
    %v2209 = vshrl.u32 %v2208, 7
    %v2210 = vsub.s32 %v2207, %v2209
    %v2211 = vrot.slane %v1805, %v2210
    %vm2212 = vcmask 326912
    %v2213 = vsel %vm2212, %v2211, %v2206
    %v2214 = vadd.s32 %v2181, 4294967256
    %v2215 = vlaneseq
    %v2216 = vshrl.u32 %v2215, 7
    %v2217 = vsub.s32 %v2214, %v2216
    %v2218 = vrot.slane %v1807, %v2217
    %vm2219 = vcmask 392512
    %v2220 = vsel %vm2219, %v2218, %v2213
    %v2221 = vadd.s32 %v2181, 4294967248
    %v2222 = vlaneseq
    %v2223 = vshrl.u32 %v2222, 7
    %v2224 = vsub.s32 %v2221, %v2223
    %v2225 = vrot.slane %v1809, %v2224
    %vm2226 = vcmask 458112
    %v2227 = vsel %vm2226, %v2225, %v2220
    %v2228 = vadd.s32 %v2181, 4294967240
    %v2229 = vlaneseq
    %v2230 = vshrl.u32 %v2229, 7
    %v2231 = vsub.s32 %v2228, %v2230
    %v2232 = vrot.slane %v1811, %v2231
    %vm2233 = vcmask 523712
    %v2234 = vsel %vm2233, %v2232, %v2227
    %v2235 = vadd.s32 %v2181, 4294967232
    %v2236 = vlaneseq
    %v2237 = vshrl.u32 %v2236, 7
    %v2238 = vsub.s32 %v2235, %v2237
    %v2239 = vrot.slane %v1813, %v2238
    %vm2240 = vcmask 589312
    %v2241 = vsel %vm2240, %v2239, %v2234
    %v2242 = vadd.s32 %v2181, 4294967224
    %v2243 = vlaneseq
    %v2244 = vshrl.u32 %v2243, 7
    %v2245 = vsub.s32 %v2242, %v2244
    %v2246 = vrot.slane %v1815, %v2245
    %vm2247 = vcmask 654912
    %v2248 = vsel %vm2247, %v2246, %v2241
    %v2249 = vadd.s32 %v2181, 4294967216
    %v2250 = vlaneseq
    %v2251 = vshrl.u32 %v2250, 7
    %v2252 = vsub.s32 %v2249, %v2251
    %v2253 = vrot.slane %v1817, %v2252
    %vm2254 = vcmask 720512
    %v2255 = vsel %vm2254, %v2253, %v2248
    %v2256 = vadd.s32 %v2181, 4294967208
    %v2257 = vlaneseq
    %v2258 = vshrl.u32 %v2257, 7
    %v2259 = vsub.s32 %v2256, %v2258
    %v2260 = vrot.slane %v1819, %v2259
    %vm2261 = vcmask 786112
    %v2262 = vsel %vm2261, %v2260, %v2255
    %v2263 = vadd.s32 %v2181, 4294967200
    %v2264 = vlaneseq
    %v2265 = vshrl.u32 %v2264, 7
    %v2266 = vsub.s32 %v2263, %v2265
    %v2267 = vrot.slane %v1821, %v2266
    %vm2268 = vcmask 851712
    %v2269 = vsel %vm2268, %v2267, %v2262
    %v2270 = vadd.s32 %v2181, 4294967192
    %v2271 = vlaneseq
    %v2272 = vshrl.u32 %v2271, 7
    %v2273 = vsub.s32 %v2270, %v2272
    %v2274 = vrot.slane %v1823, %v2273
    %vm2275 = vcmask 917312
    %v2276 = vsel %vm2275, %v2274, %v2269
    %v2277 = vadd.s32 %v2181, 4294967184
    %v2278 = vlaneseq
    %v2279 = vshrl.u32 %v2278, 7
    %v2280 = vsub.s32 %v2277, %v2279
    %v2281 = vrot.slane %v1825, %v2280
    %vm2282 = vcmask 982912
    %v2283 = vsel %vm2282, %v2281, %v2276
    %v2284 = vadd.s32 %v2181, 4294967176
    %v2285 = vlaneseq
    %v2286 = vshrl.u32 %v2285, 7
    %v2287 = vsub.s32 %v2284, %v2286
    %v2288 = vrot.slane %v1827, %v2287
    %vm2289 = vcmask 1048512
    %v2290 = vsel %vm2289, %v2288, %v2283
    %v2291 = vlaneseq
    %v2292 = vshrl.u32 %v2291, 7
    %v2293 = vsub.s32 %v2181, %v2292
    %v2294 = vrot.slane %v1829, %v2293
    %v2295 = vlaneseq
    %v2296 = vshrl.u32 %v2295, 7
    %v2297 = vsub.s32 %v2186, %v2296
    %v2298 = vrot.slane %v1831, %v2297
    %v2299 = vsel %vm2191, %v2298, %v2294
    %v2300 = vlaneseq
    %v2301 = vshrl.u32 %v2300, 7
    %v2302 = vsub.s32 %v2193, %v2301
    %v2303 = vrot.slane %v1833, %v2302
    %v2304 = vsel %vm2198, %v2303, %v2299
    %v2305 = vlaneseq
    %v2306 = vshrl.u32 %v2305, 7
    %v2307 = vsub.s32 %v2200, %v2306
    %v2308 = vrot.slane %v1835, %v2307
    %v2309 = vsel %vm2205, %v2308, %v2304
    %v2310 = vlaneseq
    %v2311 = vshrl.u32 %v2310, 7
    %v2312 = vsub.s32 %v2207, %v2311
    %v2313 = vrot.slane %v1837, %v2312
    %v2314 = vsel %vm2212, %v2313, %v2309
    %v2315 = vlaneseq
    %v2316 = vshrl.u32 %v2315, 7
    %v2317 = vsub.s32 %v2214, %v2316
    %v2318 = vrot.slane %v1839, %v2317
    %v2319 = vsel %vm2219, %v2318, %v2314
    %v2320 = vlaneseq
    %v2321 = vshrl.u32 %v2320, 7
    %v2322 = vsub.s32 %v2221, %v2321
    %v2323 = vrot.slane %v1841, %v2322
    %v2324 = vsel %vm2226, %v2323, %v2319
    %v2325 = vlaneseq
    %v2326 = vshrl.u32 %v2325, 7
    %v2327 = vsub.s32 %v2228, %v2326
    %v2328 = vrot.slane %v1843, %v2327
    %v2329 = vsel %vm2233, %v2328, %v2324
    %v2330 = vlaneseq
    %v2331 = vshrl.u32 %v2330, 7
    %v2332 = vsub.s32 %v2235, %v2331
    %v2333 = vrot.slane %v1845, %v2332
    %v2334 = vsel %vm2240, %v2333, %v2329
    %v2335 = vlaneseq
    %v2336 = vshrl.u32 %v2335, 7
    %v2337 = vsub.s32 %v2242, %v2336
    %v2338 = vrot.slane %v1847, %v2337
    %v2339 = vsel %vm2247, %v2338, %v2334
    %v2340 = vlaneseq
    %v2341 = vshrl.u32 %v2340, 7
    %v2342 = vsub.s32 %v2249, %v2341
    %v2343 = vrot.slane %v1849, %v2342
    %v2344 = vsel %vm2254, %v2343, %v2339
    %v2345 = vlaneseq
    %v2346 = vshrl.u32 %v2345, 7
    %v2347 = vsub.s32 %v2256, %v2346
    %v2348 = vrot.slane %v1851, %v2347
    %v2349 = vsel %vm2261, %v2348, %v2344
    %v2350 = vlaneseq
    %v2351 = vshrl.u32 %v2350, 7
    %v2352 = vsub.s32 %v2263, %v2351
    %v2353 = vrot.slane %v1853, %v2352
    %v2354 = vsel %vm2268, %v2353, %v2349
    %v2355 = vlaneseq
    %v2356 = vshrl.u32 %v2355, 7
    %v2357 = vsub.s32 %v2270, %v2356
    %v2358 = vrot.slane %v1855, %v2357
    %v2359 = vsel %vm2275, %v2358, %v2354
    %v2360 = vlaneseq
    %v2361 = vshrl.u32 %v2360, 7
    %v2362 = vsub.s32 %v2277, %v2361
    %v2363 = vrot.slane %v1857, %v2362
    %v2364 = vsel %vm2282, %v2363, %v2359
    %v2365 = vlaneseq
    %v2366 = vshrl.u32 %v2365, 7
    %v2367 = vsub.s32 %v2284, %v2366
    %v2368 = vrot.slane %v1859, %v2367
    %v2369 = vsel %vm2289, %v2368, %v2364
    %v2370 = vlaneseq
    %v2371 = vshrl.u32 %v2370, 7
    %v2372 = vsub.s32 %v2181, %v2371
    %v2373 = vrot.slane %v1861, %v2372
    %v2374 = vlaneseq
    %v2375 = vshrl.u32 %v2374, 7
    %v2376 = vsub.s32 %v2186, %v2375
    %v2377 = vrot.slane %v1863, %v2376
    %v2378 = vsel %vm2191, %v2377, %v2373
    %v2379 = vlaneseq
    %v2380 = vshrl.u32 %v2379, 7
    %v2381 = vsub.s32 %v2193, %v2380
    %v2382 = vrot.slane %v1865, %v2381
    %v2383 = vsel %vm2198, %v2382, %v2378
    %v2384 = vlaneseq
    %v2385 = vshrl.u32 %v2384, 7
    %v2386 = vsub.s32 %v2200, %v2385
    %v2387 = vrot.slane %v1867, %v2386
    %v2388 = vsel %vm2205, %v2387, %v2383
    %v2389 = vlaneseq
    %v2390 = vshrl.u32 %v2389, 7
    %v2391 = vsub.s32 %v2207, %v2390
    %v2392 = vrot.slane %v1869, %v2391
    %v2393 = vsel %vm2212, %v2392, %v2388
    %v2394 = vlaneseq
    %v2395 = vshrl.u32 %v2394, 7
    %v2396 = vsub.s32 %v2214, %v2395
    %v2397 = vrot.slane %v1871, %v2396
    %v2398 = vsel %vm2219, %v2397, %v2393
    %v2399 = vlaneseq
    %v2400 = vshrl.u32 %v2399, 7
    %v2401 = vsub.s32 %v2221, %v2400
    %v2402 = vrot.slane %v1873, %v2401
    %v2403 = vsel %vm2226, %v2402, %v2398
    %v2404 = vlaneseq
    %v2405 = vshrl.u32 %v2404, 7
    %v2406 = vsub.s32 %v2228, %v2405
    %v2407 = vrot.slane %v1875, %v2406
    %v2408 = vsel %vm2233, %v2407, %v2403
    %v2409 = vlaneseq
    %v2410 = vshrl.u32 %v2409, 7
    %v2411 = vsub.s32 %v2235, %v2410
    %v2412 = vrot.slane %v1877, %v2411
    %v2413 = vsel %vm2240, %v2412, %v2408
    %v2414 = vlaneseq
    %v2415 = vshrl.u32 %v2414, 7
    %v2416 = vsub.s32 %v2242, %v2415
    %v2417 = vrot.slane %v1879, %v2416
    %v2418 = vsel %vm2247, %v2417, %v2413
    %v2419 = vlaneseq
    %v2420 = vshrl.u32 %v2419, 7
    %v2421 = vsub.s32 %v2249, %v2420
    %v2422 = vrot.slane %v1881, %v2421
    %v2423 = vsel %vm2254, %v2422, %v2418
    %v2424 = vlaneseq
    %v2425 = vshrl.u32 %v2424, 7
    %v2426 = vsub.s32 %v2256, %v2425
    %v2427 = vrot.slane %v1883, %v2426
    %v2428 = vsel %vm2261, %v2427, %v2423
    %v2429 = vlaneseq
    %v2430 = vshrl.u32 %v2429, 7
    %v2431 = vsub.s32 %v2263, %v2430
    %v2432 = vrot.slane %v1885, %v2431
    %v2433 = vsel %vm2268, %v2432, %v2428
    %v2434 = vlaneseq
    %v2435 = vshrl.u32 %v2434, 7
    %v2436 = vsub.s32 %v2270, %v2435
    %v2437 = vrot.slane %v1887, %v2436
    %v2438 = vsel %vm2275, %v2437, %v2433
    %v2439 = vlaneseq
    %v2440 = vshrl.u32 %v2439, 7
    %v2441 = vsub.s32 %v2277, %v2440
    %v2442 = vrot.slane %v1889, %v2441
    %v2443 = vsel %vm2282, %v2442, %v2438
    %v2444 = vlaneseq
    %v2445 = vshrl.u32 %v2444, 7
    %v2446 = vsub.s32 %v2284, %v2445
    %v2447 = vrot.slane %v1891, %v2446
    %v2448 = vsel %vm2289, %v2447, %v2443
    %v2449 = vlaneseq
    %v2450 = vshrl.u32 %v2449, 7
    %v2451 = vsub.s32 %v2181, %v2450
    %v2452 = vrot.slane %v1893, %v2451
    %v2453 = vlaneseq
    %v2454 = vshrl.u32 %v2453, 7
    %v2455 = vsub.s32 %v2186, %v2454
    %v2456 = vrot.slane %v1895, %v2455
    %v2457 = vsel %vm2191, %v2456, %v2452
    %v2458 = vlaneseq
    %v2459 = vshrl.u32 %v2458, 7
    %v2460 = vsub.s32 %v2193, %v2459
    %v2461 = vrot.slane %v1897, %v2460
    %v2462 = vsel %vm2198, %v2461, %v2457
    %v2463 = vlaneseq
    %v2464 = vshrl.u32 %v2463, 7
    %v2465 = vsub.s32 %v2200, %v2464
    %v2466 = vrot.slane %v1899, %v2465
    %v2467 = vsel %vm2205, %v2466, %v2462
    %v2468 = vlaneseq
    %v2469 = vshrl.u32 %v2468, 7
    %v2470 = vsub.s32 %v2207, %v2469
    %v2471 = vrot.slane %v1901, %v2470
    %v2472 = vsel %vm2212, %v2471, %v2467
    %v2473 = vlaneseq
    %v2474 = vshrl.u32 %v2473, 7
    %v2475 = vsub.s32 %v2214, %v2474
    %v2476 = vrot.slane %v1903, %v2475
    %v2477 = vsel %vm2219, %v2476, %v2472
    %v2478 = vlaneseq
    %v2479 = vshrl.u32 %v2478, 7
    %v2480 = vsub.s32 %v2221, %v2479
    %v2481 = vrot.slane %v1905, %v2480
    %v2482 = vsel %vm2226, %v2481, %v2477
    %v2483 = vlaneseq
    %v2484 = vshrl.u32 %v2483, 7
    %v2485 = vsub.s32 %v2228, %v2484
    %v2486 = vrot.slane %v1907, %v2485
    %v2487 = vsel %vm2233, %v2486, %v2482
    %v2488 = vlaneseq
    %v2489 = vshrl.u32 %v2488, 7
    %v2490 = vsub.s32 %v2235, %v2489
    %v2491 = vrot.slane %v1909, %v2490
    %v2492 = vsel %vm2240, %v2491, %v2487
    %v2493 = vlaneseq
    %v2494 = vshrl.u32 %v2493, 7
    %v2495 = vsub.s32 %v2242, %v2494
    %v2496 = vrot.slane %v1911, %v2495
    %v2497 = vsel %vm2247, %v2496, %v2492
    %v2498 = vlaneseq
    %v2499 = vshrl.u32 %v2498, 7
    %v2500 = vsub.s32 %v2249, %v2499
    %v2501 = vrot.slane %v1913, %v2500
    %v2502 = vsel %vm2254, %v2501, %v2497
    %v2503 = vlaneseq
    %v2504 = vshrl.u32 %v2503, 7
    %v2505 = vsub.s32 %v2256, %v2504
    %v2506 = vrot.slane %v1915, %v2505
    %v2507 = vsel %vm2261, %v2506, %v2502
    %v2508 = vlaneseq
    %v2509 = vshrl.u32 %v2508, 7
    %v2510 = vsub.s32 %v2263, %v2509
    %v2511 = vrot.slane %v1917, %v2510
    %v2512 = vsel %vm2268, %v2511, %v2507
    %v2513 = vlaneseq
    %v2514 = vshrl.u32 %v2513, 7
    %v2515 = vsub.s32 %v2270, %v2514
    %v2516 = vrot.slane %v1919, %v2515
    %v2517 = vsel %vm2275, %v2516, %v2512
    %v2518 = vlaneseq
    %v2519 = vshrl.u32 %v2518, 7
    %v2520 = vsub.s32 %v2277, %v2519
    %v2521 = vrot.slane %v1921, %v2520
    %v2522 = vsel %vm2282, %v2521, %v2517
    %v2523 = vlaneseq
    %v2524 = vshrl.u32 %v2523, 7
    %v2525 = vsub.s32 %v2284, %v2524
    %v2526 = vrot.slane %v1923, %v2525
    %v2527 = vsel %vm2289, %v2526, %v2522
    %v2528 = vlaneseq
    %v2529 = vshrl.u32 %v2528, 7
    %v2530 = vsub.s32 %v2181, %v2529
    %v2531 = vrot.slane %v1925, %v2530
    %v2532 = vlaneseq
    %v2533 = vshrl.u32 %v2532, 7
    %v2534 = vsub.s32 %v2186, %v2533
    %v2535 = vrot.slane %v1927, %v2534
    %v2536 = vsel %vm2191, %v2535, %v2531
    %v2537 = vlaneseq
    %v2538 = vshrl.u32 %v2537, 7
    %v2539 = vsub.s32 %v2193, %v2538
    %v2540 = vrot.slane %v1929, %v2539
    %v2541 = vsel %vm2198, %v2540, %v2536
    %v2542 = vlaneseq
    %v2543 = vshrl.u32 %v2542, 7
    %v2544 = vsub.s32 %v2200, %v2543
    %v2545 = vrot.slane %v1931, %v2544
    %v2546 = vsel %vm2205, %v2545, %v2541
    %v2547 = vlaneseq
    %v2548 = vshrl.u32 %v2547, 7
    %v2549 = vsub.s32 %v2207, %v2548
    %v2550 = vrot.slane %v1933, %v2549
    %v2551 = vsel %vm2212, %v2550, %v2546
    %v2552 = vlaneseq
    %v2553 = vshrl.u32 %v2552, 7
    %v2554 = vsub.s32 %v2214, %v2553
    %v2555 = vrot.slane %v1935, %v2554
    %v2556 = vsel %vm2219, %v2555, %v2551
    %v2557 = vlaneseq
    %v2558 = vshrl.u32 %v2557, 7
    %v2559 = vsub.s32 %v2221, %v2558
    %v2560 = vrot.slane %v1937, %v2559
    %v2561 = vsel %vm2226, %v2560, %v2556
    %v2562 = vlaneseq
    %v2563 = vshrl.u32 %v2562, 7
    %v2564 = vsub.s32 %v2228, %v2563
    %v2565 = vrot.slane %v1939, %v2564
    %v2566 = vsel %vm2233, %v2565, %v2561
    %v2567 = vlaneseq
    %v2568 = vshrl.u32 %v2567, 7
    %v2569 = vsub.s32 %v2235, %v2568
    %v2570 = vrot.slane %v1941, %v2569
    %v2571 = vsel %vm2240, %v2570, %v2566
    %v2572 = vlaneseq
    %v2573 = vshrl.u32 %v2572, 7
    %v2574 = vsub.s32 %v2242, %v2573
    %v2575 = vrot.slane %v1943, %v2574
    %v2576 = vsel %vm2247, %v2575, %v2571
    %v2577 = vlaneseq
    %v2578 = vshrl.u32 %v2577, 7
    %v2579 = vsub.s32 %v2249, %v2578
    %v2580 = vrot.slane %v1945, %v2579
    %v2581 = vsel %vm2254, %v2580, %v2576
    %v2582 = vlaneseq
    %v2583 = vshrl.u32 %v2582, 7
    %v2584 = vsub.s32 %v2256, %v2583
    %v2585 = vrot.slane %v1947, %v2584
    %v2586 = vsel %vm2261, %v2585, %v2581
    %v2587 = vlaneseq
    %v2588 = vshrl.u32 %v2587, 7
    %v2589 = vsub.s32 %v2263, %v2588
    %v2590 = vrot.slane %v1949, %v2589
    %v2591 = vsel %vm2268, %v2590, %v2586
    %v2592 = vlaneseq
    %v2593 = vshrl.u32 %v2592, 7
    %v2594 = vsub.s32 %v2270, %v2593
    %v2595 = vrot.slane %v1951, %v2594
    %v2596 = vsel %vm2275, %v2595, %v2591
    %v2597 = vlaneseq
    %v2598 = vshrl.u32 %v2597, 7
    %v2599 = vsub.s32 %v2277, %v2598
    %v2600 = vrot.slane %v1953, %v2599
    %v2601 = vsel %vm2282, %v2600, %v2596
    %v2602 = vlaneseq
    %v2603 = vshrl.u32 %v2602, 7
    %v2604 = vsub.s32 %v2284, %v2603
    %v2605 = vrot.slane %v1955, %v2604
    %v2606 = vsel %vm2289, %v2605, %v2601
    %v2607 = vlaneseq
    %v2608 = vshrl.u32 %v2607, 7
    %v2609 = vsub.s32 %v2181, %v2608
    %v2610 = vrot.slane %v1957, %v2609
    %v2611 = vlaneseq
    %v2612 = vshrl.u32 %v2611, 7
    %v2613 = vsub.s32 %v2186, %v2612
    %v2614 = vrot.slane %v1959, %v2613
    %v2615 = vsel %vm2191, %v2614, %v2610
    %v2616 = vlaneseq
    %v2617 = vshrl.u32 %v2616, 7
    %v2618 = vsub.s32 %v2193, %v2617
    %v2619 = vrot.slane %v1961, %v2618
    %v2620 = vsel %vm2198, %v2619, %v2615
    %v2621 = vlaneseq
    %v2622 = vshrl.u32 %v2621, 7
    %v2623 = vsub.s32 %v2200, %v2622
    %v2624 = vrot.slane %v1963, %v2623
    %v2625 = vsel %vm2205, %v2624, %v2620
    %v2626 = vlaneseq
    %v2627 = vshrl.u32 %v2626, 7
    %v2628 = vsub.s32 %v2207, %v2627
    %v2629 = vrot.slane %v1965, %v2628
    %v2630 = vsel %vm2212, %v2629, %v2625
    %v2631 = vlaneseq
    %v2632 = vshrl.u32 %v2631, 7
    %v2633 = vsub.s32 %v2214, %v2632
    %v2634 = vrot.slane %v1967, %v2633
    %v2635 = vsel %vm2219, %v2634, %v2630
    %v2636 = vlaneseq
    %v2637 = vshrl.u32 %v2636, 7
    %v2638 = vsub.s32 %v2221, %v2637
    %v2639 = vrot.slane %v1969, %v2638
    %v2640 = vsel %vm2226, %v2639, %v2635
    %v2641 = vlaneseq
    %v2642 = vshrl.u32 %v2641, 7
    %v2643 = vsub.s32 %v2228, %v2642
    %v2644 = vrot.slane %v1971, %v2643
    %v2645 = vsel %vm2233, %v2644, %v2640
    %v2646 = vlaneseq
    %v2647 = vshrl.u32 %v2646, 7
    %v2648 = vsub.s32 %v2235, %v2647
    %v2649 = vrot.slane %v1973, %v2648
    %v2650 = vsel %vm2240, %v2649, %v2645
    %v2651 = vlaneseq
    %v2652 = vshrl.u32 %v2651, 7
    %v2653 = vsub.s32 %v2242, %v2652
    %v2654 = vrot.slane %v1975, %v2653
    %v2655 = vsel %vm2247, %v2654, %v2650
    %v2656 = vlaneseq
    %v2657 = vshrl.u32 %v2656, 7
    %v2658 = vsub.s32 %v2249, %v2657
    %v2659 = vrot.slane %v1977, %v2658
    %v2660 = vsel %vm2254, %v2659, %v2655
    %v2661 = vlaneseq
    %v2662 = vshrl.u32 %v2661, 7
    %v2663 = vsub.s32 %v2256, %v2662
    %v2664 = vrot.slane %v1979, %v2663
    %v2665 = vsel %vm2261, %v2664, %v2660
    %v2666 = vlaneseq
    %v2667 = vshrl.u32 %v2666, 7
    %v2668 = vsub.s32 %v2263, %v2667
    %v2669 = vrot.slane %v1981, %v2668
    %v2670 = vsel %vm2268, %v2669, %v2665
    %v2671 = vlaneseq
    %v2672 = vshrl.u32 %v2671, 7
    %v2673 = vsub.s32 %v2270, %v2672
    %v2674 = vrot.slane %v1983, %v2673
    %v2675 = vsel %vm2275, %v2674, %v2670
    %v2676 = vlaneseq
    %v2677 = vshrl.u32 %v2676, 7
    %v2678 = vsub.s32 %v2277, %v2677
    %v2679 = vrot.slane %v1985, %v2678
    %v2680 = vsel %vm2282, %v2679, %v2675
    %v2681 = vlaneseq
    %v2682 = vshrl.u32 %v2681, 7
    %v2683 = vsub.s32 %v2284, %v2682
    %v2684 = vrot.slane %v1987, %v2683
    %v2685 = vsel %vm2289, %v2684, %v2680
    %v2686 = vlaneseq
    %v2687 = vshrl.u32 %v2686, 7
    %v2688 = vsub.s32 %v2181, %v2687
    %v2689 = vrot.slane %v1989, %v2688
    %v2690 = vlaneseq
    %v2691 = vshrl.u32 %v2690, 7
    %v2692 = vsub.s32 %v2186, %v2691
    %v2693 = vrot.slane %v1991, %v2692
    %v2694 = vsel %vm2191, %v2693, %v2689
    %v2695 = vlaneseq
    %v2696 = vshrl.u32 %v2695, 7
    %v2697 = vsub.s32 %v2193, %v2696
    %v2698 = vrot.slane %v1993, %v2697
    %v2699 = vsel %vm2198, %v2698, %v2694
    %v2700 = vlaneseq
    %v2701 = vshrl.u32 %v2700, 7
    %v2702 = vsub.s32 %v2200, %v2701
    %v2703 = vrot.slane %v1995, %v2702
    %v2704 = vsel %vm2205, %v2703, %v2699
    %v2705 = vlaneseq
    %v2706 = vshrl.u32 %v2705, 7
    %v2707 = vsub.s32 %v2207, %v2706
    %v2708 = vrot.slane %v1997, %v2707
    %v2709 = vsel %vm2212, %v2708, %v2704
    %v2710 = vlaneseq
    %v2711 = vshrl.u32 %v2710, 7
    %v2712 = vsub.s32 %v2214, %v2711
    %v2713 = vrot.slane %v1999, %v2712
    %v2714 = vsel %vm2219, %v2713, %v2709
    %v2715 = vlaneseq
    %v2716 = vshrl.u32 %v2715, 7
    %v2717 = vsub.s32 %v2221, %v2716
    %v2718 = vrot.slane %v2001, %v2717
    %v2719 = vsel %vm2226, %v2718, %v2714
    %v2720 = vlaneseq
    %v2721 = vshrl.u32 %v2720, 7
    %v2722 = vsub.s32 %v2228, %v2721
    %v2723 = vrot.slane %v2003, %v2722
    %v2724 = vsel %vm2233, %v2723, %v2719
    %v2725 = vlaneseq
    %v2726 = vshrl.u32 %v2725, 7
    %v2727 = vsub.s32 %v2235, %v2726
    %v2728 = vrot.slane %v2005, %v2727
    %v2729 = vsel %vm2240, %v2728, %v2724
    %v2730 = vlaneseq
    %v2731 = vshrl.u32 %v2730, 7
    %v2732 = vsub.s32 %v2242, %v2731
    %v2733 = vrot.slane %v2007, %v2732
    %v2734 = vsel %vm2247, %v2733, %v2729
    %v2735 = vlaneseq
    %v2736 = vshrl.u32 %v2735, 7
    %v2737 = vsub.s32 %v2249, %v2736
    %v2738 = vrot.slane %v2009, %v2737
    %v2739 = vsel %vm2254, %v2738, %v2734
    %v2740 = vlaneseq
    %v2741 = vshrl.u32 %v2740, 7
    %v2742 = vsub.s32 %v2256, %v2741
    %v2743 = vrot.slane %v2011, %v2742
    %v2744 = vsel %vm2261, %v2743, %v2739
    %v2745 = vlaneseq
    %v2746 = vshrl.u32 %v2745, 7
    %v2747 = vsub.s32 %v2263, %v2746
    %v2748 = vrot.slane %v2013, %v2747
    %v2749 = vsel %vm2268, %v2748, %v2744
    %v2750 = vlaneseq
    %v2751 = vshrl.u32 %v2750, 7
    %v2752 = vsub.s32 %v2270, %v2751
    %v2753 = vrot.slane %v2015, %v2752
    %v2754 = vsel %vm2275, %v2753, %v2749
    %v2755 = vlaneseq
    %v2756 = vshrl.u32 %v2755, 7
    %v2757 = vsub.s32 %v2277, %v2756
    %v2758 = vrot.slane %v2017, %v2757
    %v2759 = vsel %vm2282, %v2758, %v2754
    %v2760 = vlaneseq
    %v2761 = vshrl.u32 %v2760, 7
    %v2762 = vsub.s32 %v2284, %v2761
    %v2763 = vrot.slane %v2019, %v2762
    %v2764 = vsel %vm2289, %v2763, %v2759
    %v2765 = vlaneseq
    %v2766 = vshrl.u32 %v2765, 7
    %v2767 = vsub.s32 %v2181, %v2766
    %v2768 = vrot.slane %v2021, %v2767
    %v2769 = vlaneseq
    %v2770 = vshrl.u32 %v2769, 7
    %v2771 = vsub.s32 %v2186, %v2770
    %v2772 = vrot.slane %v2023, %v2771
    %v2773 = vsel %vm2191, %v2772, %v2768
    %v2774 = vlaneseq
    %v2775 = vshrl.u32 %v2774, 7
    %v2776 = vsub.s32 %v2193, %v2775
    %v2777 = vrot.slane %v2025, %v2776
    %v2778 = vsel %vm2198, %v2777, %v2773
    %v2779 = vlaneseq
    %v2780 = vshrl.u32 %v2779, 7
    %v2781 = vsub.s32 %v2200, %v2780
    %v2782 = vrot.slane %v2027, %v2781
    %v2783 = vsel %vm2205, %v2782, %v2778
    %v2784 = vlaneseq
    %v2785 = vshrl.u32 %v2784, 7
    %v2786 = vsub.s32 %v2207, %v2785
    %v2787 = vrot.slane %v2029, %v2786
    %v2788 = vsel %vm2212, %v2787, %v2783
    %v2789 = vlaneseq
    %v2790 = vshrl.u32 %v2789, 7
    %v2791 = vsub.s32 %v2214, %v2790
    %v2792 = vrot.slane %v2031, %v2791
    %v2793 = vsel %vm2219, %v2792, %v2788
    %v2794 = vlaneseq
    %v2795 = vshrl.u32 %v2794, 7
    %v2796 = vsub.s32 %v2221, %v2795
    %v2797 = vrot.slane %v2033, %v2796
    %v2798 = vsel %vm2226, %v2797, %v2793
    %v2799 = vlaneseq
    %v2800 = vshrl.u32 %v2799, 7
    %v2801 = vsub.s32 %v2228, %v2800
    %v2802 = vrot.slane %v2035, %v2801
    %v2803 = vsel %vm2233, %v2802, %v2798
    %v2804 = vlaneseq
    %v2805 = vshrl.u32 %v2804, 7
    %v2806 = vsub.s32 %v2235, %v2805
    %v2807 = vrot.slane %v2037, %v2806
    %v2808 = vsel %vm2240, %v2807, %v2803
    %v2809 = vlaneseq
    %v2810 = vshrl.u32 %v2809, 7
    %v2811 = vsub.s32 %v2242, %v2810
    %v2812 = vrot.slane %v2039, %v2811
    %v2813 = vsel %vm2247, %v2812, %v2808
    %v2814 = vlaneseq
    %v2815 = vshrl.u32 %v2814, 7
    %v2816 = vsub.s32 %v2249, %v2815
    %v2817 = vrot.slane %v2041, %v2816
    %v2818 = vsel %vm2254, %v2817, %v2813
    %v2819 = vlaneseq
    %v2820 = vshrl.u32 %v2819, 7
    %v2821 = vsub.s32 %v2256, %v2820
    %v2822 = vrot.slane %v2043, %v2821
    %v2823 = vsel %vm2261, %v2822, %v2818
    %v2824 = vlaneseq
    %v2825 = vshrl.u32 %v2824, 7
    %v2826 = vsub.s32 %v2263, %v2825
    %v2827 = vrot.slane %v2045, %v2826
    %v2828 = vsel %vm2268, %v2827, %v2823
    %v2829 = vlaneseq
    %v2830 = vshrl.u32 %v2829, 7
    %v2831 = vsub.s32 %v2270, %v2830
    %v2832 = vrot.slane %v2047, %v2831
    %v2833 = vsel %vm2275, %v2832, %v2828
    %v2834 = vlaneseq
    %v2835 = vshrl.u32 %v2834, 7
    %v2836 = vsub.s32 %v2277, %v2835
    %v2837 = vrot.slane %v2049, %v2836
    %v2838 = vsel %vm2282, %v2837, %v2833
    %v2839 = vlaneseq
    %v2840 = vshrl.u32 %v2839, 7
    %v2841 = vsub.s32 %v2284, %v2840
    %v2842 = vrot.slane %v2051, %v2841
    %v2843 = vsel %vm2289, %v2842, %v2838
    %vm2844 = vcmask 1041409
    %v2845 = vsel %vm2844, %v2369, %v2290
    %vm2846 = vcmask 1042434
    %v2847 = vsel %vm2846, %v2448, %v2845
    %vm2848 = vcmask 1043459
    %v2849 = vsel %vm2848, %v2527, %v2847
    %vm2850 = vcmask 1044484
    %v2851 = vsel %vm2850, %v2606, %v2849
    %vm2852 = vcmask 1045509
    %v2853 = vsel %vm2852, %v2685, %v2851
    %vm2854 = vcmask 1046534
    %v2855 = vsel %vm2854, %v2764, %v2853
    %vm2856 = vcmask 1047559
    %v2857 = vsel %vm2856, %v2843, %v2855
    %2859 = vmax.xlane.f32.xlu0 %v2857
    %v2860 = vpop.xlane.xlu0 %2859
    %v2862 = vlaneseq
    %v2863 = vshrl.u32 %v2862, 7
    %v2864 = vsub.s32 0, %v2863
    %v2865 = vrot.slane %v2860, %v2864
    %v2866 = vlaneseq
    %v2867 = vshrl.u32 %v2866, 7
    %v2868 = vsub.s32 1, %v2867
    %v2869 = vrot.slane %v2860, %v2868
    %v2870 = vlaneseq
    %v2871 = vshrl.u32 %v2870, 7
    %v2872 = vsub.s32 2, %v2871
    %v2873 = vrot.slane %v2860, %v2872
    %v2874 = vlaneseq
    %v2875 = vshrl.u32 %v2874, 7
    %v2876 = vsub.s32 3, %v2875
    %v2877 = vrot.slane %v2860, %v2876
    %v2878 = vlaneseq
    %v2879 = vshrl.u32 %v2878, 7
    %v2880 = vsub.s32 4, %v2879
    %v2881 = vrot.slane %v2860, %v2880
    %v2882 = vlaneseq
    %v2883 = vshrl.u32 %v2882, 7
    %v2884 = vsub.s32 5, %v2883
    %v2885 = vrot.slane %v2860, %v2884
    %v2886 = vlaneseq
    %v2887 = vshrl.u32 %v2886, 7
    %v2888 = vsub.s32 6, %v2887
    %v2889 = vrot.slane %v2860, %v2888
    %v2890 = vlaneseq
    %v2891 = vshrl.u32 %v2890, 7
    %v2892 = vsub.s32 7, %v2891
    %v2893 = vrot.slane %v2860, %v2892
    %v2902 = vsub.f32 %v1797, %v2865
    %v2903 = vsub.f32 %v1799, %v2865
    %v2904 = vsub.f32 %v1801, %v2865
    %v2905 = vsub.f32 %v1803, %v2865
    %v2906 = vsub.f32 %v1805, %v2865
    %v2907 = vsub.f32 %v1807, %v2865
    %v2908 = vsub.f32 %v1809, %v2865
    %v2909 = vsub.f32 %v1811, %v2865
    %v2910 = vsub.f32 %v1813, %v2865
    %v2911 = vsub.f32 %v1815, %v2865
    %v2912 = vsub.f32 %v1817, %v2865
    %v2913 = vsub.f32 %v1819, %v2865
    %v2914 = vsub.f32 %v1821, %v2865
    %v2915 = vsub.f32 %v1823, %v2865
    %v2916 = vsub.f32 %v1825, %v2865
    %v2917 = vsub.f32 %v1827, %v2865
    %v2918 = vsub.f32 %v1829, %v2869
    %v2919 = vsub.f32 %v1831, %v2869
    %v2920 = vsub.f32 %v1833, %v2869
    %v2921 = vsub.f32 %v1835, %v2869
    %v2922 = vsub.f32 %v1837, %v2869
    %v2923 = vsub.f32 %v1839, %v2869
    %v2924 = vsub.f32 %v1841, %v2869
    %v2925 = vsub.f32 %v1843, %v2869
    %v2926 = vsub.f32 %v1845, %v2869
    %v2927 = vsub.f32 %v1847, %v2869
    %v2928 = vsub.f32 %v1849, %v2869
    %v2929 = vsub.f32 %v1851, %v2869
    %v2930 = vsub.f32 %v1853, %v2869
    %v2931 = vsub.f32 %v1855, %v2869
    %v2932 = vsub.f32 %v1857, %v2869
    %v2933 = vsub.f32 %v1859, %v2869
    %v2934 = vsub.f32 %v1861, %v2873
    %v2935 = vsub.f32 %v1863, %v2873
    %v2936 = vsub.f32 %v1865, %v2873
    %v2937 = vsub.f32 %v1867, %v2873
    %v2938 = vsub.f32 %v1869, %v2873
    %v2939 = vsub.f32 %v1871, %v2873
    %v2940 = vsub.f32 %v1873, %v2873
    %v2941 = vsub.f32 %v1875, %v2873
    %v2942 = vsub.f32 %v1877, %v2873
    %v2943 = vsub.f32 %v1879, %v2873
    %v2944 = vsub.f32 %v1881, %v2873
    %v2945 = vsub.f32 %v1883, %v2873
    %v2946 = vsub.f32 %v1885, %v2873
    %v2947 = vsub.f32 %v1887, %v2873
    %v2948 = vsub.f32 %v1889, %v2873
    %v2949 = vsub.f32 %v1891, %v2873
    %v2950 = vsub.f32 %v1893, %v2877
    %v2951 = vsub.f32 %v1895, %v2877
    %v2952 = vsub.f32 %v1897, %v2877
    %v2953 = vsub.f32 %v1899, %v2877
    %v2954 = vsub.f32 %v1901, %v2877
    %v2955 = vsub.f32 %v1903, %v2877
    %v2956 = vsub.f32 %v1905, %v2877
    %v2957 = vsub.f32 %v1907, %v2877
    %v2958 = vsub.f32 %v1909, %v2877
    %v2959 = vsub.f32 %v1911, %v2877
    %v2960 = vsub.f32 %v1913, %v2877
    %v2961 = vsub.f32 %v1915, %v2877
    %v2962 = vsub.f32 %v1917, %v2877
    %v2963 = vsub.f32 %v1919, %v2877
    %v2964 = vsub.f32 %v1921, %v2877
    %v2965 = vsub.f32 %v1923, %v2877
    %v2966 = vsub.f32 %v1925, %v2881
    %v2967 = vsub.f32 %v1927, %v2881
    %v2968 = vsub.f32 %v1929, %v2881
    %v2969 = vsub.f32 %v1931, %v2881
    %v2970 = vsub.f32 %v1933, %v2881
    %v2971 = vsub.f32 %v1935, %v2881
    %v2972 = vsub.f32 %v1937, %v2881
    %v2973 = vsub.f32 %v1939, %v2881
    %v2974 = vsub.f32 %v1941, %v2881
    %v2975 = vsub.f32 %v1943, %v2881
    %v2976 = vsub.f32 %v1945, %v2881
    %v2977 = vsub.f32 %v1947, %v2881
    %v2978 = vsub.f32 %v1949, %v2881
    %v2979 = vsub.f32 %v1951, %v2881
    %v2980 = vsub.f32 %v1953, %v2881
    %v2981 = vsub.f32 %v1955, %v2881
    %v2982 = vsub.f32 %v1957, %v2885
    %v2983 = vsub.f32 %v1959, %v2885
    %v2984 = vsub.f32 %v1961, %v2885
    %v2985 = vsub.f32 %v1963, %v2885
    %v2986 = vsub.f32 %v1965, %v2885
    %v2987 = vsub.f32 %v1967, %v2885
    %v2988 = vsub.f32 %v1969, %v2885
    %v2989 = vsub.f32 %v1971, %v2885
    %v2990 = vsub.f32 %v1973, %v2885
    %v2991 = vsub.f32 %v1975, %v2885
    %v2992 = vsub.f32 %v1977, %v2885
    %v2993 = vsub.f32 %v1979, %v2885
    %v2994 = vsub.f32 %v1981, %v2885
    %v2995 = vsub.f32 %v1983, %v2885
    %v2996 = vsub.f32 %v1985, %v2885
    %v2997 = vsub.f32 %v1987, %v2885
    %v2998 = vsub.f32 %v1989, %v2889
    %v2999 = vsub.f32 %v1991, %v2889
    %v3000 = vsub.f32 %v1993, %v2889
    %v3001 = vsub.f32 %v1995, %v2889
    %v3002 = vsub.f32 %v1997, %v2889
    %v3003 = vsub.f32 %v1999, %v2889
    %v3004 = vsub.f32 %v2001, %v2889
    %v3005 = vsub.f32 %v2003, %v2889
    %v3006 = vsub.f32 %v2005, %v2889
    %v3007 = vsub.f32 %v2007, %v2889
    %v3008 = vsub.f32 %v2009, %v2889
    %v3009 = vsub.f32 %v2011, %v2889
    %v3010 = vsub.f32 %v2013, %v2889
    %v3011 = vsub.f32 %v2015, %v2889
    %v3012 = vsub.f32 %v2017, %v2889
    %v3013 = vsub.f32 %v2019, %v2889
    %v3014 = vsub.f32 %v2021, %v2893
    %v3015 = vsub.f32 %v2023, %v2893
    %v3016 = vsub.f32 %v2025, %v2893
    %v3017 = vsub.f32 %v2027, %v2893
    %v3018 = vsub.f32 %v2029, %v2893
    %v3019 = vsub.f32 %v2031, %v2893
    %v3020 = vsub.f32 %v2033, %v2893
    %v3021 = vsub.f32 %v2035, %v2893
    %v3022 = vsub.f32 %v2037, %v2893
    %v3023 = vsub.f32 %v2039, %v2893
    %v3024 = vsub.f32 %v2041, %v2893
    %v3025 = vsub.f32 %v2043, %v2893
    %v3026 = vsub.f32 %v2045, %v2893
    %v3027 = vsub.f32 %v2047, %v2893
    %v3028 = vsub.f32 %v2049, %v2893
    %v3029 = vsub.f32 %v2051, %v2893
    %v3030 = vmul.f32 %v2902, 1.442695
    %v3031 = vpow.pop %v3030
    %v3032 = vmul.f32 %v2903, 1.442695
    %v3033 = vpow.pop %v3032
    %v3034 = vmul.f32 %v2904, 1.442695
    %v3035 = vpow.pop %v3034
    %v3036 = vmul.f32 %v2905, 1.442695
    %v3037 = vpow.pop %v3036
    %v3038 = vmul.f32 %v2906, 1.442695
    %v3039 = vpow.pop %v3038
    %v3040 = vmul.f32 %v2907, 1.442695
    %v3041 = vpow.pop %v3040
    %v3042 = vmul.f32 %v2908, 1.442695
    %v3043 = vpow.pop %v3042
    %v3044 = vmul.f32 %v2909, 1.442695
    %v3045 = vpow.pop %v3044
    %v3046 = vmul.f32 %v2910, 1.442695
    %v3047 = vpow.pop %v3046
    %v3048 = vmul.f32 %v2911, 1.442695
    %v3049 = vpow.pop %v3048
    %v3050 = vmul.f32 %v2912, 1.442695
    %v3051 = vpow.pop %v3050
    %v3052 = vmul.f32 %v2913, 1.442695
    %v3053 = vpow.pop %v3052
    %v3054 = vmul.f32 %v2914, 1.442695
    %v3055 = vpow.pop %v3054
    %v3056 = vmul.f32 %v2915, 1.442695
    %v3057 = vpow.pop %v3056
    %v3058 = vmul.f32 %v2916, 1.442695
    %v3059 = vpow.pop %v3058
    %v3060 = vmul.f32 %v2917, 1.442695
    %v3061 = vpow.pop %v3060
    %v3062 = vmul.f32 %v2918, 1.442695
    %v3063 = vpow.pop %v3062
    %v3064 = vmul.f32 %v2919, 1.442695
    %v3065 = vpow.pop %v3064
    %v3066 = vmul.f32 %v2920, 1.442695
    %v3067 = vpow.pop %v3066
    %v3068 = vmul.f32 %v2921, 1.442695
    %v3069 = vpow.pop %v3068
    %v3070 = vmul.f32 %v2922, 1.442695
    %v3071 = vpow.pop %v3070
    %v3072 = vmul.f32 %v2923, 1.442695
    %v3073 = vpow.pop %v3072
    %v3074 = vmul.f32 %v2924, 1.442695
    %v3075 = vpow.pop %v3074
    %v3076 = vmul.f32 %v2925, 1.442695
    %v3077 = vpow.pop %v3076
    %v3078 = vmul.f32 %v2926, 1.442695
    %v3079 = vpow.pop %v3078
    %v3080 = vmul.f32 %v2927, 1.442695
    %v3081 = vpow.pop %v3080
    %v3082 = vmul.f32 %v2928, 1.442695
    %v3083 = vpow.pop %v3082
    %v3084 = vmul.f32 %v2929, 1.442695
    %v3085 = vpow.pop %v3084
    %v3086 = vmul.f32 %v2930, 1.442695
    %v3087 = vpow.pop %v3086
    %v3088 = vmul.f32 %v2931, 1.442695
    %v3089 = vpow.pop %v3088
    %v3090 = vmul.f32 %v2932, 1.442695
    %v3091 = vpow.pop %v3090
    %v3092 = vmul.f32 %v2933, 1.442695
    %v3093 = vpow.pop %v3092
    %v3094 = vmul.f32 %v2934, 1.442695
    %v3095 = vpow.pop %v3094
    %v3096 = vmul.f32 %v2935, 1.442695
    %v3097 = vpow.pop %v3096
    %v3098 = vmul.f32 %v2936, 1.442695
    %v3099 = vpow.pop %v3098
    %v3100 = vmul.f32 %v2937, 1.442695
    %v3101 = vpow.pop %v3100
    %v3102 = vmul.f32 %v2938, 1.442695
    %v3103 = vpow.pop %v3102
    %v3104 = vmul.f32 %v2939, 1.442695
    %v3105 = vpow.pop %v3104
    %v3106 = vmul.f32 %v2940, 1.442695
    %v3107 = vpow.pop %v3106
    %v3108 = vmul.f32 %v2941, 1.442695
    %v3109 = vpow.pop %v3108
    %v3110 = vmul.f32 %v2942, 1.442695
    %v3111 = vpow.pop %v3110
    %v3112 = vmul.f32 %v2943, 1.442695
    %v3113 = vpow.pop %v3112
    %v3114 = vmul.f32 %v2944, 1.442695
    %v3115 = vpow.pop %v3114
    %v3116 = vmul.f32 %v2945, 1.442695
    %v3117 = vpow.pop %v3116
    %v3118 = vmul.f32 %v2946, 1.442695
    %v3119 = vpow.pop %v3118
    %v3120 = vmul.f32 %v2947, 1.442695
    %v3121 = vpow.pop %v3120
    %v3122 = vmul.f32 %v2948, 1.442695
    %v3123 = vpow.pop %v3122
    %v3124 = vmul.f32 %v2949, 1.442695
    %v3125 = vpow.pop %v3124
    %v3126 = vmul.f32 %v2950, 1.442695
    %v3127 = vpow.pop %v3126
    %v3128 = vmul.f32 %v2951, 1.442695
    %v3129 = vpow.pop %v3128
    %v3130 = vmul.f32 %v2952, 1.442695
    %v3131 = vpow.pop %v3130
    %v3132 = vmul.f32 %v2953, 1.442695
    %v3133 = vpow.pop %v3132
    %v3134 = vmul.f32 %v2954, 1.442695
    %v3135 = vpow.pop %v3134
    %v3136 = vmul.f32 %v2955, 1.442695
    %v3137 = vpow.pop %v3136
    %v3138 = vmul.f32 %v2956, 1.442695
    %v3139 = vpow.pop %v3138
    %v3140 = vmul.f32 %v2957, 1.442695
    %v3141 = vpow.pop %v3140
    %v3142 = vmul.f32 %v2958, 1.442695
    %v3143 = vpow.pop %v3142
    %v3144 = vmul.f32 %v2959, 1.442695
    %v3145 = vpow.pop %v3144
    %v3146 = vmul.f32 %v2960, 1.442695
    %v3147 = vpow.pop %v3146
    %v3148 = vmul.f32 %v2961, 1.442695
    %v3149 = vpow.pop %v3148
    %v3150 = vmul.f32 %v2962, 1.442695
    %v3151 = vpow.pop %v3150
    %v3152 = vmul.f32 %v2963, 1.442695
    %v3153 = vpow.pop %v3152
    %v3154 = vmul.f32 %v2964, 1.442695
    %v3155 = vpow.pop %v3154
    %v3156 = vmul.f32 %v2965, 1.442695
    %v3157 = vpow.pop %v3156
    %v3158 = vmul.f32 %v2966, 1.442695
    %v3159 = vpow.pop %v3158
    %v3160 = vmul.f32 %v2967, 1.442695
    %v3161 = vpow.pop %v3160
    %v3162 = vmul.f32 %v2968, 1.442695
    %v3163 = vpow.pop %v3162
    %v3164 = vmul.f32 %v2969, 1.442695
    %v3165 = vpow.pop %v3164
    %v3166 = vmul.f32 %v2970, 1.442695
    %v3167 = vpow.pop %v3166
    %v3168 = vmul.f32 %v2971, 1.442695
    %v3169 = vpow.pop %v3168
    %v3170 = vmul.f32 %v2972, 1.442695
    %v3171 = vpow.pop %v3170
    %v3172 = vmul.f32 %v2973, 1.442695
    %v3173 = vpow.pop %v3172
    %v3174 = vmul.f32 %v2974, 1.442695
    %v3175 = vpow.pop %v3174
    %v3176 = vmul.f32 %v2975, 1.442695
    %v3177 = vpow.pop %v3176
    %v3178 = vmul.f32 %v2976, 1.442695
    %v3179 = vpow.pop %v3178
    %v3180 = vmul.f32 %v2977, 1.442695
    %v3181 = vpow.pop %v3180
    %v3182 = vmul.f32 %v2978, 1.442695
    %v3183 = vpow.pop %v3182
    %v3184 = vmul.f32 %v2979, 1.442695
    %v3185 = vpow.pop %v3184
    %v3186 = vmul.f32 %v2980, 1.442695
    %v3187 = vpow.pop %v3186
    %v3188 = vmul.f32 %v2981, 1.442695
    %v3189 = vpow.pop %v3188
    %v3190 = vmul.f32 %v2982, 1.442695
    %v3191 = vpow.pop %v3190
    %v3192 = vmul.f32 %v2983, 1.442695
    %v3193 = vpow.pop %v3192
    %v3194 = vmul.f32 %v2984, 1.442695
    %v3195 = vpow.pop %v3194
    %v3196 = vmul.f32 %v2985, 1.442695
    %v3197 = vpow.pop %v3196
    %v3198 = vmul.f32 %v2986, 1.442695
    %v3199 = vpow.pop %v3198
    %v3200 = vmul.f32 %v2987, 1.442695
    %v3201 = vpow.pop %v3200
    %v3202 = vmul.f32 %v2988, 1.442695
    %v3203 = vpow.pop %v3202
    %v3204 = vmul.f32 %v2989, 1.442695
    %v3205 = vpow.pop %v3204
    %v3206 = vmul.f32 %v2990, 1.442695
    %v3207 = vpow.pop %v3206
    %v3208 = vmul.f32 %v2991, 1.442695
    %v3209 = vpow.pop %v3208
    %v3210 = vmul.f32 %v2992, 1.442695
    %v3211 = vpow.pop %v3210
    %v3212 = vmul.f32 %v2993, 1.442695
    %v3213 = vpow.pop %v3212
    %v3214 = vmul.f32 %v2994, 1.442695
    %v3215 = vpow.pop %v3214
    %v3216 = vmul.f32 %v2995, 1.442695
    %v3217 = vpow.pop %v3216
    %v3218 = vmul.f32 %v2996, 1.442695
    %v3219 = vpow.pop %v3218
    %v3220 = vmul.f32 %v2997, 1.442695
    %v3221 = vpow.pop %v3220
    %v3222 = vmul.f32 %v2998, 1.442695
    %v3223 = vpow.pop %v3222
    %v3224 = vmul.f32 %v2999, 1.442695
    %v3225 = vpow.pop %v3224
    %v3226 = vmul.f32 %v3000, 1.442695
    %v3227 = vpow.pop %v3226
    %v3228 = vmul.f32 %v3001, 1.442695
    %v3229 = vpow.pop %v3228
    %v3230 = vmul.f32 %v3002, 1.442695
    %v3231 = vpow.pop %v3230
    %v3232 = vmul.f32 %v3003, 1.442695
    %v3233 = vpow.pop %v3232
    %v3234 = vmul.f32 %v3004, 1.442695
    %v3235 = vpow.pop %v3234
    %v3236 = vmul.f32 %v3005, 1.442695
    %v3237 = vpow.pop %v3236
    %v3238 = vmul.f32 %v3006, 1.442695
    %v3239 = vpow.pop %v3238
    %v3240 = vmul.f32 %v3007, 1.442695
    %v3241 = vpow.pop %v3240
    %v3242 = vmul.f32 %v3008, 1.442695
    %v3243 = vpow.pop %v3242
    %v3244 = vmul.f32 %v3009, 1.442695
    %v3245 = vpow.pop %v3244
    %v3246 = vmul.f32 %v3010, 1.442695
    %v3247 = vpow.pop %v3246
    %v3248 = vmul.f32 %v3011, 1.442695
    %v3249 = vpow.pop %v3248
    %v3250 = vmul.f32 %v3012, 1.442695
    %v3251 = vpow.pop %v3250
    %v3252 = vmul.f32 %v3013, 1.442695
    %v3253 = vpow.pop %v3252
    %v3254 = vmul.f32 %v3014, 1.442695
    %v3255 = vpow.pop %v3254
    %v3256 = vmul.f32 %v3015, 1.442695
    %v3257 = vpow.pop %v3256
    %v3258 = vmul.f32 %v3016, 1.442695
    %v3259 = vpow.pop %v3258
    %v3260 = vmul.f32 %v3017, 1.442695
    %v3261 = vpow.pop %v3260
    %v3262 = vmul.f32 %v3018, 1.442695
    %v3263 = vpow.pop %v3262
    %v3264 = vmul.f32 %v3019, 1.442695
    %v3265 = vpow.pop %v3264
    %v3266 = vmul.f32 %v3020, 1.442695
    %v3267 = vpow.pop %v3266
    %v3268 = vmul.f32 %v3021, 1.442695
    %v3269 = vpow.pop %v3268
    %v3270 = vmul.f32 %v3022, 1.442695
    %v3271 = vpow.pop %v3270
    %v3272 = vmul.f32 %v3023, 1.442695
    %v3273 = vpow.pop %v3272
    %v3274 = vmul.f32 %v3024, 1.442695
    %v3275 = vpow.pop %v3274
    %v3276 = vmul.f32 %v3025, 1.442695
    %v3277 = vpow.pop %v3276
    %v3278 = vmul.f32 %v3026, 1.442695
    %v3279 = vpow.pop %v3278
    %v3280 = vmul.f32 %v3027, 1.442695
    %v3281 = vpow.pop %v3280
    %v3282 = vmul.f32 %v3028, 1.442695
    %v3283 = vpow.pop %v3282
    %v3284 = vmul.f32 %v3029, 1.442695
    %v3285 = vpow.pop %v3284
    %3414 = vset.pattern.permute.xlu0 0
    %3415 = vperm.xlu0 %3414, %v3031
    %v3416 = vpop.permute.xlu0 %3415
    %3417 = vset.pattern.permute.xlu0 0
    %3418 = vperm.xlu0 %3417, %v3033
    %v3419 = vpop.permute.xlu0 %3418
    %3420 = vset.pattern.permute.xlu0 0
    %3421 = vperm.xlu0 %3420, %v3035
    %v3422 = vpop.permute.xlu0 %3421
    %3423 = vset.pattern.permute.xlu0 0
    %3424 = vperm.xlu0 %3423, %v3037
    %v3425 = vpop.permute.xlu0 %3424
    %3426 = vset.pattern.permute.xlu0 0
    %3427 = vperm.xlu0 %3426, %v3039
    %v3428 = vpop.permute.xlu0 %3427
    %3429 = vset.pattern.permute.xlu0 0
    %3430 = vperm.xlu0 %3429, %v3041
    %v3431 = vpop.permute.xlu0 %3430
    %3432 = vset.pattern.permute.xlu0 0
    %3433 = vperm.xlu0 %3432, %v3043
    %v3434 = vpop.permute.xlu0 %3433
    %3435 = vset.pattern.permute.xlu0 0
    %3436 = vperm.xlu0 %3435, %v3045
    %v3437 = vpop.permute.xlu0 %3436
    %3438 = vset.pattern.permute.xlu0 0
    %3439 = vperm.xlu0 %3438, %v3047
    %v3440 = vpop.permute.xlu0 %3439
    %3441 = vset.pattern.permute.xlu0 0
    %3442 = vperm.xlu0 %3441, %v3049
    %v3443 = vpop.permute.xlu0 %3442
    %3444 = vset.pattern.permute.xlu0 0
    %3445 = vperm.xlu0 %3444, %v3051
    %v3446 = vpop.permute.xlu0 %3445
    %3447 = vset.pattern.permute.xlu0 0
    %3448 = vperm.xlu0 %3447, %v3053
    %v3449 = vpop.permute.xlu0 %3448
    %3450 = vset.pattern.permute.xlu0 0
    %3451 = vperm.xlu0 %3450, %v3055
    %v3452 = vpop.permute.xlu0 %3451
    %3453 = vset.pattern.permute.xlu0 0
    %3454 = vperm.xlu0 %3453, %v3057
    %v3455 = vpop.permute.xlu0 %3454
    %3456 = vset.pattern.permute.xlu0 0
    %3457 = vperm.xlu0 %3456, %v3059
    %v3458 = vpop.permute.xlu0 %3457
    %3459 = vset.pattern.permute.xlu0 0
    %3460 = vperm.xlu0 %3459, %v3061
    %v3461 = vpop.permute.xlu0 %3460
    %3462 = vset.pattern.permute.xlu0 0
    %3463 = vperm.xlu0 %3462, %v3063
    %v3464 = vpop.permute.xlu0 %3463
    %3465 = vset.pattern.permute.xlu0 0
    %3466 = vperm.xlu0 %3465, %v3065
    %v3467 = vpop.permute.xlu0 %3466
    %3468 = vset.pattern.permute.xlu0 0
    %3469 = vperm.xlu0 %3468, %v3067
    %v3470 = vpop.permute.xlu0 %3469
    %3471 = vset.pattern.permute.xlu0 0
    %3472 = vperm.xlu0 %3471, %v3069
    %v3473 = vpop.permute.xlu0 %3472
    %3474 = vset.pattern.permute.xlu0 0
    %3475 = vperm.xlu0 %3474, %v3071
    %v3476 = vpop.permute.xlu0 %3475
    %3477 = vset.pattern.permute.xlu0 0
    %3478 = vperm.xlu0 %3477, %v3073
    %v3479 = vpop.permute.xlu0 %3478
    %3480 = vset.pattern.permute.xlu0 0
    %3481 = vperm.xlu0 %3480, %v3075
    %v3482 = vpop.permute.xlu0 %3481
    %3483 = vset.pattern.permute.xlu0 0
    %3484 = vperm.xlu0 %3483, %v3077
    %v3485 = vpop.permute.xlu0 %3484
    %3486 = vset.pattern.permute.xlu0 0
    %3487 = vperm.xlu0 %3486, %v3079
    %v3488 = vpop.permute.xlu0 %3487
    %3489 = vset.pattern.permute.xlu0 0
    %3490 = vperm.xlu0 %3489, %v3081
    %v3491 = vpop.permute.xlu0 %3490
    %3492 = vset.pattern.permute.xlu0 0
    %3493 = vperm.xlu0 %3492, %v3083
    %v3494 = vpop.permute.xlu0 %3493
    %3495 = vset.pattern.permute.xlu0 0
    %3496 = vperm.xlu0 %3495, %v3085
    %v3497 = vpop.permute.xlu0 %3496
    %3498 = vset.pattern.permute.xlu0 0
    %3499 = vperm.xlu0 %3498, %v3087
    %v3500 = vpop.permute.xlu0 %3499
    %3501 = vset.pattern.permute.xlu0 0
    %3502 = vperm.xlu0 %3501, %v3089
    %v3503 = vpop.permute.xlu0 %3502
    %3504 = vset.pattern.permute.xlu0 0
    %3505 = vperm.xlu0 %3504, %v3091
    %v3506 = vpop.permute.xlu0 %3505
    %3507 = vset.pattern.permute.xlu0 0
    %3508 = vperm.xlu0 %3507, %v3093
    %v3509 = vpop.permute.xlu0 %3508
    %3510 = vset.pattern.permute.xlu0 0
    %3511 = vperm.xlu0 %3510, %v3095
    %v3512 = vpop.permute.xlu0 %3511
    %3513 = vset.pattern.permute.xlu0 0
    %3514 = vperm.xlu0 %3513, %v3097
    %v3515 = vpop.permute.xlu0 %3514
    %3516 = vset.pattern.permute.xlu0 0
    %3517 = vperm.xlu0 %3516, %v3099
    %v3518 = vpop.permute.xlu0 %3517
    %3519 = vset.pattern.permute.xlu0 0
    %3520 = vperm.xlu0 %3519, %v3101
    %v3521 = vpop.permute.xlu0 %3520
    %3522 = vset.pattern.permute.xlu0 0
    %3523 = vperm.xlu0 %3522, %v3103
    %v3524 = vpop.permute.xlu0 %3523
    %3525 = vset.pattern.permute.xlu0 0
    %3526 = vperm.xlu0 %3525, %v3105
    %v3527 = vpop.permute.xlu0 %3526
    %3528 = vset.pattern.permute.xlu0 0
    %3529 = vperm.xlu0 %3528, %v3107
    %v3530 = vpop.permute.xlu0 %3529
    %3531 = vset.pattern.permute.xlu0 0
    %3532 = vperm.xlu0 %3531, %v3109
    %v3533 = vpop.permute.xlu0 %3532
    %3534 = vset.pattern.permute.xlu0 0
    %3535 = vperm.xlu0 %3534, %v3111
    %v3536 = vpop.permute.xlu0 %3535
    %3537 = vset.pattern.permute.xlu0 0
    %3538 = vperm.xlu0 %3537, %v3113
    %v3539 = vpop.permute.xlu0 %3538
    %3540 = vset.pattern.permute.xlu0 0
    %3541 = vperm.xlu0 %3540, %v3115
    %v3542 = vpop.permute.xlu0 %3541
    %3543 = vset.pattern.permute.xlu0 0
    %3544 = vperm.xlu0 %3543, %v3117
    %v3545 = vpop.permute.xlu0 %3544
    %3546 = vset.pattern.permute.xlu0 0
    %3547 = vperm.xlu0 %3546, %v3119
    %v3548 = vpop.permute.xlu0 %3547
    %3549 = vset.pattern.permute.xlu0 0
    %3550 = vperm.xlu0 %3549, %v3121
    %v3551 = vpop.permute.xlu0 %3550
    %3552 = vset.pattern.permute.xlu0 0
    %3553 = vperm.xlu0 %3552, %v3123
    %v3554 = vpop.permute.xlu0 %3553
    %3555 = vset.pattern.permute.xlu0 0
    %3556 = vperm.xlu0 %3555, %v3125
    %v3557 = vpop.permute.xlu0 %3556
    %3558 = vset.pattern.permute.xlu0 0
    %3559 = vperm.xlu0 %3558, %v3127
    %v3560 = vpop.permute.xlu0 %3559
    %3561 = vset.pattern.permute.xlu0 0
    %3562 = vperm.xlu0 %3561, %v3129
    %v3563 = vpop.permute.xlu0 %3562
    %3564 = vset.pattern.permute.xlu0 0
    %3565 = vperm.xlu0 %3564, %v3131
    %v3566 = vpop.permute.xlu0 %3565
    %3567 = vset.pattern.permute.xlu0 0
    %3568 = vperm.xlu0 %3567, %v3133
    %v3569 = vpop.permute.xlu0 %3568
    %3570 = vset.pattern.permute.xlu0 0
    %3571 = vperm.xlu0 %3570, %v3135
    %v3572 = vpop.permute.xlu0 %3571
    %3573 = vset.pattern.permute.xlu0 0
    %3574 = vperm.xlu0 %3573, %v3137
    %v3575 = vpop.permute.xlu0 %3574
    %3576 = vset.pattern.permute.xlu0 0
    %3577 = vperm.xlu0 %3576, %v3139
    %v3578 = vpop.permute.xlu0 %3577
    %3579 = vset.pattern.permute.xlu0 0
    %3580 = vperm.xlu0 %3579, %v3141
    %v3581 = vpop.permute.xlu0 %3580
    %3582 = vset.pattern.permute.xlu0 0
    %3583 = vperm.xlu0 %3582, %v3143
    %v3584 = vpop.permute.xlu0 %3583
    %3585 = vset.pattern.permute.xlu0 0
    %3586 = vperm.xlu0 %3585, %v3145
    %v3587 = vpop.permute.xlu0 %3586
    %3588 = vset.pattern.permute.xlu0 0
    %3589 = vperm.xlu0 %3588, %v3147
    %v3590 = vpop.permute.xlu0 %3589
    %3591 = vset.pattern.permute.xlu0 0
    %3592 = vperm.xlu0 %3591, %v3149
    %v3593 = vpop.permute.xlu0 %3592
    %3594 = vset.pattern.permute.xlu0 0
    %3595 = vperm.xlu0 %3594, %v3151
    %v3596 = vpop.permute.xlu0 %3595
    %3597 = vset.pattern.permute.xlu0 0
    %3598 = vperm.xlu0 %3597, %v3153
    %v3599 = vpop.permute.xlu0 %3598
    %3600 = vset.pattern.permute.xlu0 0
    %3601 = vperm.xlu0 %3600, %v3155
    %v3602 = vpop.permute.xlu0 %3601
    %3603 = vset.pattern.permute.xlu0 0
    %3604 = vperm.xlu0 %3603, %v3157
    %v3605 = vpop.permute.xlu0 %3604
    %3606 = vset.pattern.permute.xlu0 0
    %3607 = vperm.xlu0 %3606, %v3159
    %v3608 = vpop.permute.xlu0 %3607
    %3609 = vset.pattern.permute.xlu0 0
    %3610 = vperm.xlu0 %3609, %v3161
    %v3611 = vpop.permute.xlu0 %3610
    %3612 = vset.pattern.permute.xlu0 0
    %3613 = vperm.xlu0 %3612, %v3163
    %v3614 = vpop.permute.xlu0 %3613
    %3615 = vset.pattern.permute.xlu0 0
    %3616 = vperm.xlu0 %3615, %v3165
    %v3617 = vpop.permute.xlu0 %3616
    %3618 = vset.pattern.permute.xlu0 0
    %3619 = vperm.xlu0 %3618, %v3167
    %v3620 = vpop.permute.xlu0 %3619
    %3621 = vset.pattern.permute.xlu0 0
    %3622 = vperm.xlu0 %3621, %v3169
    %v3623 = vpop.permute.xlu0 %3622
    %3624 = vset.pattern.permute.xlu0 0
    %3625 = vperm.xlu0 %3624, %v3171
    %v3626 = vpop.permute.xlu0 %3625
    %3627 = vset.pattern.permute.xlu0 0
    %3628 = vperm.xlu0 %3627, %v3173
    %v3629 = vpop.permute.xlu0 %3628
    %3630 = vset.pattern.permute.xlu0 0
    %3631 = vperm.xlu0 %3630, %v3175
    %v3632 = vpop.permute.xlu0 %3631
    %3633 = vset.pattern.permute.xlu0 0
    %3634 = vperm.xlu0 %3633, %v3177
    %v3635 = vpop.permute.xlu0 %3634
    %3636 = vset.pattern.permute.xlu0 0
    %3637 = vperm.xlu0 %3636, %v3179
    %v3638 = vpop.permute.xlu0 %3637
    %3639 = vset.pattern.permute.xlu0 0
    %3640 = vperm.xlu0 %3639, %v3181
    %v3641 = vpop.permute.xlu0 %3640
    %3642 = vset.pattern.permute.xlu0 0
    %3643 = vperm.xlu0 %3642, %v3183
    %v3644 = vpop.permute.xlu0 %3643
    %3645 = vset.pattern.permute.xlu0 0
    %3646 = vperm.xlu0 %3645, %v3185
    %v3647 = vpop.permute.xlu0 %3646
    %3648 = vset.pattern.permute.xlu0 0
    %3649 = vperm.xlu0 %3648, %v3187
    %v3650 = vpop.permute.xlu0 %3649
    %3651 = vset.pattern.permute.xlu0 0
    %3652 = vperm.xlu0 %3651, %v3189
    %v3653 = vpop.permute.xlu0 %3652
    %3654 = vset.pattern.permute.xlu0 0
    %3655 = vperm.xlu0 %3654, %v3191
    %v3656 = vpop.permute.xlu0 %3655
    %3657 = vset.pattern.permute.xlu0 0
    %3658 = vperm.xlu0 %3657, %v3193
    %v3659 = vpop.permute.xlu0 %3658
    %3660 = vset.pattern.permute.xlu0 0
    %3661 = vperm.xlu0 %3660, %v3195
    %v3662 = vpop.permute.xlu0 %3661
    %3663 = vset.pattern.permute.xlu0 0
    %3664 = vperm.xlu0 %3663, %v3197
    %v3665 = vpop.permute.xlu0 %3664
    %3666 = vset.pattern.permute.xlu0 0
    %3667 = vperm.xlu0 %3666, %v3199
    %v3668 = vpop.permute.xlu0 %3667
    %3669 = vset.pattern.permute.xlu0 0
    %3670 = vperm.xlu0 %3669, %v3201
    %v3671 = vpop.permute.xlu0 %3670
    %3672 = vset.pattern.permute.xlu0 0
    %3673 = vperm.xlu0 %3672, %v3203
    %v3674 = vpop.permute.xlu0 %3673
    %3675 = vset.pattern.permute.xlu0 0
    %3676 = vperm.xlu0 %3675, %v3205
    %v3677 = vpop.permute.xlu0 %3676
    %3678 = vset.pattern.permute.xlu0 0
    %3679 = vperm.xlu0 %3678, %v3207
    %v3680 = vpop.permute.xlu0 %3679
    %3681 = vset.pattern.permute.xlu0 0
    %3682 = vperm.xlu0 %3681, %v3209
    %v3683 = vpop.permute.xlu0 %3682
    %3684 = vset.pattern.permute.xlu0 0
    %3685 = vperm.xlu0 %3684, %v3211
    %v3686 = vpop.permute.xlu0 %3685
    %3687 = vset.pattern.permute.xlu0 0
    %3688 = vperm.xlu0 %3687, %v3213
    %v3689 = vpop.permute.xlu0 %3688
    %3690 = vset.pattern.permute.xlu0 0
    %3691 = vperm.xlu0 %3690, %v3215
    %v3692 = vpop.permute.xlu0 %3691
    %3693 = vset.pattern.permute.xlu0 0
    %3694 = vperm.xlu0 %3693, %v3217
    %v3695 = vpop.permute.xlu0 %3694
    %3696 = vset.pattern.permute.xlu0 0
    %3697 = vperm.xlu0 %3696, %v3219
    %v3698 = vpop.permute.xlu0 %3697
    %3699 = vset.pattern.permute.xlu0 0
    %3700 = vperm.xlu0 %3699, %v3221
    %v3701 = vpop.permute.xlu0 %3700
    %3702 = vset.pattern.permute.xlu0 0
    %3703 = vperm.xlu0 %3702, %v3223
    %v3704 = vpop.permute.xlu0 %3703
    %3705 = vset.pattern.permute.xlu0 0
    %3706 = vperm.xlu0 %3705, %v3225
    %v3707 = vpop.permute.xlu0 %3706
    %3708 = vset.pattern.permute.xlu0 0
    %3709 = vperm.xlu0 %3708, %v3227
    %v3710 = vpop.permute.xlu0 %3709
    %3711 = vset.pattern.permute.xlu0 0
    %3712 = vperm.xlu0 %3711, %v3229
    %v3713 = vpop.permute.xlu0 %3712
    %3714 = vset.pattern.permute.xlu0 0
    %3715 = vperm.xlu0 %3714, %v3231
    %v3716 = vpop.permute.xlu0 %3715
    %3717 = vset.pattern.permute.xlu0 0
    %3718 = vperm.xlu0 %3717, %v3233
    %v3719 = vpop.permute.xlu0 %3718
    %3720 = vset.pattern.permute.xlu0 0
    %3721 = vperm.xlu0 %3720, %v3235
    %v3722 = vpop.permute.xlu0 %3721
    %3723 = vset.pattern.permute.xlu0 0
    %3724 = vperm.xlu0 %3723, %v3237
    %v3725 = vpop.permute.xlu0 %3724
    %3726 = vset.pattern.permute.xlu0 0
    %3727 = vperm.xlu0 %3726, %v3239
    %v3728 = vpop.permute.xlu0 %3727
    %3729 = vset.pattern.permute.xlu0 0
    %3730 = vperm.xlu0 %3729, %v3241
    %v3731 = vpop.permute.xlu0 %3730
    %3732 = vset.pattern.permute.xlu0 0
    %3733 = vperm.xlu0 %3732, %v3243
    %v3734 = vpop.permute.xlu0 %3733
    %3735 = vset.pattern.permute.xlu0 0
    %3736 = vperm.xlu0 %3735, %v3245
    %v3737 = vpop.permute.xlu0 %3736
    %3738 = vset.pattern.permute.xlu0 0
    %3739 = vperm.xlu0 %3738, %v3247
    %v3740 = vpop.permute.xlu0 %3739
    %3741 = vset.pattern.permute.xlu0 0
    %3742 = vperm.xlu0 %3741, %v3249
    %v3743 = vpop.permute.xlu0 %3742
    %3744 = vset.pattern.permute.xlu0 0
    %3745 = vperm.xlu0 %3744, %v3251
    %v3746 = vpop.permute.xlu0 %3745
    %3747 = vset.pattern.permute.xlu0 0
    %3748 = vperm.xlu0 %3747, %v3253
    %v3749 = vpop.permute.xlu0 %3748
    %3750 = vset.pattern.permute.xlu0 0
    %3751 = vperm.xlu0 %3750, %v3255
    %v3752 = vpop.permute.xlu0 %3751
    %3753 = vset.pattern.permute.xlu0 0
    %3754 = vperm.xlu0 %3753, %v3257
    %v3755 = vpop.permute.xlu0 %3754
    %3756 = vset.pattern.permute.xlu0 0
    %3757 = vperm.xlu0 %3756, %v3259
    %v3758 = vpop.permute.xlu0 %3757
    %3759 = vset.pattern.permute.xlu0 0
    %3760 = vperm.xlu0 %3759, %v3261
    %v3761 = vpop.permute.xlu0 %3760
    %3762 = vset.pattern.permute.xlu0 0
    %3763 = vperm.xlu0 %3762, %v3263
    %v3764 = vpop.permute.xlu0 %3763
    %3765 = vset.pattern.permute.xlu0 0
    %3766 = vperm.xlu0 %3765, %v3265
    %v3767 = vpop.permute.xlu0 %3766
    %3768 = vset.pattern.permute.xlu0 0
    %3769 = vperm.xlu0 %3768, %v3267
    %v3770 = vpop.permute.xlu0 %3769
    %3771 = vset.pattern.permute.xlu0 0
    %3772 = vperm.xlu0 %3771, %v3269
    %v3773 = vpop.permute.xlu0 %3772
    %3774 = vset.pattern.permute.xlu0 0
    %3775 = vperm.xlu0 %3774, %v3271
    %v3776 = vpop.permute.xlu0 %3775
    %3777 = vset.pattern.permute.xlu0 0
    %3778 = vperm.xlu0 %3777, %v3273
    %v3779 = vpop.permute.xlu0 %3778
    %3780 = vset.pattern.permute.xlu0 0
    %3781 = vperm.xlu0 %3780, %v3275
    %v3782 = vpop.permute.xlu0 %3781
    %3783 = vset.pattern.permute.xlu0 0
    %3784 = vperm.xlu0 %3783, %v3277
    %v3785 = vpop.permute.xlu0 %3784
    %3786 = vset.pattern.permute.xlu0 0
    %3787 = vperm.xlu0 %3786, %v3279
    %v3788 = vpop.permute.xlu0 %3787
    %3789 = vset.pattern.permute.xlu0 0
    %3790 = vperm.xlu0 %3789, %v3281
    %v3791 = vpop.permute.xlu0 %3790
    %3792 = vset.pattern.permute.xlu0 0
    %3793 = vperm.xlu0 %3792, %v3283
    %v3794 = vpop.permute.xlu0 %3793
    %3795 = vset.pattern.permute.xlu0 0
    %3796 = vperm.xlu0 %3795, %v3285
    %v3797 = vpop.permute.xlu0 %3796
    %v3798 = vlaneseq
    %v3799 = vshrl.u32 %v3798, 7
    %v3800 = vsub.s32 %v2181, %v3799
    %v3801 = vrot.slane %v3416, %v3800
    %v3802 = vlaneseq
    %v3803 = vshrl.u32 %v3802, 7
    %v3804 = vsub.s32 %v2186, %v3803
    %v3805 = vrot.slane %v3419, %v3804
    %v3806 = vsel %vm2191, %v3805, %v3801
    %v3807 = vlaneseq
    %v3808 = vshrl.u32 %v3807, 7
    %v3809 = vsub.s32 %v2193, %v3808
    %v3810 = vrot.slane %v3422, %v3809
    %v3811 = vsel %vm2198, %v3810, %v3806
    %v3812 = vlaneseq
    %v3813 = vshrl.u32 %v3812, 7
    %v3814 = vsub.s32 %v2200, %v3813
    %v3815 = vrot.slane %v3425, %v3814
    %v3816 = vsel %vm2205, %v3815, %v3811
    %v3817 = vlaneseq
    %v3818 = vshrl.u32 %v3817, 7
    %v3819 = vsub.s32 %v2207, %v3818
    %v3820 = vrot.slane %v3428, %v3819
    %v3821 = vsel %vm2212, %v3820, %v3816
    %v3822 = vlaneseq
    %v3823 = vshrl.u32 %v3822, 7
    %v3824 = vsub.s32 %v2214, %v3823
    %v3825 = vrot.slane %v3431, %v3824
    %v3826 = vsel %vm2219, %v3825, %v3821
    %v3827 = vlaneseq
    %v3828 = vshrl.u32 %v3827, 7
    %v3829 = vsub.s32 %v2221, %v3828
    %v3830 = vrot.slane %v3434, %v3829
    %v3831 = vsel %vm2226, %v3830, %v3826
    %v3832 = vlaneseq
    %v3833 = vshrl.u32 %v3832, 7
    %v3834 = vsub.s32 %v2228, %v3833
    %v3835 = vrot.slane %v3437, %v3834
    %v3836 = vsel %vm2233, %v3835, %v3831
    %v3837 = vlaneseq
    %v3838 = vshrl.u32 %v3837, 7
    %v3839 = vsub.s32 %v2235, %v3838
    %v3840 = vrot.slane %v3440, %v3839
    %v3841 = vsel %vm2240, %v3840, %v3836
    %v3842 = vlaneseq
    %v3843 = vshrl.u32 %v3842, 7
    %v3844 = vsub.s32 %v2242, %v3843
    %v3845 = vrot.slane %v3443, %v3844
    %v3846 = vsel %vm2247, %v3845, %v3841
    %v3847 = vlaneseq
    %v3848 = vshrl.u32 %v3847, 7
    %v3849 = vsub.s32 %v2249, %v3848
    %v3850 = vrot.slane %v3446, %v3849
    %v3851 = vsel %vm2254, %v3850, %v3846
    %v3852 = vlaneseq
    %v3853 = vshrl.u32 %v3852, 7
    %v3854 = vsub.s32 %v2256, %v3853
    %v3855 = vrot.slane %v3449, %v3854
    %v3856 = vsel %vm2261, %v3855, %v3851
    %v3857 = vlaneseq
    %v3858 = vshrl.u32 %v3857, 7
    %v3859 = vsub.s32 %v2263, %v3858
    %v3860 = vrot.slane %v3452, %v3859
    %v3861 = vsel %vm2268, %v3860, %v3856
    %v3862 = vlaneseq
    %v3863 = vshrl.u32 %v3862, 7
    %v3864 = vsub.s32 %v2270, %v3863
    %v3865 = vrot.slane %v3455, %v3864
    %v3866 = vsel %vm2275, %v3865, %v3861
    %v3867 = vlaneseq
    %v3868 = vshrl.u32 %v3867, 7
    %v3869 = vsub.s32 %v2277, %v3868
    %v3870 = vrot.slane %v3458, %v3869
    %v3871 = vsel %vm2282, %v3870, %v3866
    %v3872 = vlaneseq
    %v3873 = vshrl.u32 %v3872, 7
    %v3874 = vsub.s32 %v2284, %v3873
    %v3875 = vrot.slane %v3461, %v3874
    %v3876 = vsel %vm2289, %v3875, %v3871
    %v3877 = vlaneseq
    %v3878 = vshrl.u32 %v3877, 7
    %v3879 = vsub.s32 %v2181, %v3878
    %v3880 = vrot.slane %v3464, %v3879
    %v3881 = vlaneseq
    %v3882 = vshrl.u32 %v3881, 7
    %v3883 = vsub.s32 %v2186, %v3882
    %v3884 = vrot.slane %v3467, %v3883
    %v3885 = vsel %vm2191, %v3884, %v3880
    %v3886 = vlaneseq
    %v3887 = vshrl.u32 %v3886, 7
    %v3888 = vsub.s32 %v2193, %v3887
    %v3889 = vrot.slane %v3470, %v3888
    %v3890 = vsel %vm2198, %v3889, %v3885
    %v3891 = vlaneseq
    %v3892 = vshrl.u32 %v3891, 7
    %v3893 = vsub.s32 %v2200, %v3892
    %v3894 = vrot.slane %v3473, %v3893
    %v3895 = vsel %vm2205, %v3894, %v3890
    %v3896 = vlaneseq
    %v3897 = vshrl.u32 %v3896, 7
    %v3898 = vsub.s32 %v2207, %v3897
    %v3899 = vrot.slane %v3476, %v3898
    %v3900 = vsel %vm2212, %v3899, %v3895
    %v3901 = vlaneseq
    %v3902 = vshrl.u32 %v3901, 7
    %v3903 = vsub.s32 %v2214, %v3902
    %v3904 = vrot.slane %v3479, %v3903
    %v3905 = vsel %vm2219, %v3904, %v3900
    %v3906 = vlaneseq
    %v3907 = vshrl.u32 %v3906, 7
    %v3908 = vsub.s32 %v2221, %v3907
    %v3909 = vrot.slane %v3482, %v3908
    %v3910 = vsel %vm2226, %v3909, %v3905
    %v3911 = vlaneseq
    %v3912 = vshrl.u32 %v3911, 7
    %v3913 = vsub.s32 %v2228, %v3912
    %v3914 = vrot.slane %v3485, %v3913
    %v3915 = vsel %vm2233, %v3914, %v3910
    %v3916 = vlaneseq
    %v3917 = vshrl.u32 %v3916, 7
    %v3918 = vsub.s32 %v2235, %v3917
    %v3919 = vrot.slane %v3488, %v3918
    %v3920 = vsel %vm2240, %v3919, %v3915
    %v3921 = vlaneseq
    %v3922 = vshrl.u32 %v3921, 7
    %v3923 = vsub.s32 %v2242, %v3922
    %v3924 = vrot.slane %v3491, %v3923
    %v3925 = vsel %vm2247, %v3924, %v3920
    %v3926 = vlaneseq
    %v3927 = vshrl.u32 %v3926, 7
    %v3928 = vsub.s32 %v2249, %v3927
    %v3929 = vrot.slane %v3494, %v3928
    %v3930 = vsel %vm2254, %v3929, %v3925
    %v3931 = vlaneseq
    %v3932 = vshrl.u32 %v3931, 7
    %v3933 = vsub.s32 %v2256, %v3932
    %v3934 = vrot.slane %v3497, %v3933
    %v3935 = vsel %vm2261, %v3934, %v3930
    %v3936 = vlaneseq
    %v3937 = vshrl.u32 %v3936, 7
    %v3938 = vsub.s32 %v2263, %v3937
    %v3939 = vrot.slane %v3500, %v3938
    %v3940 = vsel %vm2268, %v3939, %v3935
    %v3941 = vlaneseq
    %v3942 = vshrl.u32 %v3941, 7
    %v3943 = vsub.s32 %v2270, %v3942
    %v3944 = vrot.slane %v3503, %v3943
    %v3945 = vsel %vm2275, %v3944, %v3940
    %v3946 = vlaneseq
    %v3947 = vshrl.u32 %v3946, 7
    %v3948 = vsub.s32 %v2277, %v3947
    %v3949 = vrot.slane %v3506, %v3948
    %v3950 = vsel %vm2282, %v3949, %v3945
    %v3951 = vlaneseq
    %v3952 = vshrl.u32 %v3951, 7
    %v3953 = vsub.s32 %v2284, %v3952
    %v3954 = vrot.slane %v3509, %v3953
    %v3955 = vsel %vm2289, %v3954, %v3950
    %v3956 = vlaneseq
    %v3957 = vshrl.u32 %v3956, 7
    %v3958 = vsub.s32 %v2181, %v3957
    %v3959 = vrot.slane %v3512, %v3958
    %v3960 = vlaneseq
    %v3961 = vshrl.u32 %v3960, 7
    %v3962 = vsub.s32 %v2186, %v3961
    %v3963 = vrot.slane %v3515, %v3962
    %v3964 = vsel %vm2191, %v3963, %v3959
    %v3965 = vlaneseq
    %v3966 = vshrl.u32 %v3965, 7
    %v3967 = vsub.s32 %v2193, %v3966
    %v3968 = vrot.slane %v3518, %v3967
    %v3969 = vsel %vm2198, %v3968, %v3964
    %v3970 = vlaneseq
    %v3971 = vshrl.u32 %v3970, 7
    %v3972 = vsub.s32 %v2200, %v3971
    %v3973 = vrot.slane %v3521, %v3972
    %v3974 = vsel %vm2205, %v3973, %v3969
    %v3975 = vlaneseq
    %v3976 = vshrl.u32 %v3975, 7
    %v3977 = vsub.s32 %v2207, %v3976
    %v3978 = vrot.slane %v3524, %v3977
    %v3979 = vsel %vm2212, %v3978, %v3974
    %v3980 = vlaneseq
    %v3981 = vshrl.u32 %v3980, 7
    %v3982 = vsub.s32 %v2214, %v3981
    %v3983 = vrot.slane %v3527, %v3982
    %v3984 = vsel %vm2219, %v3983, %v3979
    %v3985 = vlaneseq
    %v3986 = vshrl.u32 %v3985, 7
    %v3987 = vsub.s32 %v2221, %v3986
    %v3988 = vrot.slane %v3530, %v3987
    %v3989 = vsel %vm2226, %v3988, %v3984
    %v3990 = vlaneseq
    %v3991 = vshrl.u32 %v3990, 7
    %v3992 = vsub.s32 %v2228, %v3991
    %v3993 = vrot.slane %v3533, %v3992
    %v3994 = vsel %vm2233, %v3993, %v3989
    %v3995 = vlaneseq
    %v3996 = vshrl.u32 %v3995, 7
    %v3997 = vsub.s32 %v2235, %v3996
    %v3998 = vrot.slane %v3536, %v3997
    %v3999 = vsel %vm2240, %v3998, %v3994
    %v4000 = vlaneseq
    %v4001 = vshrl.u32 %v4000, 7
    %v4002 = vsub.s32 %v2242, %v4001
    %v4003 = vrot.slane %v3539, %v4002
    %v4004 = vsel %vm2247, %v4003, %v3999
    %v4005 = vlaneseq
    %v4006 = vshrl.u32 %v4005, 7
    %v4007 = vsub.s32 %v2249, %v4006
    %v4008 = vrot.slane %v3542, %v4007
    %v4009 = vsel %vm2254, %v4008, %v4004
    %v4010 = vlaneseq
    %v4011 = vshrl.u32 %v4010, 7
    %v4012 = vsub.s32 %v2256, %v4011
    %v4013 = vrot.slane %v3545, %v4012
    %v4014 = vsel %vm2261, %v4013, %v4009
    %v4015 = vlaneseq
    %v4016 = vshrl.u32 %v4015, 7
    %v4017 = vsub.s32 %v2263, %v4016
    %v4018 = vrot.slane %v3548, %v4017
    %v4019 = vsel %vm2268, %v4018, %v4014
    %v4020 = vlaneseq
    %v4021 = vshrl.u32 %v4020, 7
    %v4022 = vsub.s32 %v2270, %v4021
    %v4023 = vrot.slane %v3551, %v4022
    %v4024 = vsel %vm2275, %v4023, %v4019
    %v4025 = vlaneseq
    %v4026 = vshrl.u32 %v4025, 7
    %v4027 = vsub.s32 %v2277, %v4026
    %v4028 = vrot.slane %v3554, %v4027
    %v4029 = vsel %vm2282, %v4028, %v4024
    %v4030 = vlaneseq
    %v4031 = vshrl.u32 %v4030, 7
    %v4032 = vsub.s32 %v2284, %v4031
    %v4033 = vrot.slane %v3557, %v4032
    %v4034 = vsel %vm2289, %v4033, %v4029
    %v4035 = vlaneseq
    %v4036 = vshrl.u32 %v4035, 7
    %v4037 = vsub.s32 %v2181, %v4036
    %v4038 = vrot.slane %v3560, %v4037
    %v4039 = vlaneseq
    %v4040 = vshrl.u32 %v4039, 7
    %v4041 = vsub.s32 %v2186, %v4040
    %v4042 = vrot.slane %v3563, %v4041
    %v4043 = vsel %vm2191, %v4042, %v4038
    %v4044 = vlaneseq
    %v4045 = vshrl.u32 %v4044, 7
    %v4046 = vsub.s32 %v2193, %v4045
    %v4047 = vrot.slane %v3566, %v4046
    %v4048 = vsel %vm2198, %v4047, %v4043
    %v4049 = vlaneseq
    %v4050 = vshrl.u32 %v4049, 7
    %v4051 = vsub.s32 %v2200, %v4050
    %v4052 = vrot.slane %v3569, %v4051
    %v4053 = vsel %vm2205, %v4052, %v4048
    %v4054 = vlaneseq
    %v4055 = vshrl.u32 %v4054, 7
    %v4056 = vsub.s32 %v2207, %v4055
    %v4057 = vrot.slane %v3572, %v4056
    %v4058 = vsel %vm2212, %v4057, %v4053
    %v4059 = vlaneseq
    %v4060 = vshrl.u32 %v4059, 7
    %v4061 = vsub.s32 %v2214, %v4060
    %v4062 = vrot.slane %v3575, %v4061
    %v4063 = vsel %vm2219, %v4062, %v4058
    %v4064 = vlaneseq
    %v4065 = vshrl.u32 %v4064, 7
    %v4066 = vsub.s32 %v2221, %v4065
    %v4067 = vrot.slane %v3578, %v4066
    %v4068 = vsel %vm2226, %v4067, %v4063
    %v4069 = vlaneseq
    %v4070 = vshrl.u32 %v4069, 7
    %v4071 = vsub.s32 %v2228, %v4070
    %v4072 = vrot.slane %v3581, %v4071
    %v4073 = vsel %vm2233, %v4072, %v4068
    %v4074 = vlaneseq
    %v4075 = vshrl.u32 %v4074, 7
    %v4076 = vsub.s32 %v2235, %v4075
    %v4077 = vrot.slane %v3584, %v4076
    %v4078 = vsel %vm2240, %v4077, %v4073
    %v4079 = vlaneseq
    %v4080 = vshrl.u32 %v4079, 7
    %v4081 = vsub.s32 %v2242, %v4080
    %v4082 = vrot.slane %v3587, %v4081
    %v4083 = vsel %vm2247, %v4082, %v4078
    %v4084 = vlaneseq
    %v4085 = vshrl.u32 %v4084, 7
    %v4086 = vsub.s32 %v2249, %v4085
    %v4087 = vrot.slane %v3590, %v4086
    %v4088 = vsel %vm2254, %v4087, %v4083
    %v4089 = vlaneseq
    %v4090 = vshrl.u32 %v4089, 7
    %v4091 = vsub.s32 %v2256, %v4090
    %v4092 = vrot.slane %v3593, %v4091
    %v4093 = vsel %vm2261, %v4092, %v4088
    %v4094 = vlaneseq
    %v4095 = vshrl.u32 %v4094, 7
    %v4096 = vsub.s32 %v2263, %v4095
    %v4097 = vrot.slane %v3596, %v4096
    %v4098 = vsel %vm2268, %v4097, %v4093
    %v4099 = vlaneseq
    %v4100 = vshrl.u32 %v4099, 7
    %v4101 = vsub.s32 %v2270, %v4100
    %v4102 = vrot.slane %v3599, %v4101
    %v4103 = vsel %vm2275, %v4102, %v4098
    %v4104 = vlaneseq
    %v4105 = vshrl.u32 %v4104, 7
    %v4106 = vsub.s32 %v2277, %v4105
    %v4107 = vrot.slane %v3602, %v4106
    %v4108 = vsel %vm2282, %v4107, %v4103
    %v4109 = vlaneseq
    %v4110 = vshrl.u32 %v4109, 7
    %v4111 = vsub.s32 %v2284, %v4110
    %v4112 = vrot.slane %v3605, %v4111
    %v4113 = vsel %vm2289, %v4112, %v4108
    %v4114 = vlaneseq
    %v4115 = vshrl.u32 %v4114, 7
    %v4116 = vsub.s32 %v2181, %v4115
    %v4117 = vrot.slane %v3608, %v4116
    %v4118 = vlaneseq
    %v4119 = vshrl.u32 %v4118, 7
    %v4120 = vsub.s32 %v2186, %v4119
    %v4121 = vrot.slane %v3611, %v4120
    %v4122 = vsel %vm2191, %v4121, %v4117
    %v4123 = vlaneseq
    %v4124 = vshrl.u32 %v4123, 7
    %v4125 = vsub.s32 %v2193, %v4124
    %v4126 = vrot.slane %v3614, %v4125
    %v4127 = vsel %vm2198, %v4126, %v4122
    %v4128 = vlaneseq
    %v4129 = vshrl.u32 %v4128, 7
    %v4130 = vsub.s32 %v2200, %v4129
    %v4131 = vrot.slane %v3617, %v4130
    %v4132 = vsel %vm2205, %v4131, %v4127
    %v4133 = vlaneseq
    %v4134 = vshrl.u32 %v4133, 7
    %v4135 = vsub.s32 %v2207, %v4134
    %v4136 = vrot.slane %v3620, %v4135
    %v4137 = vsel %vm2212, %v4136, %v4132
    %v4138 = vlaneseq
    %v4139 = vshrl.u32 %v4138, 7
    %v4140 = vsub.s32 %v2214, %v4139
    %v4141 = vrot.slane %v3623, %v4140
    %v4142 = vsel %vm2219, %v4141, %v4137
    %v4143 = vlaneseq
    %v4144 = vshrl.u32 %v4143, 7
    %v4145 = vsub.s32 %v2221, %v4144
    %v4146 = vrot.slane %v3626, %v4145
    %v4147 = vsel %vm2226, %v4146, %v4142
    %v4148 = vlaneseq
    %v4149 = vshrl.u32 %v4148, 7
    %v4150 = vsub.s32 %v2228, %v4149
    %v4151 = vrot.slane %v3629, %v4150
    %v4152 = vsel %vm2233, %v4151, %v4147
    %v4153 = vlaneseq
    %v4154 = vshrl.u32 %v4153, 7
    %v4155 = vsub.s32 %v2235, %v4154
    %v4156 = vrot.slane %v3632, %v4155
    %v4157 = vsel %vm2240, %v4156, %v4152
    %v4158 = vlaneseq
    %v4159 = vshrl.u32 %v4158, 7
    %v4160 = vsub.s32 %v2242, %v4159
    %v4161 = vrot.slane %v3635, %v4160
    %v4162 = vsel %vm2247, %v4161, %v4157
    %v4163 = vlaneseq
    %v4164 = vshrl.u32 %v4163, 7
    %v4165 = vsub.s32 %v2249, %v4164
    %v4166 = vrot.slane %v3638, %v4165
    %v4167 = vsel %vm2254, %v4166, %v4162
    %v4168 = vlaneseq
    %v4169 = vshrl.u32 %v4168, 7
    %v4170 = vsub.s32 %v2256, %v4169
    %v4171 = vrot.slane %v3641, %v4170
    %v4172 = vsel %vm2261, %v4171, %v4167
    %v4173 = vlaneseq
    %v4174 = vshrl.u32 %v4173, 7
    %v4175 = vsub.s32 %v2263, %v4174
    %v4176 = vrot.slane %v3644, %v4175
    %v4177 = vsel %vm2268, %v4176, %v4172
    %v4178 = vlaneseq
    %v4179 = vshrl.u32 %v4178, 7
    %v4180 = vsub.s32 %v2270, %v4179
    %v4181 = vrot.slane %v3647, %v4180
    %v4182 = vsel %vm2275, %v4181, %v4177
    %v4183 = vlaneseq
    %v4184 = vshrl.u32 %v4183, 7
    %v4185 = vsub.s32 %v2277, %v4184
    %v4186 = vrot.slane %v3650, %v4185
    %v4187 = vsel %vm2282, %v4186, %v4182
    %v4188 = vlaneseq
    %v4189 = vshrl.u32 %v4188, 7
    %v4190 = vsub.s32 %v2284, %v4189
    %v4191 = vrot.slane %v3653, %v4190
    %v4192 = vsel %vm2289, %v4191, %v4187
    %v4193 = vlaneseq
    %v4194 = vshrl.u32 %v4193, 7
    %v4195 = vsub.s32 %v2181, %v4194
    %v4196 = vrot.slane %v3656, %v4195
    %v4197 = vlaneseq
    %v4198 = vshrl.u32 %v4197, 7
    %v4199 = vsub.s32 %v2186, %v4198
    %v4200 = vrot.slane %v3659, %v4199
    %v4201 = vsel %vm2191, %v4200, %v4196
    %v4202 = vlaneseq
    %v4203 = vshrl.u32 %v4202, 7
    %v4204 = vsub.s32 %v2193, %v4203
    %v4205 = vrot.slane %v3662, %v4204
    %v4206 = vsel %vm2198, %v4205, %v4201
    %v4207 = vlaneseq
    %v4208 = vshrl.u32 %v4207, 7
    %v4209 = vsub.s32 %v2200, %v4208
    %v4210 = vrot.slane %v3665, %v4209
    %v4211 = vsel %vm2205, %v4210, %v4206
    %v4212 = vlaneseq
    %v4213 = vshrl.u32 %v4212, 7
    %v4214 = vsub.s32 %v2207, %v4213
    %v4215 = vrot.slane %v3668, %v4214
    %v4216 = vsel %vm2212, %v4215, %v4211
    %v4217 = vlaneseq
    %v4218 = vshrl.u32 %v4217, 7
    %v4219 = vsub.s32 %v2214, %v4218
    %v4220 = vrot.slane %v3671, %v4219
    %v4221 = vsel %vm2219, %v4220, %v4216
    %v4222 = vlaneseq
    %v4223 = vshrl.u32 %v4222, 7
    %v4224 = vsub.s32 %v2221, %v4223
    %v4225 = vrot.slane %v3674, %v4224
    %v4226 = vsel %vm2226, %v4225, %v4221
    %v4227 = vlaneseq
    %v4228 = vshrl.u32 %v4227, 7
    %v4229 = vsub.s32 %v2228, %v4228
    %v4230 = vrot.slane %v3677, %v4229
    %v4231 = vsel %vm2233, %v4230, %v4226
    %v4232 = vlaneseq
    %v4233 = vshrl.u32 %v4232, 7
    %v4234 = vsub.s32 %v2235, %v4233
    %v4235 = vrot.slane %v3680, %v4234
    %v4236 = vsel %vm2240, %v4235, %v4231
    %v4237 = vlaneseq
    %v4238 = vshrl.u32 %v4237, 7
    %v4239 = vsub.s32 %v2242, %v4238
    %v4240 = vrot.slane %v3683, %v4239
    %v4241 = vsel %vm2247, %v4240, %v4236
    %v4242 = vlaneseq
    %v4243 = vshrl.u32 %v4242, 7
    %v4244 = vsub.s32 %v2249, %v4243
    %v4245 = vrot.slane %v3686, %v4244
    %v4246 = vsel %vm2254, %v4245, %v4241
    %v4247 = vlaneseq
    %v4248 = vshrl.u32 %v4247, 7
    %v4249 = vsub.s32 %v2256, %v4248
    %v4250 = vrot.slane %v3689, %v4249
    %v4251 = vsel %vm2261, %v4250, %v4246
    %v4252 = vlaneseq
    %v4253 = vshrl.u32 %v4252, 7
    %v4254 = vsub.s32 %v2263, %v4253
    %v4255 = vrot.slane %v3692, %v4254
    %v4256 = vsel %vm2268, %v4255, %v4251
    %v4257 = vlaneseq
    %v4258 = vshrl.u32 %v4257, 7
    %v4259 = vsub.s32 %v2270, %v4258
    %v4260 = vrot.slane %v3695, %v4259
    %v4261 = vsel %vm2275, %v4260, %v4256
    %v4262 = vlaneseq
    %v4263 = vshrl.u32 %v4262, 7
    %v4264 = vsub.s32 %v2277, %v4263
    %v4265 = vrot.slane %v3698, %v4264
    %v4266 = vsel %vm2282, %v4265, %v4261
    %v4267 = vlaneseq
    %v4268 = vshrl.u32 %v4267, 7
    %v4269 = vsub.s32 %v2284, %v4268
    %v4270 = vrot.slane %v3701, %v4269
    %v4271 = vsel %vm2289, %v4270, %v4266
    %v4272 = vlaneseq
    %v4273 = vshrl.u32 %v4272, 7
    %v4274 = vsub.s32 %v2181, %v4273
    %v4275 = vrot.slane %v3704, %v4274
    %v4276 = vlaneseq
    %v4277 = vshrl.u32 %v4276, 7
    %v4278 = vsub.s32 %v2186, %v4277
    %v4279 = vrot.slane %v3707, %v4278
    %v4280 = vsel %vm2191, %v4279, %v4275
    %v4281 = vlaneseq
    %v4282 = vshrl.u32 %v4281, 7
    %v4283 = vsub.s32 %v2193, %v4282
    %v4284 = vrot.slane %v3710, %v4283
    %v4285 = vsel %vm2198, %v4284, %v4280
    %v4286 = vlaneseq
    %v4287 = vshrl.u32 %v4286, 7
    %v4288 = vsub.s32 %v2200, %v4287
    %v4289 = vrot.slane %v3713, %v4288
    %v4290 = vsel %vm2205, %v4289, %v4285
    %v4291 = vlaneseq
    %v4292 = vshrl.u32 %v4291, 7
    %v4293 = vsub.s32 %v2207, %v4292
    %v4294 = vrot.slane %v3716, %v4293
    %v4295 = vsel %vm2212, %v4294, %v4290
    %v4296 = vlaneseq
    %v4297 = vshrl.u32 %v4296, 7
    %v4298 = vsub.s32 %v2214, %v4297
    %v4299 = vrot.slane %v3719, %v4298
    %v4300 = vsel %vm2219, %v4299, %v4295
    %v4301 = vlaneseq
    %v4302 = vshrl.u32 %v4301, 7
    %v4303 = vsub.s32 %v2221, %v4302
    %v4304 = vrot.slane %v3722, %v4303
    %v4305 = vsel %vm2226, %v4304, %v4300
    %v4306 = vlaneseq
    %v4307 = vshrl.u32 %v4306, 7
    %v4308 = vsub.s32 %v2228, %v4307
    %v4309 = vrot.slane %v3725, %v4308
    %v4310 = vsel %vm2233, %v4309, %v4305
    %v4311 = vlaneseq
    %v4312 = vshrl.u32 %v4311, 7
    %v4313 = vsub.s32 %v2235, %v4312
    %v4314 = vrot.slane %v3728, %v4313
    %v4315 = vsel %vm2240, %v4314, %v4310
    %v4316 = vlaneseq
    %v4317 = vshrl.u32 %v4316, 7
    %v4318 = vsub.s32 %v2242, %v4317
    %v4319 = vrot.slane %v3731, %v4318
    %v4320 = vsel %vm2247, %v4319, %v4315
    %v4321 = vlaneseq
    %v4322 = vshrl.u32 %v4321, 7
    %v4323 = vsub.s32 %v2249, %v4322
    %v4324 = vrot.slane %v3734, %v4323
    %v4325 = vsel %vm2254, %v4324, %v4320
    %v4326 = vlaneseq
    %v4327 = vshrl.u32 %v4326, 7
    %v4328 = vsub.s32 %v2256, %v4327
    %v4329 = vrot.slane %v3737, %v4328
    %v4330 = vsel %vm2261, %v4329, %v4325
    %v4331 = vlaneseq
    %v4332 = vshrl.u32 %v4331, 7
    %v4333 = vsub.s32 %v2263, %v4332
    %v4334 = vrot.slane %v3740, %v4333
    %v4335 = vsel %vm2268, %v4334, %v4330
    %v4336 = vlaneseq
    %v4337 = vshrl.u32 %v4336, 7
    %v4338 = vsub.s32 %v2270, %v4337
    %v4339 = vrot.slane %v3743, %v4338
    %v4340 = vsel %vm2275, %v4339, %v4335
    %v4341 = vlaneseq
    %v4342 = vshrl.u32 %v4341, 7
    %v4343 = vsub.s32 %v2277, %v4342
    %v4344 = vrot.slane %v3746, %v4343
    %v4345 = vsel %vm2282, %v4344, %v4340
    %v4346 = vlaneseq
    %v4347 = vshrl.u32 %v4346, 7
    %v4348 = vsub.s32 %v2284, %v4347
    %v4349 = vrot.slane %v3749, %v4348
    %v4350 = vsel %vm2289, %v4349, %v4345
    %v4351 = vlaneseq
    %v4352 = vshrl.u32 %v4351, 7
    %v4353 = vsub.s32 %v2181, %v4352
    %v4354 = vrot.slane %v3752, %v4353
    %v4355 = vlaneseq
    %v4356 = vshrl.u32 %v4355, 7
    %v4357 = vsub.s32 %v2186, %v4356
    %v4358 = vrot.slane %v3755, %v4357
    %v4359 = vsel %vm2191, %v4358, %v4354
    %v4360 = vlaneseq
    %v4361 = vshrl.u32 %v4360, 7
    %v4362 = vsub.s32 %v2193, %v4361
    %v4363 = vrot.slane %v3758, %v4362
    %v4364 = vsel %vm2198, %v4363, %v4359
    %v4365 = vlaneseq
    %v4366 = vshrl.u32 %v4365, 7
    %v4367 = vsub.s32 %v2200, %v4366
    %v4368 = vrot.slane %v3761, %v4367
    %v4369 = vsel %vm2205, %v4368, %v4364
    %v4370 = vlaneseq
    %v4371 = vshrl.u32 %v4370, 7
    %v4372 = vsub.s32 %v2207, %v4371
    %v4373 = vrot.slane %v3764, %v4372
    %v4374 = vsel %vm2212, %v4373, %v4369
    %v4375 = vlaneseq
    %v4376 = vshrl.u32 %v4375, 7
    %v4377 = vsub.s32 %v2214, %v4376
    %v4378 = vrot.slane %v3767, %v4377
    %v4379 = vsel %vm2219, %v4378, %v4374
    %v4380 = vlaneseq
    %v4381 = vshrl.u32 %v4380, 7
    %v4382 = vsub.s32 %v2221, %v4381
    %v4383 = vrot.slane %v3770, %v4382
    %v4384 = vsel %vm2226, %v4383, %v4379
    %v4385 = vlaneseq
    %v4386 = vshrl.u32 %v4385, 7
    %v4387 = vsub.s32 %v2228, %v4386
    %v4388 = vrot.slane %v3773, %v4387
    %v4389 = vsel %vm2233, %v4388, %v4384
    %v4390 = vlaneseq
    %v4391 = vshrl.u32 %v4390, 7
    %v4392 = vsub.s32 %v2235, %v4391
    %v4393 = vrot.slane %v3776, %v4392
    %v4394 = vsel %vm2240, %v4393, %v4389
    %v4395 = vlaneseq
    %v4396 = vshrl.u32 %v4395, 7
    %v4397 = vsub.s32 %v2242, %v4396
    %v4398 = vrot.slane %v3779, %v4397
    %v4399 = vsel %vm2247, %v4398, %v4394
    %v4400 = vlaneseq
    %v4401 = vshrl.u32 %v4400, 7
    %v4402 = vsub.s32 %v2249, %v4401
    %v4403 = vrot.slane %v3782, %v4402
    %v4404 = vsel %vm2254, %v4403, %v4399
    %v4405 = vlaneseq
    %v4406 = vshrl.u32 %v4405, 7
    %v4407 = vsub.s32 %v2256, %v4406
    %v4408 = vrot.slane %v3785, %v4407
    %v4409 = vsel %vm2261, %v4408, %v4404
    %v4410 = vlaneseq
    %v4411 = vshrl.u32 %v4410, 7
    %v4412 = vsub.s32 %v2263, %v4411
    %v4413 = vrot.slane %v3788, %v4412
    %v4414 = vsel %vm2268, %v4413, %v4409
    %v4415 = vlaneseq
    %v4416 = vshrl.u32 %v4415, 7
    %v4417 = vsub.s32 %v2270, %v4416
    %v4418 = vrot.slane %v3791, %v4417
    %v4419 = vsel %vm2275, %v4418, %v4414
    %v4420 = vlaneseq
    %v4421 = vshrl.u32 %v4420, 7
    %v4422 = vsub.s32 %v2277, %v4421
    %v4423 = vrot.slane %v3794, %v4422
    %v4424 = vsel %vm2282, %v4423, %v4419
    %v4425 = vlaneseq
    %v4426 = vshrl.u32 %v4425, 7
    %v4427 = vsub.s32 %v2284, %v4426
    %v4428 = vrot.slane %v3797, %v4427
    %v4429 = vsel %vm2289, %v4428, %v4424
    %v4430 = vsel %vm2844, %v3955, %v3876
    %v4431 = vsel %vm2846, %v4034, %v4430
    %v4432 = vsel %vm2848, %v4113, %v4431
    %v4433 = vsel %vm2850, %v4192, %v4432
    %v4434 = vsel %vm2852, %v4271, %v4433
    %v4435 = vsel %vm2854, %v4350, %v4434
    %v4436 = vsel %vm2856, %v4429, %v4435
    %4438 = vadd.xlane.f32.xlu0 %v4436
    %v4439 = vpop.xlane.xlu0 %4438
    %v4441 = vlaneseq
    %v4442 = vshrl.u32 %v4441, 7
    %v4443 = vsub.s32 0, %v4442
    %v4444 = vrot.slane %v4439, %v4443
    %v4445 = vlaneseq
    %v4446 = vshrl.u32 %v4445, 7
    %v4447 = vsub.s32 1, %v4446
    %v4448 = vrot.slane %v4439, %v4447
    %v4449 = vlaneseq
    %v4450 = vshrl.u32 %v4449, 7
    %v4451 = vsub.s32 2, %v4450
    %v4452 = vrot.slane %v4439, %v4451
    %v4453 = vlaneseq
    %v4454 = vshrl.u32 %v4453, 7
    %v4455 = vsub.s32 3, %v4454
    %v4456 = vrot.slane %v4439, %v4455
    %v4457 = vlaneseq
    %v4458 = vshrl.u32 %v4457, 7
    %v4459 = vsub.s32 4, %v4458
    %v4460 = vrot.slane %v4439, %v4459
    %v4461 = vlaneseq
    %v4462 = vshrl.u32 %v4461, 7
    %v4463 = vsub.s32 5, %v4462
    %v4464 = vrot.slane %v4439, %v4463
    %v4465 = vlaneseq
    %v4466 = vshrl.u32 %v4465, 7
    %v4467 = vsub.s32 6, %v4466
    %v4468 = vrot.slane %v4439, %v4467
    %v4469 = vlaneseq
    %v4470 = vshrl.u32 %v4469, 7
    %v4471 = vsub.s32 7, %v4470
    %v4472 = vrot.slane %v4439, %v4471
    %v4481 = vrcp.pop %v4444
    %v4482 = vmul.f32 %v3031, %v4481
    %v4483 = vmul.f32 %v3033, %v4481
    %v4484 = vmul.f32 %v3035, %v4481
    %v4485 = vmul.f32 %v3037, %v4481
    %v4486 = vmul.f32 %v3039, %v4481
    %v4487 = vmul.f32 %v3041, %v4481
    %v4488 = vmul.f32 %v3043, %v4481
    %v4489 = vmul.f32 %v3045, %v4481
    %v4490 = vmul.f32 %v3047, %v4481
    %v4491 = vmul.f32 %v3049, %v4481
    %v4492 = vmul.f32 %v3051, %v4481
    %v4493 = vmul.f32 %v3053, %v4481
    %v4494 = vmul.f32 %v3055, %v4481
    %v4495 = vmul.f32 %v3057, %v4481
    %v4496 = vmul.f32 %v3059, %v4481
    %v4497 = vmul.f32 %v3061, %v4481
    %v4498 = vrcp.pop %v4448
    %v4499 = vmul.f32 %v3063, %v4498
    %v4500 = vmul.f32 %v3065, %v4498
    %v4501 = vmul.f32 %v3067, %v4498
    %v4502 = vmul.f32 %v3069, %v4498
    %v4503 = vmul.f32 %v3071, %v4498
    %v4504 = vmul.f32 %v3073, %v4498
    %v4505 = vmul.f32 %v3075, %v4498
    %v4506 = vmul.f32 %v3077, %v4498
    %v4507 = vmul.f32 %v3079, %v4498
    %v4508 = vmul.f32 %v3081, %v4498
    %v4509 = vmul.f32 %v3083, %v4498
    %v4510 = vmul.f32 %v3085, %v4498
    %v4511 = vmul.f32 %v3087, %v4498
    %v4512 = vmul.f32 %v3089, %v4498
    %v4513 = vmul.f32 %v3091, %v4498
    %v4514 = vmul.f32 %v3093, %v4498
    %v4515 = vrcp.pop %v4452
    %v4516 = vmul.f32 %v3095, %v4515
    %v4517 = vmul.f32 %v3097, %v4515
    %v4518 = vmul.f32 %v3099, %v4515
    %v4519 = vmul.f32 %v3101, %v4515
    %v4520 = vmul.f32 %v3103, %v4515
    %v4521 = vmul.f32 %v3105, %v4515
    %v4522 = vmul.f32 %v3107, %v4515
    %v4523 = vmul.f32 %v3109, %v4515
    %v4524 = vmul.f32 %v3111, %v4515
    %v4525 = vmul.f32 %v3113, %v4515
    %v4526 = vmul.f32 %v3115, %v4515
    %v4527 = vmul.f32 %v3117, %v4515
    %v4528 = vmul.f32 %v3119, %v4515
    %v4529 = vmul.f32 %v3121, %v4515
    %v4530 = vmul.f32 %v3123, %v4515
    %v4531 = vmul.f32 %v3125, %v4515
    %v4532 = vrcp.pop %v4456
    %v4533 = vmul.f32 %v3127, %v4532
    %v4534 = vmul.f32 %v3129, %v4532
    %v4535 = vmul.f32 %v3131, %v4532
    %v4536 = vmul.f32 %v3133, %v4532
    %v4537 = vmul.f32 %v3135, %v4532
    %v4538 = vmul.f32 %v3137, %v4532
    %v4539 = vmul.f32 %v3139, %v4532
    %v4540 = vmul.f32 %v3141, %v4532
    %v4541 = vmul.f32 %v3143, %v4532
    %v4542 = vmul.f32 %v3145, %v4532
    %v4543 = vmul.f32 %v3147, %v4532
    %v4544 = vmul.f32 %v3149, %v4532
    %v4545 = vmul.f32 %v3151, %v4532
    %v4546 = vmul.f32 %v3153, %v4532
    %v4547 = vmul.f32 %v3155, %v4532
    %v4548 = vmul.f32 %v3157, %v4532
    %v4549 = vrcp.pop %v4460
    %v4550 = vmul.f32 %v3159, %v4549
    %v4551 = vmul.f32 %v3161, %v4549
    %v4552 = vmul.f32 %v3163, %v4549
    %v4553 = vmul.f32 %v3165, %v4549
    %v4554 = vmul.f32 %v3167, %v4549
    %v4555 = vmul.f32 %v3169, %v4549
    %v4556 = vmul.f32 %v3171, %v4549
    %v4557 = vmul.f32 %v3173, %v4549
    %v4558 = vmul.f32 %v3175, %v4549
    %v4559 = vmul.f32 %v3177, %v4549
    %v4560 = vmul.f32 %v3179, %v4549
    %v4561 = vmul.f32 %v3181, %v4549
    %v4562 = vmul.f32 %v3183, %v4549
    %v4563 = vmul.f32 %v3185, %v4549
    %v4564 = vmul.f32 %v3187, %v4549
    %v4565 = vmul.f32 %v3189, %v4549
    %v4566 = vrcp.pop %v4464
    %v4567 = vmul.f32 %v3191, %v4566
    %v4568 = vmul.f32 %v3193, %v4566
    %v4569 = vmul.f32 %v3195, %v4566
    %v4570 = vmul.f32 %v3197, %v4566
    %v4571 = vmul.f32 %v3199, %v4566
    %v4572 = vmul.f32 %v3201, %v4566
    %v4573 = vmul.f32 %v3203, %v4566
    %v4574 = vmul.f32 %v3205, %v4566
    %v4575 = vmul.f32 %v3207, %v4566
    %v4576 = vmul.f32 %v3209, %v4566
    %v4577 = vmul.f32 %v3211, %v4566
    %v4578 = vmul.f32 %v3213, %v4566
    %v4579 = vmul.f32 %v3215, %v4566
    %v4580 = vmul.f32 %v3217, %v4566
    %v4581 = vmul.f32 %v3219, %v4566
    %v4582 = vmul.f32 %v3221, %v4566
    %v4583 = vrcp.pop %v4468
    %v4584 = vmul.f32 %v3223, %v4583
    %v4585 = vmul.f32 %v3225, %v4583
    %v4586 = vmul.f32 %v3227, %v4583
    %v4587 = vmul.f32 %v3229, %v4583
    %v4588 = vmul.f32 %v3231, %v4583
    %v4589 = vmul.f32 %v3233, %v4583
    %v4590 = vmul.f32 %v3235, %v4583
    %v4591 = vmul.f32 %v3237, %v4583
    %v4592 = vmul.f32 %v3239, %v4583
    %v4593 = vmul.f32 %v3241, %v4583
    %v4594 = vmul.f32 %v3243, %v4583
    %v4595 = vmul.f32 %v3245, %v4583
    %v4596 = vmul.f32 %v3247, %v4583
    %v4597 = vmul.f32 %v3249, %v4583
    %v4598 = vmul.f32 %v3251, %v4583
    %v4599 = vmul.f32 %v3253, %v4583
    %v4600 = vrcp.pop %v4472
    %v4601 = vmul.f32 %v3255, %v4600
    %v4602 = vmul.f32 %v3257, %v4600
    %v4603 = vmul.f32 %v3259, %v4600
    %v4604 = vmul.f32 %v3261, %v4600
    %v4605 = vmul.f32 %v3263, %v4600
    %v4606 = vmul.f32 %v3265, %v4600
    %v4607 = vmul.f32 %v3267, %v4600
    %v4608 = vmul.f32 %v3269, %v4600
    %v4609 = vmul.f32 %v3271, %v4600
    %v4610 = vmul.f32 %v3273, %v4600
    %v4611 = vmul.f32 %v3275, %v4600
    %v4612 = vmul.f32 %v3277, %v4600
    %v4613 = vmul.f32 %v3279, %v4600
    %v4614 = vmul.f32 %v3281, %v4600
    %v4615 = vmul.f32 %v3283, %v4600
    %v4616 = vmul.f32 %v3285, %v4600
    %v4617 = vunpack.c.l.bf16 %v81
    %v4618 = vunpack.c.l.bf16 %v82
    %v4619 = vunpack.c.l.bf16 %v83
    %v4620 = vunpack.c.l.bf16 %v84
    %v4621 = vunpack.c.l.bf16 %v85
    %v4622 = vunpack.c.l.bf16 %v86
    %v4623 = vunpack.c.l.bf16 %v87
    %v4624 = vunpack.c.l.bf16 %v88
    %v4625 = vunpack.c.l.bf16 %v89
    %v4626 = vunpack.c.l.bf16 %v90
    %v4627 = vunpack.c.l.bf16 %v91
    %v4628 = vunpack.c.l.bf16 %v92
    %v4629 = vunpack.c.l.bf16 %v93
    %v4630 = vunpack.c.l.bf16 %v94
    %v4631 = vunpack.c.l.bf16 %v95
    %v4632 = vunpack.c.l.bf16 %v96
    %v4633 = vunpack.c.l.bf16 %v97
    %v4634 = vunpack.c.l.bf16 %v98
    %v4635 = vunpack.c.l.bf16 %v99
    %v4636 = vunpack.c.l.bf16 %v100
    %v4637 = vunpack.c.l.bf16 %v101
    %v4638 = vunpack.c.l.bf16 %v102
    %v4639 = vunpack.c.l.bf16 %v103
    %v4640 = vunpack.c.l.bf16 %v104
    %v4641 = vunpack.c.l.bf16 %v105
    %v4642 = vunpack.c.l.bf16 %v106
    %v4643 = vunpack.c.l.bf16 %v107
    %v4644 = vunpack.c.l.bf16 %v108
    %v4645 = vunpack.c.l.bf16 %v109
    %v4646 = vunpack.c.l.bf16 %v110
    %v4647 = vunpack.c.l.bf16 %v111
    %v4648 = vunpack.c.l.bf16 %v112
    %v4649 = vunpack.c.l.bf16 %v113
    %v4650 = vunpack.c.l.bf16 %v114
    %v4651 = vunpack.c.l.bf16 %v115
    %v4652 = vunpack.c.l.bf16 %v116
    %v4653 = vunpack.c.l.bf16 %v117
    %v4654 = vunpack.c.l.bf16 %v118
    %v4655 = vunpack.c.l.bf16 %v119
    %v4656 = vunpack.c.l.bf16 %v120
    %v4657 = vunpack.c.l.bf16 %v121
    %v4658 = vunpack.c.l.bf16 %v122
    %v4659 = vunpack.c.l.bf16 %v123
    %v4660 = vunpack.c.l.bf16 %v124
    %v4661 = vunpack.c.l.bf16 %v125
    %v4662 = vunpack.c.l.bf16 %v126
    %v4663 = vunpack.c.l.bf16 %v127
    %v4664 = vunpack.c.l.bf16 %v128
    %v4665 = vunpack.c.l.bf16 %v129
    %v4666 = vunpack.c.l.bf16 %v130
    %v4667 = vunpack.c.l.bf16 %v131
    %v4668 = vunpack.c.l.bf16 %v132
    %v4669 = vunpack.c.l.bf16 %v133
    %v4670 = vunpack.c.l.bf16 %v134
    %v4671 = vunpack.c.l.bf16 %v135
    %v4672 = vunpack.c.l.bf16 %v136
    %v4673 = vunpack.c.l.bf16 %v137
    %v4674 = vunpack.c.l.bf16 %v138
    %v4675 = vunpack.c.l.bf16 %v139
    %v4676 = vunpack.c.l.bf16 %v140
    %v4677 = vunpack.c.l.bf16 %v141
    %v4678 = vunpack.c.l.bf16 %v142
    %v4679 = vunpack.c.l.bf16 %v143
    %v4680 = vunpack.c.l.bf16 %v144
    %v4681 = vunpack.c.l.bf16 %v145
    %v4682 = vunpack.c.l.bf16 %v146
    %v4683 = vunpack.c.l.bf16 %v147
    %v4684 = vunpack.c.l.bf16 %v148
    %v4685 = vunpack.c.l.bf16 %v149
    %v4686 = vunpack.c.l.bf16 %v150
    %v4687 = vunpack.c.l.bf16 %v151
    %v4688 = vunpack.c.l.bf16 %v152
    %v4689 = vunpack.c.l.bf16 %v153
    %v4690 = vunpack.c.l.bf16 %v154
    %v4691 = vunpack.c.l.bf16 %v155
    %v4692 = vunpack.c.l.bf16 %v156
    %v4693 = vunpack.c.l.bf16 %v157
    %v4694 = vunpack.c.l.bf16 %v158
    %v4695 = vunpack.c.l.bf16 %v159
    %v4696 = vunpack.c.l.bf16 %v160
    %v4697 = vunpack.c.l.bf16 %v161
    %v4698 = vunpack.c.l.bf16 %v162
    %v4699 = vunpack.c.l.bf16 %v163
    %v4700 = vunpack.c.l.bf16 %v164
    %v4701 = vunpack.c.l.bf16 %v165
    %v4702 = vunpack.c.l.bf16 %v166
    %v4703 = vunpack.c.l.bf16 %v167
    %v4704 = vunpack.c.l.bf16 %v168
    %v4705 = vunpack.c.l.bf16 %v169
    %v4706 = vunpack.c.l.bf16 %v170
    %v4707 = vunpack.c.l.bf16 %v171
    %v4708 = vunpack.c.l.bf16 %v172
    %v4709 = vunpack.c.l.bf16 %v173
    %v4710 = vunpack.c.l.bf16 %v174
    %v4711 = vunpack.c.l.bf16 %v175
    %v4712 = vunpack.c.l.bf16 %v176
    %v4713 = vunpack.c.l.bf16 %v177
    %v4714 = vunpack.c.l.bf16 %v178
    %v4715 = vunpack.c.l.bf16 %v179
    %v4716 = vunpack.c.l.bf16 %v180
    %v4717 = vunpack.c.l.bf16 %v181
    %v4718 = vunpack.c.l.bf16 %v182
    %v4719 = vunpack.c.l.bf16 %v183
    %v4720 = vunpack.c.l.bf16 %v184
    %v4721 = vunpack.c.l.bf16 %v185
    %v4722 = vunpack.c.l.bf16 %v186
    %v4723 = vunpack.c.l.bf16 %v187
    %v4724 = vunpack.c.l.bf16 %v188
    %v4725 = vunpack.c.l.bf16 %v189
    %v4726 = vunpack.c.l.bf16 %v190
    %v4727 = vunpack.c.l.bf16 %v191
    %v4728 = vunpack.c.l.bf16 %v192
    %v4729 = vunpack.c.l.bf16 %v193
    %v4730 = vunpack.c.l.bf16 %v194
    %v4731 = vunpack.c.l.bf16 %v195
    %v4732 = vunpack.c.l.bf16 %v196
    %v4733 = vunpack.c.l.bf16 %v197
    %v4734 = vunpack.c.l.bf16 %v198
    %v4735 = vunpack.c.l.bf16 %v199
    %v4736 = vunpack.c.l.bf16 %v200
    %v4737 = vunpack.c.l.bf16 %v201
    %v4738 = vunpack.c.l.bf16 %v202
    %v4739 = vunpack.c.l.bf16 %v203
    %v4740 = vunpack.c.l.bf16 %v204
    %v4741 = vunpack.c.l.bf16 %v205
    %v4742 = vunpack.c.l.bf16 %v206
    %v4743 = vunpack.c.l.bf16 %v207
    %v4744 = vunpack.c.l.bf16 %v208
    %4746 = vset.pattern.permute.xlu0 0
    %4747 = vperm.xlu0 %4746, %v4482
    %v4748 = vpop.permute.xlu0 %4747
    %4751 = vset.pattern.permute.xlu0 0
    %4752 = vperm.xlu0 %4751, %v4483
    %v4753 = vpop.permute.xlu0 %4752
    %4756 = vset.pattern.permute.xlu0 0
    %4757 = vperm.xlu0 %4756, %v4484
    %v4758 = vpop.permute.xlu0 %4757
    %4761 = vset.pattern.permute.xlu0 0
    %4762 = vperm.xlu0 %4761, %v4485
    %v4763 = vpop.permute.xlu0 %4762
    %4766 = vset.pattern.permute.xlu0 0
    %4767 = vperm.xlu0 %4766, %v4486
    %v4768 = vpop.permute.xlu0 %4767
    %4771 = vset.pattern.permute.xlu0 0
    %4772 = vperm.xlu0 %4771, %v4487
    %v4773 = vpop.permute.xlu0 %4772
    %4776 = vset.pattern.permute.xlu0 0
    %4777 = vperm.xlu0 %4776, %v4488
    %v4778 = vpop.permute.xlu0 %4777
    %4781 = vset.pattern.permute.xlu0 0
    %4782 = vperm.xlu0 %4781, %v4489
    %v4783 = vpop.permute.xlu0 %4782
    %4786 = vset.pattern.permute.xlu0 0
    %4787 = vperm.xlu0 %4786, %v4490
    %v4788 = vpop.permute.xlu0 %4787
    %4791 = vset.pattern.permute.xlu0 0
    %4792 = vperm.xlu0 %4791, %v4491
    %v4793 = vpop.permute.xlu0 %4792
    %4796 = vset.pattern.permute.xlu0 0
    %4797 = vperm.xlu0 %4796, %v4492
    %v4798 = vpop.permute.xlu0 %4797
    %4801 = vset.pattern.permute.xlu0 0
    %4802 = vperm.xlu0 %4801, %v4493
    %v4803 = vpop.permute.xlu0 %4802
    %4806 = vset.pattern.permute.xlu0 0
    %4807 = vperm.xlu0 %4806, %v4494
    %v4808 = vpop.permute.xlu0 %4807
    %4811 = vset.pattern.permute.xlu0 0
    %4812 = vperm.xlu0 %4811, %v4495
    %v4813 = vpop.permute.xlu0 %4812
    %4816 = vset.pattern.permute.xlu0 0
    %4817 = vperm.xlu0 %4816, %v4496
    %v4818 = vpop.permute.xlu0 %4817
    %4821 = vset.pattern.permute.xlu0 0
    %4822 = vperm.xlu0 %4821, %v4497
    %v4823 = vpop.permute.xlu0 %4822
    %4826 = vset.pattern.permute.xlu0 0
    %4827 = vperm.xlu0 %4826, %v4499
    %v4828 = vpop.permute.xlu0 %4827
    %4831 = vset.pattern.permute.xlu0 0
    %4832 = vperm.xlu0 %4831, %v4500
    %v4833 = vpop.permute.xlu0 %4832
    %4836 = vset.pattern.permute.xlu0 0
    %4837 = vperm.xlu0 %4836, %v4501
    %v4838 = vpop.permute.xlu0 %4837
    %4841 = vset.pattern.permute.xlu0 0
    %4842 = vperm.xlu0 %4841, %v4502
    %v4843 = vpop.permute.xlu0 %4842
    %4846 = vset.pattern.permute.xlu0 0
    %4847 = vperm.xlu0 %4846, %v4503
    %v4848 = vpop.permute.xlu0 %4847
    %4851 = vset.pattern.permute.xlu0 0
    %4852 = vperm.xlu0 %4851, %v4504
    %v4853 = vpop.permute.xlu0 %4852
    %4856 = vset.pattern.permute.xlu0 0
    %4857 = vperm.xlu0 %4856, %v4505
    %v4858 = vpop.permute.xlu0 %4857
    %4861 = vset.pattern.permute.xlu0 0
    %4862 = vperm.xlu0 %4861, %v4506
    %v4863 = vpop.permute.xlu0 %4862
    %4866 = vset.pattern.permute.xlu0 0
    %4867 = vperm.xlu0 %4866, %v4507
    %v4868 = vpop.permute.xlu0 %4867
    %4871 = vset.pattern.permute.xlu0 0
    %4872 = vperm.xlu0 %4871, %v4508
    %v4873 = vpop.permute.xlu0 %4872
    %4876 = vset.pattern.permute.xlu0 0
    %4877 = vperm.xlu0 %4876, %v4509
    %v4878 = vpop.permute.xlu0 %4877
    %4881 = vset.pattern.permute.xlu0 0
    %4882 = vperm.xlu0 %4881, %v4510
    %v4883 = vpop.permute.xlu0 %4882
    %4886 = vset.pattern.permute.xlu0 0
    %4887 = vperm.xlu0 %4886, %v4511
    %v4888 = vpop.permute.xlu0 %4887
    %4891 = vset.pattern.permute.xlu0 0
    %4892 = vperm.xlu0 %4891, %v4512
    %v4893 = vpop.permute.xlu0 %4892
    %4896 = vset.pattern.permute.xlu0 0
    %4897 = vperm.xlu0 %4896, %v4513
    %v4898 = vpop.permute.xlu0 %4897
    %4901 = vset.pattern.permute.xlu0 0
    %4902 = vperm.xlu0 %4901, %v4514
    %v4903 = vpop.permute.xlu0 %4902
    %4906 = vset.pattern.permute.xlu0 0
    %4907 = vperm.xlu0 %4906, %v4516
    %v4908 = vpop.permute.xlu0 %4907
    %4911 = vset.pattern.permute.xlu0 0
    %4912 = vperm.xlu0 %4911, %v4517
    %v4913 = vpop.permute.xlu0 %4912
    %4916 = vset.pattern.permute.xlu0 0
    %4917 = vperm.xlu0 %4916, %v4518
    %v4918 = vpop.permute.xlu0 %4917
    %4921 = vset.pattern.permute.xlu0 0
    %4922 = vperm.xlu0 %4921, %v4519
    %v4923 = vpop.permute.xlu0 %4922
    %4926 = vset.pattern.permute.xlu0 0
    %4927 = vperm.xlu0 %4926, %v4520
    %v4928 = vpop.permute.xlu0 %4927
    %4931 = vset.pattern.permute.xlu0 0
    %4932 = vperm.xlu0 %4931, %v4521
    %v4933 = vpop.permute.xlu0 %4932
    %4936 = vset.pattern.permute.xlu0 0
    %4937 = vperm.xlu0 %4936, %v4522
    %v4938 = vpop.permute.xlu0 %4937
    %4941 = vset.pattern.permute.xlu0 0
    %4942 = vperm.xlu0 %4941, %v4523
    %v4943 = vpop.permute.xlu0 %4942
    %4946 = vset.pattern.permute.xlu0 0
    %4947 = vperm.xlu0 %4946, %v4524
    %v4948 = vpop.permute.xlu0 %4947
    %4951 = vset.pattern.permute.xlu0 0
    %4952 = vperm.xlu0 %4951, %v4525
    %v4953 = vpop.permute.xlu0 %4952
    %4956 = vset.pattern.permute.xlu0 0
    %4957 = vperm.xlu0 %4956, %v4526
    %v4958 = vpop.permute.xlu0 %4957
    %4961 = vset.pattern.permute.xlu0 0
    %4962 = vperm.xlu0 %4961, %v4527
    %v4963 = vpop.permute.xlu0 %4962
    %4966 = vset.pattern.permute.xlu0 0
    %4967 = vperm.xlu0 %4966, %v4528
    %v4968 = vpop.permute.xlu0 %4967
    %4971 = vset.pattern.permute.xlu0 0
    %4972 = vperm.xlu0 %4971, %v4529
    %v4973 = vpop.permute.xlu0 %4972
    %4976 = vset.pattern.permute.xlu0 0
    %4977 = vperm.xlu0 %4976, %v4530
    %v4978 = vpop.permute.xlu0 %4977
    %4981 = vset.pattern.permute.xlu0 0
    %4982 = vperm.xlu0 %4981, %v4531
    %v4983 = vpop.permute.xlu0 %4982
    %4986 = vset.pattern.permute.xlu0 0
    %4987 = vperm.xlu0 %4986, %v4533
    %v4988 = vpop.permute.xlu0 %4987
    %4991 = vset.pattern.permute.xlu0 0
    %4992 = vperm.xlu0 %4991, %v4534
    %v4993 = vpop.permute.xlu0 %4992
    %4996 = vset.pattern.permute.xlu0 0
    %4997 = vperm.xlu0 %4996, %v4535
    %v4998 = vpop.permute.xlu0 %4997
    %5001 = vset.pattern.permute.xlu0 0
    %5002 = vperm.xlu0 %5001, %v4536
    %v5003 = vpop.permute.xlu0 %5002
    %5006 = vset.pattern.permute.xlu0 0
    %5007 = vperm.xlu0 %5006, %v4537
    %v5008 = vpop.permute.xlu0 %5007
    %5011 = vset.pattern.permute.xlu0 0
    %5012 = vperm.xlu0 %5011, %v4538
    %v5013 = vpop.permute.xlu0 %5012
    %5016 = vset.pattern.permute.xlu0 0
    %5017 = vperm.xlu0 %5016, %v4539
    %v5018 = vpop.permute.xlu0 %5017
    %5021 = vset.pattern.permute.xlu0 0
    %5022 = vperm.xlu0 %5021, %v4540
    %v5023 = vpop.permute.xlu0 %5022
    %5026 = vset.pattern.permute.xlu0 0
    %5027 = vperm.xlu0 %5026, %v4541
    %v5028 = vpop.permute.xlu0 %5027
    %5031 = vset.pattern.permute.xlu0 0
    %5032 = vperm.xlu0 %5031, %v4542
    %v5033 = vpop.permute.xlu0 %5032
    %5036 = vset.pattern.permute.xlu0 0
    %5037 = vperm.xlu0 %5036, %v4543
    %v5038 = vpop.permute.xlu0 %5037
    %5041 = vset.pattern.permute.xlu0 0
    %5042 = vperm.xlu0 %5041, %v4544
    %v5043 = vpop.permute.xlu0 %5042
    %5046 = vset.pattern.permute.xlu0 0
    %5047 = vperm.xlu0 %5046, %v4545
    %v5048 = vpop.permute.xlu0 %5047
    %5051 = vset.pattern.permute.xlu0 0
    %5052 = vperm.xlu0 %5051, %v4546
    %v5053 = vpop.permute.xlu0 %5052
    %5056 = vset.pattern.permute.xlu0 0
    %5057 = vperm.xlu0 %5056, %v4547
    %v5058 = vpop.permute.xlu0 %5057
    %5061 = vset.pattern.permute.xlu0 0
    %5062 = vperm.xlu0 %5061, %v4548
    %v5063 = vpop.permute.xlu0 %5062
    %5066 = vset.pattern.permute.xlu0 0
    %5067 = vperm.xlu0 %5066, %v4550
    %v5068 = vpop.permute.xlu0 %5067
    %5071 = vset.pattern.permute.xlu0 0
    %5072 = vperm.xlu0 %5071, %v4551
    %v5073 = vpop.permute.xlu0 %5072
    %5076 = vset.pattern.permute.xlu0 0
    %5077 = vperm.xlu0 %5076, %v4552
    %v5078 = vpop.permute.xlu0 %5077
    %5081 = vset.pattern.permute.xlu0 0
    %5082 = vperm.xlu0 %5081, %v4553
    %v5083 = vpop.permute.xlu0 %5082
    %5086 = vset.pattern.permute.xlu0 0
    %5087 = vperm.xlu0 %5086, %v4554
    %v5088 = vpop.permute.xlu0 %5087
    %5091 = vset.pattern.permute.xlu0 0
    %5092 = vperm.xlu0 %5091, %v4555
    %v5093 = vpop.permute.xlu0 %5092
    %5096 = vset.pattern.permute.xlu0 0
    %5097 = vperm.xlu0 %5096, %v4556
    %v5098 = vpop.permute.xlu0 %5097
    %5101 = vset.pattern.permute.xlu0 0
    %5102 = vperm.xlu0 %5101, %v4557
    %v5103 = vpop.permute.xlu0 %5102
    %5106 = vset.pattern.permute.xlu0 0
    %5107 = vperm.xlu0 %5106, %v4558
    %v5108 = vpop.permute.xlu0 %5107
    %5111 = vset.pattern.permute.xlu0 0
    %5112 = vperm.xlu0 %5111, %v4559
    %v5113 = vpop.permute.xlu0 %5112
    %5116 = vset.pattern.permute.xlu0 0
    %5117 = vperm.xlu0 %5116, %v4560
    %v5118 = vpop.permute.xlu0 %5117
    %5121 = vset.pattern.permute.xlu0 0
    %5122 = vperm.xlu0 %5121, %v4561
    %v5123 = vpop.permute.xlu0 %5122
    %5126 = vset.pattern.permute.xlu0 0
    %5127 = vperm.xlu0 %5126, %v4562
    %v5128 = vpop.permute.xlu0 %5127
    %5131 = vset.pattern.permute.xlu0 0
    %5132 = vperm.xlu0 %5131, %v4563
    %v5133 = vpop.permute.xlu0 %5132
    %5136 = vset.pattern.permute.xlu0 0
    %5137 = vperm.xlu0 %5136, %v4564
    %v5138 = vpop.permute.xlu0 %5137
    %5141 = vset.pattern.permute.xlu0 0
    %5142 = vperm.xlu0 %5141, %v4565
    %v5143 = vpop.permute.xlu0 %5142
    %5146 = vset.pattern.permute.xlu0 0
    %5147 = vperm.xlu0 %5146, %v4567
    %v5148 = vpop.permute.xlu0 %5147
    %5151 = vset.pattern.permute.xlu0 0
    %5152 = vperm.xlu0 %5151, %v4568
    %v5153 = vpop.permute.xlu0 %5152
    %5156 = vset.pattern.permute.xlu0 0
    %5157 = vperm.xlu0 %5156, %v4569
    %v5158 = vpop.permute.xlu0 %5157
    %5161 = vset.pattern.permute.xlu0 0
    %5162 = vperm.xlu0 %5161, %v4570
    %v5163 = vpop.permute.xlu0 %5162
    %5166 = vset.pattern.permute.xlu0 0
    %5167 = vperm.xlu0 %5166, %v4571
    %v5168 = vpop.permute.xlu0 %5167
    %5171 = vset.pattern.permute.xlu0 0
    %5172 = vperm.xlu0 %5171, %v4572
    %v5173 = vpop.permute.xlu0 %5172
    %5176 = vset.pattern.permute.xlu0 0
    %5177 = vperm.xlu0 %5176, %v4573
    %v5178 = vpop.permute.xlu0 %5177
    %5181 = vset.pattern.permute.xlu0 0
    %5182 = vperm.xlu0 %5181, %v4574
    %v5183 = vpop.permute.xlu0 %5182
    %5186 = vset.pattern.permute.xlu0 0
    %5187 = vperm.xlu0 %5186, %v4575
    %v5188 = vpop.permute.xlu0 %5187
    %5191 = vset.pattern.permute.xlu0 0
    %5192 = vperm.xlu0 %5191, %v4576
    %v5193 = vpop.permute.xlu0 %5192
    %5196 = vset.pattern.permute.xlu0 0
    %5197 = vperm.xlu0 %5196, %v4577
    %v5198 = vpop.permute.xlu0 %5197
    %5201 = vset.pattern.permute.xlu0 0
    %5202 = vperm.xlu0 %5201, %v4578
    %v5203 = vpop.permute.xlu0 %5202
    %5206 = vset.pattern.permute.xlu0 0
    %5207 = vperm.xlu0 %5206, %v4579
    %v5208 = vpop.permute.xlu0 %5207
    %5211 = vset.pattern.permute.xlu0 0
    %5212 = vperm.xlu0 %5211, %v4580
    %v5213 = vpop.permute.xlu0 %5212
    %5216 = vset.pattern.permute.xlu0 0
    %5217 = vperm.xlu0 %5216, %v4581
    %v5218 = vpop.permute.xlu0 %5217
    %5221 = vset.pattern.permute.xlu0 0
    %5222 = vperm.xlu0 %5221, %v4582
    %v5223 = vpop.permute.xlu0 %5222
    %5226 = vset.pattern.permute.xlu0 0
    %5227 = vperm.xlu0 %5226, %v4584
    %v5228 = vpop.permute.xlu0 %5227
    %5231 = vset.pattern.permute.xlu0 0
    %5232 = vperm.xlu0 %5231, %v4585
    %v5233 = vpop.permute.xlu0 %5232
    %5236 = vset.pattern.permute.xlu0 0
    %5237 = vperm.xlu0 %5236, %v4586
    %v5238 = vpop.permute.xlu0 %5237
    %5241 = vset.pattern.permute.xlu0 0
    %5242 = vperm.xlu0 %5241, %v4587
    %v5243 = vpop.permute.xlu0 %5242
    %5246 = vset.pattern.permute.xlu0 0
    %5247 = vperm.xlu0 %5246, %v4588
    %v5248 = vpop.permute.xlu0 %5247
    %5251 = vset.pattern.permute.xlu0 0
    %5252 = vperm.xlu0 %5251, %v4589
    %v5253 = vpop.permute.xlu0 %5252
    %5256 = vset.pattern.permute.xlu0 0
    %5257 = vperm.xlu0 %5256, %v4590
    %v5258 = vpop.permute.xlu0 %5257
    %5261 = vset.pattern.permute.xlu0 0
    %5262 = vperm.xlu0 %5261, %v4591
    %v5263 = vpop.permute.xlu0 %5262
    %5266 = vset.pattern.permute.xlu0 0
    %5267 = vperm.xlu0 %5266, %v4592
    %v5268 = vpop.permute.xlu0 %5267
    %5271 = vset.pattern.permute.xlu0 0
    %5272 = vperm.xlu0 %5271, %v4593
    %v5273 = vpop.permute.xlu0 %5272
    %5276 = vset.pattern.permute.xlu0 0
    %5277 = vperm.xlu0 %5276, %v4594
    %v5278 = vpop.permute.xlu0 %5277
    %5281 = vset.pattern.permute.xlu0 0
    %5282 = vperm.xlu0 %5281, %v4595
    %v5283 = vpop.permute.xlu0 %5282
    %5286 = vset.pattern.permute.xlu0 0
    %5287 = vperm.xlu0 %5286, %v4596
    %v5288 = vpop.permute.xlu0 %5287
    %5291 = vset.pattern.permute.xlu0 0
    %5292 = vperm.xlu0 %5291, %v4597
    %v5293 = vpop.permute.xlu0 %5292
    %5296 = vset.pattern.permute.xlu0 0
    %5297 = vperm.xlu0 %5296, %v4598
    %v5298 = vpop.permute.xlu0 %5297
    %5301 = vset.pattern.permute.xlu0 0
    %5302 = vperm.xlu0 %5301, %v4599
    %v5303 = vpop.permute.xlu0 %5302
    %5306 = vset.pattern.permute.xlu0 0
    %5307 = vperm.xlu0 %5306, %v4601
    %v5308 = vpop.permute.xlu0 %5307
    %5311 = vset.pattern.permute.xlu0 0
    %5312 = vperm.xlu0 %5311, %v4602
    %v5313 = vpop.permute.xlu0 %5312
    %5316 = vset.pattern.permute.xlu0 0
    %5317 = vperm.xlu0 %5316, %v4603
    %v5318 = vpop.permute.xlu0 %5317
    %5321 = vset.pattern.permute.xlu0 0
    %5322 = vperm.xlu0 %5321, %v4604
    %v5323 = vpop.permute.xlu0 %5322
    %5326 = vset.pattern.permute.xlu0 0
    %5327 = vperm.xlu0 %5326, %v4605
    %v5328 = vpop.permute.xlu0 %5327
    %5331 = vset.pattern.permute.xlu0 0
    %5332 = vperm.xlu0 %5331, %v4606
    %v5333 = vpop.permute.xlu0 %5332
    %5336 = vset.pattern.permute.xlu0 0
    %5337 = vperm.xlu0 %5336, %v4607
    %v5338 = vpop.permute.xlu0 %5337
    %5341 = vset.pattern.permute.xlu0 0
    %5342 = vperm.xlu0 %5341, %v4608
    %v5343 = vpop.permute.xlu0 %5342
    %5346 = vset.pattern.permute.xlu0 0
    %5347 = vperm.xlu0 %5346, %v4609
    %v5348 = vpop.permute.xlu0 %5347
    %5351 = vset.pattern.permute.xlu0 0
    %5352 = vperm.xlu0 %5351, %v4610
    %v5353 = vpop.permute.xlu0 %5352
    %5356 = vset.pattern.permute.xlu0 0
    %5357 = vperm.xlu0 %5356, %v4611
    %v5358 = vpop.permute.xlu0 %5357
    %5361 = vset.pattern.permute.xlu0 0
    %5362 = vperm.xlu0 %5361, %v4612
    %v5363 = vpop.permute.xlu0 %5362
    %5366 = vset.pattern.permute.xlu0 0
    %5367 = vperm.xlu0 %5366, %v4613
    %v5368 = vpop.permute.xlu0 %5367
    %5371 = vset.pattern.permute.xlu0 0
    %5372 = vperm.xlu0 %5371, %v4614
    %v5373 = vpop.permute.xlu0 %5372
    %5376 = vset.pattern.permute.xlu0 0
    %5377 = vperm.xlu0 %5376, %v4615
    %v5378 = vpop.permute.xlu0 %5377
    %5381 = vset.pattern.permute.xlu0 0
    %5382 = vperm.xlu0 %5381, %v4616
    %v5383 = vpop.permute.xlu0 %5382
    %v5385 = vmul.f32 %v4617, %v4748
    %v5386 = vmul.f32 %v4618, %v4753
    %v5387 = vmul.f32 %v4619, %v4758
    %v5388 = vmul.f32 %v4620, %v4763
    %v5389 = vmul.f32 %v4621, %v4768
    %v5390 = vmul.f32 %v4622, %v4773
    %v5391 = vmul.f32 %v4623, %v4778
    %v5392 = vmul.f32 %v4624, %v4783
    %v5393 = vmul.f32 %v4625, %v4788
    %v5394 = vmul.f32 %v4626, %v4793
    %v5395 = vmul.f32 %v4627, %v4798
    %v5396 = vmul.f32 %v4628, %v4803
    %v5397 = vmul.f32 %v4629, %v4808
    %v5398 = vmul.f32 %v4630, %v4813
    %v5399 = vmul.f32 %v4631, %v4818
    %v5400 = vmul.f32 %v4632, %v4823
    %v5401 = vmul.f32 %v4633, %v4828
    %v5402 = vmul.f32 %v4634, %v4833
    %v5403 = vmul.f32 %v4635, %v4838
    %v5404 = vmul.f32 %v4636, %v4843
    %v5405 = vmul.f32 %v4637, %v4848
    %v5406 = vmul.f32 %v4638, %v4853
    %v5407 = vmul.f32 %v4639, %v4858
    %v5408 = vmul.f32 %v4640, %v4863
    %v5409 = vmul.f32 %v4641, %v4868
    %v5410 = vmul.f32 %v4642, %v4873
    %v5411 = vmul.f32 %v4643, %v4878
    %v5412 = vmul.f32 %v4644, %v4883
    %v5413 = vmul.f32 %v4645, %v4888
    %v5414 = vmul.f32 %v4646, %v4893
    %v5415 = vmul.f32 %v4647, %v4898
    %v5416 = vmul.f32 %v4648, %v4903
    %v5417 = vmul.f32 %v4649, %v4908
    %v5418 = vmul.f32 %v4650, %v4913
    %v5419 = vmul.f32 %v4651, %v4918
    %v5420 = vmul.f32 %v4652, %v4923
    %v5421 = vmul.f32 %v4653, %v4928
    %v5422 = vmul.f32 %v4654, %v4933
    %v5423 = vmul.f32 %v4655, %v4938
    %v5424 = vmul.f32 %v4656, %v4943
    %v5425 = vmul.f32 %v4657, %v4948
    %v5426 = vmul.f32 %v4658, %v4953
    %v5427 = vmul.f32 %v4659, %v4958
    %v5428 = vmul.f32 %v4660, %v4963
    %v5429 = vmul.f32 %v4661, %v4968
    %v5430 = vmul.f32 %v4662, %v4973
    %v5431 = vmul.f32 %v4663, %v4978
    %v5432 = vmul.f32 %v4664, %v4983
    %v5433 = vmul.f32 %v4665, %v4988
    %v5434 = vmul.f32 %v4666, %v4993
    %v5435 = vmul.f32 %v4667, %v4998
    %v5436 = vmul.f32 %v4668, %v5003
    %v5437 = vmul.f32 %v4669, %v5008
    %v5438 = vmul.f32 %v4670, %v5013
    %v5439 = vmul.f32 %v4671, %v5018
    %v5440 = vmul.f32 %v4672, %v5023
    %v5441 = vmul.f32 %v4673, %v5028
    %v5442 = vmul.f32 %v4674, %v5033
    %v5443 = vmul.f32 %v4675, %v5038
    %v5444 = vmul.f32 %v4676, %v5043
    %v5445 = vmul.f32 %v4677, %v5048
    %v5446 = vmul.f32 %v4678, %v5053
    %v5447 = vmul.f32 %v4679, %v5058
    %v5448 = vmul.f32 %v4680, %v5063
    %v5449 = vmul.f32 %v4681, %v5068
    %v5450 = vmul.f32 %v4682, %v5073
    %v5451 = vmul.f32 %v4683, %v5078
    %v5452 = vmul.f32 %v4684, %v5083
    %v5453 = vmul.f32 %v4685, %v5088
    %v5454 = vmul.f32 %v4686, %v5093
    %v5455 = vmul.f32 %v4687, %v5098
    %v5456 = vmul.f32 %v4688, %v5103
    %v5457 = vmul.f32 %v4689, %v5108
    %v5458 = vmul.f32 %v4690, %v5113
    %v5459 = vmul.f32 %v4691, %v5118
    %v5460 = vmul.f32 %v4692, %v5123
    %v5461 = vmul.f32 %v4693, %v5128
    %v5462 = vmul.f32 %v4694, %v5133
    %v5463 = vmul.f32 %v4695, %v5138
    %v5464 = vmul.f32 %v4696, %v5143
    %v5465 = vmul.f32 %v4697, %v5148
    %v5466 = vmul.f32 %v4698, %v5153
    %v5467 = vmul.f32 %v4699, %v5158
    %v5468 = vmul.f32 %v4700, %v5163
    %v5469 = vmul.f32 %v4701, %v5168
    %v5470 = vmul.f32 %v4702, %v5173
    %v5471 = vmul.f32 %v4703, %v5178
    %v5472 = vmul.f32 %v4704, %v5183
    %v5473 = vmul.f32 %v4705, %v5188
    %v5474 = vmul.f32 %v4706, %v5193
    %v5475 = vmul.f32 %v4707, %v5198
    %v5476 = vmul.f32 %v4708, %v5203
    %v5477 = vmul.f32 %v4709, %v5208
    %v5478 = vmul.f32 %v4710, %v5213
    %v5479 = vmul.f32 %v4711, %v5218
    %v5480 = vmul.f32 %v4712, %v5223
    %v5481 = vmul.f32 %v4713, %v5228
    %v5482 = vmul.f32 %v4714, %v5233
    %v5483 = vmul.f32 %v4715, %v5238
    %v5484 = vmul.f32 %v4716, %v5243
    %v5485 = vmul.f32 %v4717, %v5248
    %v5486 = vmul.f32 %v4718, %v5253
    %v5487 = vmul.f32 %v4719, %v5258
    %v5488 = vmul.f32 %v4720, %v5263
    %v5489 = vmul.f32 %v4721, %v5268
    %v5490 = vmul.f32 %v4722, %v5273
    %v5491 = vmul.f32 %v4723, %v5278
    %v5492 = vmul.f32 %v4724, %v5283
    %v5493 = vmul.f32 %v4725, %v5288
    %v5494 = vmul.f32 %v4726, %v5293
    %v5495 = vmul.f32 %v4727, %v5298
    %v5496 = vmul.f32 %v4728, %v5303
    %v5497 = vmul.f32 %v4729, %v5308
    %v5498 = vmul.f32 %v4730, %v5313
    %v5499 = vmul.f32 %v4731, %v5318
    %v5500 = vmul.f32 %v4732, %v5323
    %v5501 = vmul.f32 %v4733, %v5328
    %v5502 = vmul.f32 %v4734, %v5333
    %v5503 = vmul.f32 %v4735, %v5338
    %v5504 = vmul.f32 %v4736, %v5343
    %v5505 = vmul.f32 %v4737, %v5348
    %v5506 = vmul.f32 %v4738, %v5353
    %v5507 = vmul.f32 %v4739, %v5358
    %v5508 = vmul.f32 %v4740, %v5363
    %v5509 = vmul.f32 %v4741, %v5368
    %v5510 = vmul.f32 %v4742, %v5373
    %v5511 = vmul.f32 %v4743, %v5378
    %v5512 = vmul.f32 %v4744, %v5383
    %v5513 = vadd.f32 %v5385, %v5386
    %v5514 = vadd.f32 %v5513, %v5387
    %v5515 = vadd.f32 %v5514, %v5388
    %v5516 = vadd.f32 %v5515, %v5389
    %v5517 = vadd.f32 %v5516, %v5390
    %v5518 = vadd.f32 %v5517, %v5391
    %v5519 = vadd.f32 %v5518, %v5392
    %v5520 = vadd.f32 %v5519, %v5393
    %v5521 = vadd.f32 %v5520, %v5394
    %v5522 = vadd.f32 %v5521, %v5395
    %v5523 = vadd.f32 %v5522, %v5396
    %v5524 = vadd.f32 %v5523, %v5397
    %v5525 = vadd.f32 %v5524, %v5398
    %v5526 = vadd.f32 %v5525, %v5399
    %v5527 = vadd.f32 %v5526, %v5400
    %v5528 = vrot.slane %v5527, 4
    %v5529 = vadd.f32 %v5527, %v5528
    %v5530 = vrot.slane %v5529, 2
    %v5531 = vadd.f32 %v5529, %v5530
    %v5532 = vrot.slane %v5531, 1
    %v5533 = vadd.f32 %v5531, %v5532
    %v5534 = vadd.f32 %v5401, %v5402
    %v5535 = vadd.f32 %v5534, %v5403
    %v5536 = vadd.f32 %v5535, %v5404
    %v5537 = vadd.f32 %v5536, %v5405
    %v5538 = vadd.f32 %v5537, %v5406
    %v5539 = vadd.f32 %v5538, %v5407
    %v5540 = vadd.f32 %v5539, %v5408
    %v5541 = vadd.f32 %v5540, %v5409
    %v5542 = vadd.f32 %v5541, %v5410
    %v5543 = vadd.f32 %v5542, %v5411
    %v5544 = vadd.f32 %v5543, %v5412
    %v5545 = vadd.f32 %v5544, %v5413
    %v5546 = vadd.f32 %v5545, %v5414
    %v5547 = vadd.f32 %v5546, %v5415
    %v5548 = vadd.f32 %v5547, %v5416
    %v5549 = vrot.slane %v5548, 4
    %v5550 = vadd.f32 %v5548, %v5549
    %v5551 = vrot.slane %v5550, 2
    %v5552 = vadd.f32 %v5550, %v5551
    %v5553 = vrot.slane %v5552, 1
    %v5554 = vadd.f32 %v5552, %v5553
    %v5555 = vadd.f32 %v5417, %v5418
    %v5556 = vadd.f32 %v5555, %v5419
    %v5557 = vadd.f32 %v5556, %v5420
    %v5558 = vadd.f32 %v5557, %v5421
    %v5559 = vadd.f32 %v5558, %v5422
    %v5560 = vadd.f32 %v5559, %v5423
    %v5561 = vadd.f32 %v5560, %v5424
    %v5562 = vadd.f32 %v5561, %v5425
    %v5563 = vadd.f32 %v5562, %v5426
    %v5564 = vadd.f32 %v5563, %v5427
    %v5565 = vadd.f32 %v5564, %v5428
    %v5566 = vadd.f32 %v5565, %v5429
    %v5567 = vadd.f32 %v5566, %v5430
    %v5568 = vadd.f32 %v5567, %v5431
    %v5569 = vadd.f32 %v5568, %v5432
    %v5570 = vrot.slane %v5569, 4
    %v5571 = vadd.f32 %v5569, %v5570
    %v5572 = vrot.slane %v5571, 2
    %v5573 = vadd.f32 %v5571, %v5572
    %v5574 = vrot.slane %v5573, 1
    %v5575 = vadd.f32 %v5573, %v5574
    %v5576 = vadd.f32 %v5433, %v5434
    %v5577 = vadd.f32 %v5576, %v5435
    %v5578 = vadd.f32 %v5577, %v5436
    %v5579 = vadd.f32 %v5578, %v5437
    %v5580 = vadd.f32 %v5579, %v5438
    %v5581 = vadd.f32 %v5580, %v5439
    %v5582 = vadd.f32 %v5581, %v5440
    %v5583 = vadd.f32 %v5582, %v5441
    %v5584 = vadd.f32 %v5583, %v5442
    %v5585 = vadd.f32 %v5584, %v5443
    %v5586 = vadd.f32 %v5585, %v5444
    %v5587 = vadd.f32 %v5586, %v5445
    %v5588 = vadd.f32 %v5587, %v5446
    %v5589 = vadd.f32 %v5588, %v5447
    %v5590 = vadd.f32 %v5589, %v5448
    %v5591 = vrot.slane %v5590, 4
    %v5592 = vadd.f32 %v5590, %v5591
    %v5593 = vrot.slane %v5592, 2
    %v5594 = vadd.f32 %v5592, %v5593
    %v5595 = vrot.slane %v5594, 1
    %v5596 = vadd.f32 %v5594, %v5595
    %v5597 = vadd.f32 %v5449, %v5450
    %v5598 = vadd.f32 %v5597, %v5451
    %v5599 = vadd.f32 %v5598, %v5452
    %v5600 = vadd.f32 %v5599, %v5453
    %v5601 = vadd.f32 %v5600, %v5454
    %v5602 = vadd.f32 %v5601, %v5455
    %v5603 = vadd.f32 %v5602, %v5456
    %v5604 = vadd.f32 %v5603, %v5457
    %v5605 = vadd.f32 %v5604, %v5458
    %v5606 = vadd.f32 %v5605, %v5459
    %v5607 = vadd.f32 %v5606, %v5460
    %v5608 = vadd.f32 %v5607, %v5461
    %v5609 = vadd.f32 %v5608, %v5462
    %v5610 = vadd.f32 %v5609, %v5463
    %v5611 = vadd.f32 %v5610, %v5464
    %v5612 = vrot.slane %v5611, 4
    %v5613 = vadd.f32 %v5611, %v5612
    %v5614 = vrot.slane %v5613, 2
    %v5615 = vadd.f32 %v5613, %v5614
    %v5616 = vrot.slane %v5615, 1
    %v5617 = vadd.f32 %v5615, %v5616
    %v5618 = vadd.f32 %v5465, %v5466
    %v5619 = vadd.f32 %v5618, %v5467
    %v5620 = vadd.f32 %v5619, %v5468
    %v5621 = vadd.f32 %v5620, %v5469
    %v5622 = vadd.f32 %v5621, %v5470
    %v5623 = vadd.f32 %v5622, %v5471
    %v5624 = vadd.f32 %v5623, %v5472
    %v5625 = vadd.f32 %v5624, %v5473
    %v5626 = vadd.f32 %v5625, %v5474
    %v5627 = vadd.f32 %v5626, %v5475
    %v5628 = vadd.f32 %v5627, %v5476
    %v5629 = vadd.f32 %v5628, %v5477
    %v5630 = vadd.f32 %v5629, %v5478
    %v5631 = vadd.f32 %v5630, %v5479
    %v5632 = vadd.f32 %v5631, %v5480
    %v5633 = vrot.slane %v5632, 4
    %v5634 = vadd.f32 %v5632, %v5633
    %v5635 = vrot.slane %v5634, 2
    %v5636 = vadd.f32 %v5634, %v5635
    %v5637 = vrot.slane %v5636, 1
    %v5638 = vadd.f32 %v5636, %v5637
    %v5639 = vadd.f32 %v5481, %v5482
    %v5640 = vadd.f32 %v5639, %v5483
    %v5641 = vadd.f32 %v5640, %v5484
    %v5642 = vadd.f32 %v5641, %v5485
    %v5643 = vadd.f32 %v5642, %v5486
    %v5644 = vadd.f32 %v5643, %v5487
    %v5645 = vadd.f32 %v5644, %v5488
    %v5646 = vadd.f32 %v5645, %v5489
    %v5647 = vadd.f32 %v5646, %v5490
    %v5648 = vadd.f32 %v5647, %v5491
    %v5649 = vadd.f32 %v5648, %v5492
    %v5650 = vadd.f32 %v5649, %v5493
    %v5651 = vadd.f32 %v5650, %v5494
    %v5652 = vadd.f32 %v5651, %v5495
    %v5653 = vadd.f32 %v5652, %v5496
    %v5654 = vrot.slane %v5653, 4
    %v5655 = vadd.f32 %v5653, %v5654
    %v5656 = vrot.slane %v5655, 2
    %v5657 = vadd.f32 %v5655, %v5656
    %v5658 = vrot.slane %v5657, 1
    %v5659 = vadd.f32 %v5657, %v5658
    %v5660 = vadd.f32 %v5497, %v5498
    %v5661 = vadd.f32 %v5660, %v5499
    %v5662 = vadd.f32 %v5661, %v5500
    %v5663 = vadd.f32 %v5662, %v5501
    %v5664 = vadd.f32 %v5663, %v5502
    %v5665 = vadd.f32 %v5664, %v5503
    %v5666 = vadd.f32 %v5665, %v5504
    %v5667 = vadd.f32 %v5666, %v5505
    %v5668 = vadd.f32 %v5667, %v5506
    %v5669 = vadd.f32 %v5668, %v5507
    %v5670 = vadd.f32 %v5669, %v5508
    %v5671 = vadd.f32 %v5670, %v5509
    %v5672 = vadd.f32 %v5671, %v5510
    %v5673 = vadd.f32 %v5672, %v5511
    %v5674 = vadd.f32 %v5673, %v5512
    %v5675 = vrot.slane %v5674, 4
    %v5676 = vadd.f32 %v5674, %v5675
    %v5677 = vrot.slane %v5676, 2
    %v5678 = vadd.f32 %v5676, %v5677
    %v5679 = vrot.slane %v5678, 1
    %v5680 = vadd.f32 %v5678, %v5679
    %v5689 = vsel %vm2844, %v5554, %v5533
    %v5690 = vsel %vm2846, %v5575, %v5689
    %v5691 = vsel %vm2848, %v5596, %v5690
    %v5692 = vsel %vm2850, %v5617, %v5691
    %v5693 = vsel %vm2852, %v5638, %v5692
    %v5694 = vsel %vm2854, %v5659, %v5693
    %v5695 = vsel %vm2856, %v5680, %v5694
    %5697 = vst [vmem:[#allocation10] sm:$0xff] %v5695
    %v5698 = vlaneseq
    %v5699 = vshrl.u32 %v5698, 7
    %v5700 = vsub.s32 %v2181, %v5699
    %v5701 = vrot.slane %v4748, %v5700
    %v5702 = vlaneseq
    %v5703 = vshrl.u32 %v5702, 7
    %v5704 = vsub.s32 %v2186, %v5703
    %v5705 = vrot.slane %v4753, %v5704
    %v5706 = vsel %vm2191, %v5705, %v5701
    %v5707 = vlaneseq
    %v5708 = vshrl.u32 %v5707, 7
    %v5709 = vsub.s32 %v2193, %v5708
    %v5710 = vrot.slane %v4758, %v5709
    %v5711 = vsel %vm2198, %v5710, %v5706
    %v5712 = vlaneseq
    %v5713 = vshrl.u32 %v5712, 7
    %v5714 = vsub.s32 %v2200, %v5713
    %v5715 = vrot.slane %v4763, %v5714
    %v5716 = vsel %vm2205, %v5715, %v5711
    %v5717 = vlaneseq
    %v5718 = vshrl.u32 %v5717, 7
    %v5719 = vsub.s32 %v2207, %v5718
    %v5720 = vrot.slane %v4768, %v5719
    %v5721 = vsel %vm2212, %v5720, %v5716
    %v5722 = vlaneseq
    %v5723 = vshrl.u32 %v5722, 7
    %v5724 = vsub.s32 %v2214, %v5723
    %v5725 = vrot.slane %v4773, %v5724
    %v5726 = vsel %vm2219, %v5725, %v5721
    %v5727 = vlaneseq
    %v5728 = vshrl.u32 %v5727, 7
    %v5729 = vsub.s32 %v2221, %v5728
    %v5730 = vrot.slane %v4778, %v5729
    %v5731 = vsel %vm2226, %v5730, %v5726
    %v5732 = vlaneseq
    %v5733 = vshrl.u32 %v5732, 7
    %v5734 = vsub.s32 %v2228, %v5733
    %v5735 = vrot.slane %v4783, %v5734
    %v5736 = vsel %vm2233, %v5735, %v5731
    %v5737 = vlaneseq
    %v5738 = vshrl.u32 %v5737, 7
    %v5739 = vsub.s32 %v2235, %v5738
    %v5740 = vrot.slane %v4788, %v5739
    %v5741 = vsel %vm2240, %v5740, %v5736
    %v5742 = vlaneseq
    %v5743 = vshrl.u32 %v5742, 7
    %v5744 = vsub.s32 %v2242, %v5743
    %v5745 = vrot.slane %v4793, %v5744
    %v5746 = vsel %vm2247, %v5745, %v5741
    %v5747 = vlaneseq
    %v5748 = vshrl.u32 %v5747, 7
    %v5749 = vsub.s32 %v2249, %v5748
    %v5750 = vrot.slane %v4798, %v5749
    %v5751 = vsel %vm2254, %v5750, %v5746
    %v5752 = vlaneseq
    %v5753 = vshrl.u32 %v5752, 7
    %v5754 = vsub.s32 %v2256, %v5753
    %v5755 = vrot.slane %v4803, %v5754
    %v5756 = vsel %vm2261, %v5755, %v5751
    %v5757 = vlaneseq
    %v5758 = vshrl.u32 %v5757, 7
    %v5759 = vsub.s32 %v2263, %v5758
    %v5760 = vrot.slane %v4808, %v5759
    %v5761 = vsel %vm2268, %v5760, %v5756
    %v5762 = vlaneseq
    %v5763 = vshrl.u32 %v5762, 7
    %v5764 = vsub.s32 %v2270, %v5763
    %v5765 = vrot.slane %v4813, %v5764
    %v5766 = vsel %vm2275, %v5765, %v5761
    %v5767 = vlaneseq
    %v5768 = vshrl.u32 %v5767, 7
    %v5769 = vsub.s32 %v2277, %v5768
    %v5770 = vrot.slane %v4818, %v5769
    %v5771 = vsel %vm2282, %v5770, %v5766
    %v5772 = vlaneseq
    %v5773 = vshrl.u32 %v5772, 7
    %v5774 = vsub.s32 %v2284, %v5773
    %v5775 = vrot.slane %v4823, %v5774
    %v5776 = vsel %vm2289, %v5775, %v5771
    %v5777 = vlaneseq
    %v5778 = vshrl.u32 %v5777, 7
    %v5779 = vsub.s32 %v2181, %v5778
    %v5780 = vrot.slane %v4828, %v5779
    %v5781 = vlaneseq
    %v5782 = vshrl.u32 %v5781, 7
    %v5783 = vsub.s32 %v2186, %v5782
    %v5784 = vrot.slane %v4833, %v5783
    %v5785 = vsel %vm2191, %v5784, %v5780
    %v5786 = vlaneseq
    %v5787 = vshrl.u32 %v5786, 7
    %v5788 = vsub.s32 %v2193, %v5787
    %v5789 = vrot.slane %v4838, %v5788
    %v5790 = vsel %vm2198, %v5789, %v5785
    %v5791 = vlaneseq
    %v5792 = vshrl.u32 %v5791, 7
    %v5793 = vsub.s32 %v2200, %v5792
    %v5794 = vrot.slane %v4843, %v5793
    %v5795 = vsel %vm2205, %v5794, %v5790
    %v5796 = vlaneseq
    %v5797 = vshrl.u32 %v5796, 7
    %v5798 = vsub.s32 %v2207, %v5797
    %v5799 = vrot.slane %v4848, %v5798
    %v5800 = vsel %vm2212, %v5799, %v5795
    %v5801 = vlaneseq
    %v5802 = vshrl.u32 %v5801, 7
    %v5803 = vsub.s32 %v2214, %v5802
    %v5804 = vrot.slane %v4853, %v5803
    %v5805 = vsel %vm2219, %v5804, %v5800
    %v5806 = vlaneseq
    %v5807 = vshrl.u32 %v5806, 7
    %v5808 = vsub.s32 %v2221, %v5807
    %v5809 = vrot.slane %v4858, %v5808
    %v5810 = vsel %vm2226, %v5809, %v5805
    %v5811 = vlaneseq
    %v5812 = vshrl.u32 %v5811, 7
    %v5813 = vsub.s32 %v2228, %v5812
    %v5814 = vrot.slane %v4863, %v5813
    %v5815 = vsel %vm2233, %v5814, %v5810
    %v5816 = vlaneseq
    %v5817 = vshrl.u32 %v5816, 7
    %v5818 = vsub.s32 %v2235, %v5817
    %v5819 = vrot.slane %v4868, %v5818
    %v5820 = vsel %vm2240, %v5819, %v5815
    %v5821 = vlaneseq
    %v5822 = vshrl.u32 %v5821, 7
    %v5823 = vsub.s32 %v2242, %v5822
    %v5824 = vrot.slane %v4873, %v5823
    %v5825 = vsel %vm2247, %v5824, %v5820
    %v5826 = vlaneseq
    %v5827 = vshrl.u32 %v5826, 7
    %v5828 = vsub.s32 %v2249, %v5827
    %v5829 = vrot.slane %v4878, %v5828
    %v5830 = vsel %vm2254, %v5829, %v5825
    %v5831 = vlaneseq
    %v5832 = vshrl.u32 %v5831, 7
    %v5833 = vsub.s32 %v2256, %v5832
    %v5834 = vrot.slane %v4883, %v5833
    %v5835 = vsel %vm2261, %v5834, %v5830
    %v5836 = vlaneseq
    %v5837 = vshrl.u32 %v5836, 7
    %v5838 = vsub.s32 %v2263, %v5837
    %v5839 = vrot.slane %v4888, %v5838
    %v5840 = vsel %vm2268, %v5839, %v5835
    %v5841 = vlaneseq
    %v5842 = vshrl.u32 %v5841, 7
    %v5843 = vsub.s32 %v2270, %v5842
    %v5844 = vrot.slane %v4893, %v5843
    %v5845 = vsel %vm2275, %v5844, %v5840
    %v5846 = vlaneseq
    %v5847 = vshrl.u32 %v5846, 7
    %v5848 = vsub.s32 %v2277, %v5847
    %v5849 = vrot.slane %v4898, %v5848
    %v5850 = vsel %vm2282, %v5849, %v5845
    %v5851 = vlaneseq
    %v5852 = vshrl.u32 %v5851, 7
    %v5853 = vsub.s32 %v2284, %v5852
    %v5854 = vrot.slane %v4903, %v5853
    %v5855 = vsel %vm2289, %v5854, %v5850
    %v5856 = vlaneseq
    %v5857 = vshrl.u32 %v5856, 7
    %v5858 = vsub.s32 %v2181, %v5857
    %v5859 = vrot.slane %v4908, %v5858
    %v5860 = vlaneseq
    %v5861 = vshrl.u32 %v5860, 7
    %v5862 = vsub.s32 %v2186, %v5861
    %v5863 = vrot.slane %v4913, %v5862
    %v5864 = vsel %vm2191, %v5863, %v5859
    %v5865 = vlaneseq
    %v5866 = vshrl.u32 %v5865, 7
    %v5867 = vsub.s32 %v2193, %v5866
    %v5868 = vrot.slane %v4918, %v5867
    %v5869 = vsel %vm2198, %v5868, %v5864
    %v5870 = vlaneseq
    %v5871 = vshrl.u32 %v5870, 7
    %v5872 = vsub.s32 %v2200, %v5871
    %v5873 = vrot.slane %v4923, %v5872
    %v5874 = vsel %vm2205, %v5873, %v5869
    %v5875 = vlaneseq
    %v5876 = vshrl.u32 %v5875, 7
    %v5877 = vsub.s32 %v2207, %v5876
    %v5878 = vrot.slane %v4928, %v5877
    %v5879 = vsel %vm2212, %v5878, %v5874
    %v5880 = vlaneseq
    %v5881 = vshrl.u32 %v5880, 7
    %v5882 = vsub.s32 %v2214, %v5881
    %v5883 = vrot.slane %v4933, %v5882
    %v5884 = vsel %vm2219, %v5883, %v5879
    %v5885 = vlaneseq
    %v5886 = vshrl.u32 %v5885, 7
    %v5887 = vsub.s32 %v2221, %v5886
    %v5888 = vrot.slane %v4938, %v5887
    %v5889 = vsel %vm2226, %v5888, %v5884
    %v5890 = vlaneseq
    %v5891 = vshrl.u32 %v5890, 7
    %v5892 = vsub.s32 %v2228, %v5891
    %v5893 = vrot.slane %v4943, %v5892
    %v5894 = vsel %vm2233, %v5893, %v5889
    %v5895 = vlaneseq
    %v5896 = vshrl.u32 %v5895, 7
    %v5897 = vsub.s32 %v2235, %v5896
    %v5898 = vrot.slane %v4948, %v5897
    %v5899 = vsel %vm2240, %v5898, %v5894
    %v5900 = vlaneseq
    %v5901 = vshrl.u32 %v5900, 7
    %v5902 = vsub.s32 %v2242, %v5901
    %v5903 = vrot.slane %v4953, %v5902
    %v5904 = vsel %vm2247, %v5903, %v5899
    %v5905 = vlaneseq
    %v5906 = vshrl.u32 %v5905, 7
    %v5907 = vsub.s32 %v2249, %v5906
    %v5908 = vrot.slane %v4958, %v5907
    %v5909 = vsel %vm2254, %v5908, %v5904
    %v5910 = vlaneseq
    %v5911 = vshrl.u32 %v5910, 7
    %v5912 = vsub.s32 %v2256, %v5911
    %v5913 = vrot.slane %v4963, %v5912
    %v5914 = vsel %vm2261, %v5913, %v5909
    %v5915 = vlaneseq
    %v5916 = vshrl.u32 %v5915, 7
    %v5917 = vsub.s32 %v2263, %v5916
    %v5918 = vrot.slane %v4968, %v5917
    %v5919 = vsel %vm2268, %v5918, %v5914
    %v5920 = vlaneseq
    %v5921 = vshrl.u32 %v5920, 7
    %v5922 = vsub.s32 %v2270, %v5921
    %v5923 = vrot.slane %v4973, %v5922
    %v5924 = vsel %vm2275, %v5923, %v5919
    %v5925 = vlaneseq
    %v5926 = vshrl.u32 %v5925, 7
    %v5927 = vsub.s32 %v2277, %v5926
    %v5928 = vrot.slane %v4978, %v5927
    %v5929 = vsel %vm2282, %v5928, %v5924
    %v5930 = vlaneseq
    %v5931 = vshrl.u32 %v5930, 7
    %v5932 = vsub.s32 %v2284, %v5931
    %v5933 = vrot.slane %v4983, %v5932
    %v5934 = vsel %vm2289, %v5933, %v5929
    %v5935 = vlaneseq
    %v5936 = vshrl.u32 %v5935, 7
    %v5937 = vsub.s32 %v2181, %v5936
    %v5938 = vrot.slane %v4988, %v5937
    %v5939 = vlaneseq
    %v5940 = vshrl.u32 %v5939, 7
    %v5941 = vsub.s32 %v2186, %v5940
    %v5942 = vrot.slane %v4993, %v5941
    %v5943 = vsel %vm2191, %v5942, %v5938
    %v5944 = vlaneseq
    %v5945 = vshrl.u32 %v5944, 7
    %v5946 = vsub.s32 %v2193, %v5945
    %v5947 = vrot.slane %v4998, %v5946
    %v5948 = vsel %vm2198, %v5947, %v5943
    %v5949 = vlaneseq
    %v5950 = vshrl.u32 %v5949, 7
    %v5951 = vsub.s32 %v2200, %v5950
    %v5952 = vrot.slane %v5003, %v5951
    %v5953 = vsel %vm2205, %v5952, %v5948
    %v5954 = vlaneseq
    %v5955 = vshrl.u32 %v5954, 7
    %v5956 = vsub.s32 %v2207, %v5955
    %v5957 = vrot.slane %v5008, %v5956
    %v5958 = vsel %vm2212, %v5957, %v5953
    %v5959 = vlaneseq
    %v5960 = vshrl.u32 %v5959, 7
    %v5961 = vsub.s32 %v2214, %v5960
    %v5962 = vrot.slane %v5013, %v5961
    %v5963 = vsel %vm2219, %v5962, %v5958
    %v5964 = vlaneseq
    %v5965 = vshrl.u32 %v5964, 7
    %v5966 = vsub.s32 %v2221, %v5965
    %v5967 = vrot.slane %v5018, %v5966
    %v5968 = vsel %vm2226, %v5967, %v5963
    %v5969 = vlaneseq
    %v5970 = vshrl.u32 %v5969, 7
    %v5971 = vsub.s32 %v2228, %v5970
    %v5972 = vrot.slane %v5023, %v5971
    %v5973 = vsel %vm2233, %v5972, %v5968
    %v5974 = vlaneseq
    %v5975 = vshrl.u32 %v5974, 7
    %v5976 = vsub.s32 %v2235, %v5975
    %v5977 = vrot.slane %v5028, %v5976
    %v5978 = vsel %vm2240, %v5977, %v5973
    %v5979 = vlaneseq
    %v5980 = vshrl.u32 %v5979, 7
    %v5981 = vsub.s32 %v2242, %v5980
    %v5982 = vrot.slane %v5033, %v5981
    %v5983 = vsel %vm2247, %v5982, %v5978
    %v5984 = vlaneseq
    %v5985 = vshrl.u32 %v5984, 7
    %v5986 = vsub.s32 %v2249, %v5985
    %v5987 = vrot.slane %v5038, %v5986
    %v5988 = vsel %vm2254, %v5987, %v5983
    %v5989 = vlaneseq
    %v5990 = vshrl.u32 %v5989, 7
    %v5991 = vsub.s32 %v2256, %v5990
    %v5992 = vrot.slane %v5043, %v5991
    %v5993 = vsel %vm2261, %v5992, %v5988
    %v5994 = vlaneseq
    %v5995 = vshrl.u32 %v5994, 7
    %v5996 = vsub.s32 %v2263, %v5995
    %v5997 = vrot.slane %v5048, %v5996
    %v5998 = vsel %vm2268, %v5997, %v5993
    %v5999 = vlaneseq
    %v6000 = vshrl.u32 %v5999, 7
    %v6001 = vsub.s32 %v2270, %v6000
    %v6002 = vrot.slane %v5053, %v6001
    %v6003 = vsel %vm2275, %v6002, %v5998
    %v6004 = vlaneseq
    %v6005 = vshrl.u32 %v6004, 7
    %v6006 = vsub.s32 %v2277, %v6005
    %v6007 = vrot.slane %v5058, %v6006
    %v6008 = vsel %vm2282, %v6007, %v6003
    %v6009 = vlaneseq
    %v6010 = vshrl.u32 %v6009, 7
    %v6011 = vsub.s32 %v2284, %v6010
    %v6012 = vrot.slane %v5063, %v6011
    %v6013 = vsel %vm2289, %v6012, %v6008
    %v6014 = vlaneseq
    %v6015 = vshrl.u32 %v6014, 7
    %v6016 = vsub.s32 %v2181, %v6015
    %v6017 = vrot.slane %v5068, %v6016
    %v6018 = vlaneseq
    %v6019 = vshrl.u32 %v6018, 7
    %v6020 = vsub.s32 %v2186, %v6019
    %v6021 = vrot.slane %v5073, %v6020
    %v6022 = vsel %vm2191, %v6021, %v6017
    %v6023 = vlaneseq
    %v6024 = vshrl.u32 %v6023, 7
    %v6025 = vsub.s32 %v2193, %v6024
    %v6026 = vrot.slane %v5078, %v6025
    %v6027 = vsel %vm2198, %v6026, %v6022
    %v6028 = vlaneseq
    %v6029 = vshrl.u32 %v6028, 7
    %v6030 = vsub.s32 %v2200, %v6029
    %v6031 = vrot.slane %v5083, %v6030
    %v6032 = vsel %vm2205, %v6031, %v6027
    %v6033 = vlaneseq
    %v6034 = vshrl.u32 %v6033, 7
    %v6035 = vsub.s32 %v2207, %v6034
    %v6036 = vrot.slane %v5088, %v6035
    %v6037 = vsel %vm2212, %v6036, %v6032
    %v6038 = vlaneseq
    %v6039 = vshrl.u32 %v6038, 7
    %v6040 = vsub.s32 %v2214, %v6039
    %v6041 = vrot.slane %v5093, %v6040
    %v6042 = vsel %vm2219, %v6041, %v6037
    %v6043 = vlaneseq
    %v6044 = vshrl.u32 %v6043, 7
    %v6045 = vsub.s32 %v2221, %v6044
    %v6046 = vrot.slane %v5098, %v6045
    %v6047 = vsel %vm2226, %v6046, %v6042
    %v6048 = vlaneseq
    %v6049 = vshrl.u32 %v6048, 7
    %v6050 = vsub.s32 %v2228, %v6049
    %v6051 = vrot.slane %v5103, %v6050
    %v6052 = vsel %vm2233, %v6051, %v6047
    %v6053 = vlaneseq
    %v6054 = vshrl.u32 %v6053, 7
    %v6055 = vsub.s32 %v2235, %v6054
    %v6056 = vrot.slane %v5108, %v6055
    %v6057 = vsel %vm2240, %v6056, %v6052
    %v6058 = vlaneseq
    %v6059 = vshrl.u32 %v6058, 7
    %v6060 = vsub.s32 %v2242, %v6059
    %v6061 = vrot.slane %v5113, %v6060
    %v6062 = vsel %vm2247, %v6061, %v6057
    %v6063 = vlaneseq
    %v6064 = vshrl.u32 %v6063, 7
    %v6065 = vsub.s32 %v2249, %v6064
    %v6066 = vrot.slane %v5118, %v6065
    %v6067 = vsel %vm2254, %v6066, %v6062
    %v6068 = vlaneseq
    %v6069 = vshrl.u32 %v6068, 7
    %v6070 = vsub.s32 %v2256, %v6069
    %v6071 = vrot.slane %v5123, %v6070
    %v6072 = vsel %vm2261, %v6071, %v6067
    %v6073 = vlaneseq
    %v6074 = vshrl.u32 %v6073, 7
    %v6075 = vsub.s32 %v2263, %v6074
    %v6076 = vrot.slane %v5128, %v6075
    %v6077 = vsel %vm2268, %v6076, %v6072
    %v6078 = vlaneseq
    %v6079 = vshrl.u32 %v6078, 7
    %v6080 = vsub.s32 %v2270, %v6079
    %v6081 = vrot.slane %v5133, %v6080
    %v6082 = vsel %vm2275, %v6081, %v6077
    %v6083 = vlaneseq
    %v6084 = vshrl.u32 %v6083, 7
    %v6085 = vsub.s32 %v2277, %v6084
    %v6086 = vrot.slane %v5138, %v6085
    %v6087 = vsel %vm2282, %v6086, %v6082
    %v6088 = vlaneseq
    %v6089 = vshrl.u32 %v6088, 7
    %v6090 = vsub.s32 %v2284, %v6089
    %v6091 = vrot.slane %v5143, %v6090
    %v6092 = vsel %vm2289, %v6091, %v6087
    %v6093 = vlaneseq
    %v6094 = vshrl.u32 %v6093, 7
    %v6095 = vsub.s32 %v2181, %v6094
    %v6096 = vrot.slane %v5148, %v6095
    %v6097 = vlaneseq
    %v6098 = vshrl.u32 %v6097, 7
    %v6099 = vsub.s32 %v2186, %v6098
    %v6100 = vrot.slane %v5153, %v6099
    %v6101 = vsel %vm2191, %v6100, %v6096
    %v6102 = vlaneseq
    %v6103 = vshrl.u32 %v6102, 7
    %v6104 = vsub.s32 %v2193, %v6103
    %v6105 = vrot.slane %v5158, %v6104
    %v6106 = vsel %vm2198, %v6105, %v6101
    %v6107 = vlaneseq
    %v6108 = vshrl.u32 %v6107, 7
    %v6109 = vsub.s32 %v2200, %v6108
    %v6110 = vrot.slane %v5163, %v6109
    %v6111 = vsel %vm2205, %v6110, %v6106
    %v6112 = vlaneseq
    %v6113 = vshrl.u32 %v6112, 7
    %v6114 = vsub.s32 %v2207, %v6113
    %v6115 = vrot.slane %v5168, %v6114
    %v6116 = vsel %vm2212, %v6115, %v6111
    %v6117 = vlaneseq
    %v6118 = vshrl.u32 %v6117, 7
    %v6119 = vsub.s32 %v2214, %v6118
    %v6120 = vrot.slane %v5173, %v6119
    %v6121 = vsel %vm2219, %v6120, %v6116
    %v6122 = vlaneseq
    %v6123 = vshrl.u32 %v6122, 7
    %v6124 = vsub.s32 %v2221, %v6123
    %v6125 = vrot.slane %v5178, %v6124
    %v6126 = vsel %vm2226, %v6125, %v6121
    %v6127 = vlaneseq
    %v6128 = vshrl.u32 %v6127, 7
    %v6129 = vsub.s32 %v2228, %v6128
    %v6130 = vrot.slane %v5183, %v6129
    %v6131 = vsel %vm2233, %v6130, %v6126
    %v6132 = vlaneseq
    %v6133 = vshrl.u32 %v6132, 7
    %v6134 = vsub.s32 %v2235, %v6133
    %v6135 = vrot.slane %v5188, %v6134
    %v6136 = vsel %vm2240, %v6135, %v6131
    %v6137 = vlaneseq
    %v6138 = vshrl.u32 %v6137, 7
    %v6139 = vsub.s32 %v2242, %v6138
    %v6140 = vrot.slane %v5193, %v6139
    %v6141 = vsel %vm2247, %v6140, %v6136
    %v6142 = vlaneseq
    %v6143 = vshrl.u32 %v6142, 7
    %v6144 = vsub.s32 %v2249, %v6143
    %v6145 = vrot.slane %v5198, %v6144
    %v6146 = vsel %vm2254, %v6145, %v6141
    %v6147 = vlaneseq
    %v6148 = vshrl.u32 %v6147, 7
    %v6149 = vsub.s32 %v2256, %v6148
    %v6150 = vrot.slane %v5203, %v6149
    %v6151 = vsel %vm2261, %v6150, %v6146
    %v6152 = vlaneseq
    %v6153 = vshrl.u32 %v6152, 7
    %v6154 = vsub.s32 %v2263, %v6153
    %v6155 = vrot.slane %v5208, %v6154
    %v6156 = vsel %vm2268, %v6155, %v6151
    %v6157 = vlaneseq
    %v6158 = vshrl.u32 %v6157, 7
    %v6159 = vsub.s32 %v2270, %v6158
    %v6160 = vrot.slane %v5213, %v6159
    %v6161 = vsel %vm2275, %v6160, %v6156
    %v6162 = vlaneseq
    %v6163 = vshrl.u32 %v6162, 7
    %v6164 = vsub.s32 %v2277, %v6163
    %v6165 = vrot.slane %v5218, %v6164
    %v6166 = vsel %vm2282, %v6165, %v6161
    %v6167 = vlaneseq
    %v6168 = vshrl.u32 %v6167, 7
    %v6169 = vsub.s32 %v2284, %v6168
    %v6170 = vrot.slane %v5223, %v6169
    %v6171 = vsel %vm2289, %v6170, %v6166
    %v6172 = vlaneseq
    %v6173 = vshrl.u32 %v6172, 7
    %v6174 = vsub.s32 %v2181, %v6173
    %v6175 = vrot.slane %v5228, %v6174
    %v6176 = vlaneseq
    %v6177 = vshrl.u32 %v6176, 7
    %v6178 = vsub.s32 %v2186, %v6177
    %v6179 = vrot.slane %v5233, %v6178
    %v6180 = vsel %vm2191, %v6179, %v6175
    %v6181 = vlaneseq
    %v6182 = vshrl.u32 %v6181, 7
    %v6183 = vsub.s32 %v2193, %v6182
    %v6184 = vrot.slane %v5238, %v6183
    %v6185 = vsel %vm2198, %v6184, %v6180
    %v6186 = vlaneseq
    %v6187 = vshrl.u32 %v6186, 7
    %v6188 = vsub.s32 %v2200, %v6187
    %v6189 = vrot.slane %v5243, %v6188
    %v6190 = vsel %vm2205, %v6189, %v6185
    %v6191 = vlaneseq
    %v6192 = vshrl.u32 %v6191, 7
    %v6193 = vsub.s32 %v2207, %v6192
    %v6194 = vrot.slane %v5248, %v6193
    %v6195 = vsel %vm2212, %v6194, %v6190
    %v6196 = vlaneseq
    %v6197 = vshrl.u32 %v6196, 7
    %v6198 = vsub.s32 %v2214, %v6197
    %v6199 = vrot.slane %v5253, %v6198
    %v6200 = vsel %vm2219, %v6199, %v6195
    %v6201 = vlaneseq
    %v6202 = vshrl.u32 %v6201, 7
    %v6203 = vsub.s32 %v2221, %v6202
    %v6204 = vrot.slane %v5258, %v6203
    %v6205 = vsel %vm2226, %v6204, %v6200
    %v6206 = vlaneseq
    %v6207 = vshrl.u32 %v6206, 7
    %v6208 = vsub.s32 %v2228, %v6207
    %v6209 = vrot.slane %v5263, %v6208
    %v6210 = vsel %vm2233, %v6209, %v6205
    %v6211 = vlaneseq
    %v6212 = vshrl.u32 %v6211, 7
    %v6213 = vsub.s32 %v2235, %v6212
    %v6214 = vrot.slane %v5268, %v6213
    %v6215 = vsel %vm2240, %v6214, %v6210
    %v6216 = vlaneseq
    %v6217 = vshrl.u32 %v6216, 7
    %v6218 = vsub.s32 %v2242, %v6217
    %v6219 = vrot.slane %v5273, %v6218
    %v6220 = vsel %vm2247, %v6219, %v6215
    %v6221 = vlaneseq
    %v6222 = vshrl.u32 %v6221, 7
    %v6223 = vsub.s32 %v2249, %v6222
    %v6224 = vrot.slane %v5278, %v6223
    %v6225 = vsel %vm2254, %v6224, %v6220
    %v6226 = vlaneseq
    %v6227 = vshrl.u32 %v6226, 7
    %v6228 = vsub.s32 %v2256, %v6227
    %v6229 = vrot.slane %v5283, %v6228
    %v6230 = vsel %vm2261, %v6229, %v6225
    %v6231 = vlaneseq
    %v6232 = vshrl.u32 %v6231, 7
    %v6233 = vsub.s32 %v2263, %v6232
    %v6234 = vrot.slane %v5288, %v6233
    %v6235 = vsel %vm2268, %v6234, %v6230
    %v6236 = vlaneseq
    %v6237 = vshrl.u32 %v6236, 7
    %v6238 = vsub.s32 %v2270, %v6237
    %v6239 = vrot.slane %v5293, %v6238
    %v6240 = vsel %vm2275, %v6239, %v6235
    %v6241 = vlaneseq
    %v6242 = vshrl.u32 %v6241, 7
    %v6243 = vsub.s32 %v2277, %v6242
    %v6244 = vrot.slane %v5298, %v6243
    %v6245 = vsel %vm2282, %v6244, %v6240
    %v6246 = vlaneseq
    %v6247 = vshrl.u32 %v6246, 7
    %v6248 = vsub.s32 %v2284, %v6247
    %v6249 = vrot.slane %v5303, %v6248
    %v6250 = vsel %vm2289, %v6249, %v6245
    %v6251 = vlaneseq
    %v6252 = vshrl.u32 %v6251, 7
    %v6253 = vsub.s32 %v2181, %v6252
    %v6254 = vrot.slane %v5308, %v6253
    %v6255 = vlaneseq
    %v6256 = vshrl.u32 %v6255, 7
    %v6257 = vsub.s32 %v2186, %v6256
    %v6258 = vrot.slane %v5313, %v6257
    %v6259 = vsel %vm2191, %v6258, %v6254
    %v6260 = vlaneseq
    %v6261 = vshrl.u32 %v6260, 7
    %v6262 = vsub.s32 %v2193, %v6261
    %v6263 = vrot.slane %v5318, %v6262
    %v6264 = vsel %vm2198, %v6263, %v6259
    %v6265 = vlaneseq
    %v6266 = vshrl.u32 %v6265, 7
    %v6267 = vsub.s32 %v2200, %v6266
    %v6268 = vrot.slane %v5323, %v6267
    %v6269 = vsel %vm2205, %v6268, %v6264
    %v6270 = vlaneseq
    %v6271 = vshrl.u32 %v6270, 7
    %v6272 = vsub.s32 %v2207, %v6271
    %v6273 = vrot.slane %v5328, %v6272
    %v6274 = vsel %vm2212, %v6273, %v6269
    %v6275 = vlaneseq
    %v6276 = vshrl.u32 %v6275, 7
    %v6277 = vsub.s32 %v2214, %v6276
    %v6278 = vrot.slane %v5333, %v6277
    %v6279 = vsel %vm2219, %v6278, %v6274
    %v6280 = vlaneseq
    %v6281 = vshrl.u32 %v6280, 7
    %v6282 = vsub.s32 %v2221, %v6281
    %v6283 = vrot.slane %v5338, %v6282
    %v6284 = vsel %vm2226, %v6283, %v6279
    %v6285 = vlaneseq
    %v6286 = vshrl.u32 %v6285, 7
    %v6287 = vsub.s32 %v2228, %v6286
    %v6288 = vrot.slane %v5343, %v6287
    %v6289 = vsel %vm2233, %v6288, %v6284
    %v6290 = vlaneseq
    %v6291 = vshrl.u32 %v6290, 7
    %v6292 = vsub.s32 %v2235, %v6291
    %v6293 = vrot.slane %v5348, %v6292
    %v6294 = vsel %vm2240, %v6293, %v6289
    %v6295 = vlaneseq
    %v6296 = vshrl.u32 %v6295, 7
    %v6297 = vsub.s32 %v2242, %v6296
    %v6298 = vrot.slane %v5353, %v6297
    %v6299 = vsel %vm2247, %v6298, %v6294
    %v6300 = vlaneseq
    %v6301 = vshrl.u32 %v6300, 7
    %v6302 = vsub.s32 %v2249, %v6301
    %v6303 = vrot.slane %v5358, %v6302
    %v6304 = vsel %vm2254, %v6303, %v6299
    %v6305 = vlaneseq
    %v6306 = vshrl.u32 %v6305, 7
    %v6307 = vsub.s32 %v2256, %v6306
    %v6308 = vrot.slane %v5363, %v6307
    %v6309 = vsel %vm2261, %v6308, %v6304
    %v6310 = vlaneseq
    %v6311 = vshrl.u32 %v6310, 7
    %v6312 = vsub.s32 %v2263, %v6311
    %v6313 = vrot.slane %v5368, %v6312
    %v6314 = vsel %vm2268, %v6313, %v6309
    %v6315 = vlaneseq
    %v6316 = vshrl.u32 %v6315, 7
    %v6317 = vsub.s32 %v2270, %v6316
    %v6318 = vrot.slane %v5373, %v6317
    %v6319 = vsel %vm2275, %v6318, %v6314
    %v6320 = vlaneseq
    %v6321 = vshrl.u32 %v6320, 7
    %v6322 = vsub.s32 %v2277, %v6321
    %v6323 = vrot.slane %v5378, %v6322
    %v6324 = vsel %vm2282, %v6323, %v6319
    %v6325 = vlaneseq
    %v6326 = vshrl.u32 %v6325, 7
    %v6327 = vsub.s32 %v2284, %v6326
    %v6328 = vrot.slane %v5383, %v6327
    %v6329 = vsel %vm2289, %v6328, %v6324
    %v6330 = vsel %vm2844, %v5855, %v5776
    %v6331 = vsel %vm2846, %v5934, %v6330
    %v6332 = vsel %vm2848, %v6013, %v6331
    %v6333 = vsel %vm2850, %v6092, %v6332
    %v6334 = vsel %vm2852, %v6171, %v6333
    %v6335 = vsel %vm2854, %v6250, %v6334
    %v6336 = vsel %vm2856, %v6329, %v6335
    %6338 = vst [vmem:[#allocation11] sm:$0xff] %v6336
    // Predicated region
    $region42: #{tpu_custom_call.1} parent=1 // pred_check
      _
    $region43: #{tpu_custom_call.1} parent=1 // pred_check_branch
      %6340 = sbr.rel (0) target = $region45
    $region44: #{tpu_custom_call.1} parent=1 // pred_region
      %s6342 = ssub.s32 128, 128
      %6343 = vsyncadd [#allocation4], %s6342
      %s6345 = sshll.u32 [#allocation10], 4
      %s6346 = int_to_ptr.vmem [resolvable:$true] %s6345
      %6348 = dma.vmem_to_hbm [thread:$0]  %s6346, 128, %s6, [#allocation4]
    $region45: #{tpu_custom_call.1} parent=1 // pred_fallthru
      _
    // Predicated region
    $region46: #{tpu_custom_call.1} parent=1 // pred_check
      _
    $region47: #{tpu_custom_call.1} parent=1 // pred_check_branch
      %6350 = sbr.rel (0) target = $region49
    $region48: #{tpu_custom_call.1} parent=1 // pred_region
      %s6352 = ssub.s32 128, 128
      %6353 = vsyncadd [#allocation12], %s6352
      %s6355 = sshll.u32 [#allocation11], 4
      %s6356 = int_to_ptr.vmem [resolvable:$true] %s6355
      %6358 = dma.vmem_to_hbm [thread:$0]  %s6356, 128, %s7, [#allocation12]
    $region49: #{tpu_custom_call.1} parent=1 // pred_fallthru
      _
    // Predicated region
    $region50: #{tpu_custom_call.1} parent=1 // pred_check
      _
    $region51: #{tpu_custom_call.1} parent=1 // pred_check_branch
      %6360 = sbr.rel (0) target = $region53
    $region52: #{tpu_custom_call.1} parent=1 // pred_region
      %6361 = dma.done [#allocation4], 128
    $region53: #{tpu_custom_call.1} parent=1 // pred_fallthru
      _
    // Predicated region
    $region54: #{tpu_custom_call.1} parent=1 // pred_check
      _
    $region55: #{tpu_custom_call.1} parent=1 // pred_check_branch
      %6363 = sbr.rel (0) target = $region57
    $region56: #{tpu_custom_call.1} parent=1 // pred_region
      %6364 = dma.done [#allocation12], 128
    $region57: #{tpu_custom_call.1} parent=1 // pred_fallthru
      _
    %6365 = vsyncpa [#allocation3], 1
    %6366 = vsyncpa [#allocation6], 1
    %6367 = vsyncpa [#allocation9], 1
    %6368 = vsyncpa [#allocation4], 1
    %6369 = vsyncpa [#allocation12], 1

</llo_original>
